<compile_context>
chip_gen: v7x
topology: tpu7x:2x2x1
jax: 0.10.0
libtpu: 0.0.40
codegen_flags: <defaults>
</compile_context>

<pallas_src>
import functools
import math

import jax
import jax.numpy as jnp
from jax.experimental import pallas as pl
from jax.experimental.pallas import tpu as pltpu

EPS = 1e-5  # torch.nn.LayerNorm default eps
VMEM_LIMIT_BYTES = 64 * 1024 * 1024

_PAR = pltpu.CompilerParams(dimension_semantics=("parallel",),
                            vmem_limit_bytes=VMEM_LIMIT_BYTES)


# ----------------------------- BlockSpec helpers -----------------------------

def _const_spec(shape):
    """Grid-invariant (weight/bias) spec: constant index map, single-buffered."""
    index_map = lambda n, _nd=len(shape): (0,) * _nd
    try:
        # Single-buffer weights that never change across the grid so they do
        # not waste a second pipeline buffer of VMEM (matters at real scale).
        return pl.BlockSpec(shape, index_map, pipeline_mode=pl.Buffered(1))
    except Exception:  # older jax without pipeline_mode / Buffered
        return pl.BlockSpec(shape, index_map)


# ----------------------------- Pallas kernels -----------------------------

def _embed_kernel(x_ref, w_ref, b_ref, pos_ref, o_ref):
    # decoder_embed + absolute pos-embed add, fused.  x:(1,L,Cenc), w bf16.
    o_ref[0] = (
        jnp.dot(x_ref[0].astype(jnp.bfloat16), w_ref[...],
                preferred_element_type=jnp.float32)
        + b_ref[...]
        + pos_ref[0]
    )


def _block_kernel(x_ref, ln1g_ref, ln1b_ref, qkvw_ref, qkvb_ref,
                  pw_ref, pb_ref, ln2g_ref, ln2b_ref,
                  w1_ref, b1_ref, w2_ref, b2_ref,
                  o_ref, attn_scr, *, num_heads, head_dim):
    # Fully fused transformer block for one batch element.
    # x:(1,L,C) f32.  Matmul weights are bf16, biases/LN params f32.
    x = x_ref[0]                                          # (L, C) residual
    L, C = x.shape

    # --- LN1 (f32 statistics, biased variance like torch) ---
    mean = jnp.mean(x, axis=-1, keepdims=True)
    var = jnp.mean((x - mean) ** 2, axis=-1, keepdims=True)
    xn = (x - mean) * jax.lax.rsqrt(var + EPS) * ln1g_ref[...] + ln1b_ref[...]
    xn16 = xn.astype(jnp.bfloat16)

    # --- fused QKV projection: ONE lane-dense (L,C)x(C,3C) MXU matmul.
    # The attention scale (head_dim**-0.5) is pre-folded into the Q slice of
    # qkv_w / qkv_b at parameter-init time.
    qkv = jnp.dot(xn16, qkvw_ref[...],
                  preferred_element_type=jnp.float32) + qkvb_ref[...]   # (L,3C)
    q_all = qkv[:, :C]
    k_all = qkv[:, C:2 * C]
    v_all = qkv[:, 2 * C:]
    # One K transpose per block (shared by every head's score matmul).
    kT = jnp.transpose(k_all, (1, 0)).astype(jnp.bfloat16)              # (C, L)

    # --- per-head attention; each head's (L, hd) output goes straight into a
    # lane-concat VMEM scratch so the output projection is a single full-K
    # (L,C)x(C,C) matmul afterwards.
    # TODO(synk): flash/query-tile this (extra parallel grid axis) for real
    # SAM scale so (L,L) scores fit v7x's 64 MiB VMEM.
    for h in range(num_heads):
        lo = h * head_dim
        q_h = q_all[:, lo:lo + head_dim].astype(jnp.bfloat16)           # (L, hd)
        v_h = v_all[:, lo:lo + head_dim].astype(jnp.bfloat16)           # (L, hd)
        s = jnp.dot(q_h, kT[lo:lo + head_dim, :],
                    preferred_element_type=jnp.float32)                 # (L, L)
        s = s - jnp.max(s, axis=-1, keepdims=True)
        p = jnp.exp(s)
        p = p * pl.reciprocal(jnp.sum(p, axis=-1, keepdims=True), approx=True)
        attn_scr[:, lo:lo + head_dim] = jnp.dot(
            p.astype(jnp.bfloat16), v_h, preferred_element_type=jnp.float32)

    # --- single output projection over all heads + residual ---
    x1 = x + (jnp.dot(attn_scr[...].astype(jnp.bfloat16), pw_ref[...],
                      preferred_element_type=jnp.float32) + pb_ref[...])

    # --- LN2 + MLP (exact erf GELU = nn.GELU default) + residual ---
    m2 = jnp.mean(x1, axis=-1, keepdims=True)
    v2 = jnp.mean((x1 - m2) ** 2, axis=-1, keepdims=True)
    x2 = (x1 - m2) * jax.lax.rsqrt(v2 + EPS) * ln2g_ref[...] + ln2b_ref[...]
    hid = jnp.dot(x2.astype(jnp.bfloat16), w1_ref[...],
                  preferred_element_type=jnp.float32) + b1_ref[...]
    # TODO(synk): tanh-approx GELU would use the EUP slot; kept erf for parity.
    hid = 0.5 * hid * (1.0 + jax.lax.erf(hid * (1.0 / math.sqrt(2.0))))
    o_ref[0] = x1 + (jnp.dot(hid.astype(jnp.bfloat16), w2_ref[...],
                             preferred_element_type=jnp.float32) + b2_ref[...])


def _head_loss_kernel(x_ref, g_ref, b_ref, w_ref, pb_ref, t_ref,
                      pred_ref, loss_ref):
    # decoder_norm + decoder_pred + MSE-loss partial, fused (pred never makes
    # an extra HBM round trip for the loss).
    x = x_ref[0]                                          # (L, C)
    mean = jnp.mean(x, axis=-1, keepdims=True)
    var = jnp.mean((x - mean) ** 2, axis=-1, keepdims=True)
    xn = (x - mean) * jax.lax.rsqrt(var + EPS) * g_ref[...] + b_ref[...]
    pred = jnp.dot(xn.astype(jnp.bfloat16), w_ref[...],
                   preferred_element_type=jnp.float32) + pb_ref[...]    # (L, D)
    pred_ref[0] = pred
    d = pred - t_ref[0]
    per_tok = jnp.mean(d * d, axis=-1, keepdims=True)     # (L, 1)  channel-mean
    partial = jnp.sum(per_tok, axis=0, keepdims=True)     # (1, 1)  sum over L
    # lane-dense (1,128) partial-sum tile per batch element (no masked stores,
    # grid stays "parallel"/megacore-eligible); reduced over N in JAX.
    loss_ref[0] = jnp.broadcast_to(partial, (1, 128))


# ----------------------------- kernel wrappers -----------------------------

def embed(x, w, b, pos):
    N, L, Din = x.shape
    Dout = w.shape[1]
    return pl.pallas_call(
        _embed_kernel,
        out_shape=jax.ShapeDtypeStruct((N, L, Dout), jnp.float32),
        grid=(N,),
        in_specs=[
            pl.BlockSpec((1, L, Din), lambda n: (n, 0, 0)),
            _const_spec((Din, Dout)),
            _const_spec((1, Dout)),
            _const_spec((1, L, Dout)),
        ],
        out_specs=pl.BlockSpec((1, L, Dout), lambda n: (n, 0, 0)),
        compiler_params=_PAR,
    )(x, w, b, pos)


def decoder_block(x, bp, num_heads):
    N, L, C = x.shape
    hd = C // num_heads
    assert num_heads * hd == C
    H = bp['mlp_w1'].shape[1]
    kern = functools.partial(_block_kernel, num_heads=num_heads, head_dim=hd)
    return pl.pallas_call(
        kern,
        out_shape=jax.ShapeDtypeStruct((N, L, C), jnp.float32),
        grid=(N,),
        in_specs=[
            pl.BlockSpec((1, L, C), lambda n: (n, 0, 0)),
            _const_spec((1, C)), _const_spec((1, C)),             # ln1
            _const_spec((C, 3 * C)), _const_spec((1, 3 * C)),     # fused qkv
            _const_spec((C, C)), _const_spec((1, C)),             # proj
            _const_spec((1, C)), _const_spec((1, C)),             # ln2
            _const_spec((C, H)), _const_spec((1, H)),             # mlp lin1
            _const_spec((H, C)), _const_spec((1, C)),             # mlp lin2
        ],
        out_specs=pl.BlockSpec((1, L, C), lambda n: (n, 0, 0)),
        scratch_shapes=[pltpu.VMEM((L, C), jnp.float32)],         # head concat
        compiler_params=_PAR,
    )(x, bp['ln1_g'], bp['ln1_b'], bp['qkv_w'], bp['qkv_b'],
      bp['proj_w'], bp['proj_b'], bp['ln2_g'], bp['ln2_b'],
      bp['mlp_w1'], bp['mlp_b1'], bp['mlp_w2'], bp['mlp_b2'])


def pred_head_loss(x, g, b, w, pb, target):
    N, L, C = x.shape
    D = w.shape[1]
    pred, loss_n = pl.pallas_call(
        _head_loss_kernel,
        out_shape=(jax.ShapeDtypeStruct((N, L, D), jnp.float32),
                   jax.ShapeDtypeStruct((N, 1, 128), jnp.float32)),
        grid=(N,),
        in_specs=[
            pl.BlockSpec((1, L, C), lambda n: (n, 0, 0)),
            _const_spec((1, C)), _const_spec((1, C)),
            _const_spec((C, D)), _const_spec((1, D)),
            pl.BlockSpec((1, L, D), lambda n: (n, 0, 0)),
        ],
        out_specs=(pl.BlockSpec((1, L, D), lambda n: (n, 0, 0)),
                   pl.BlockSpec((1, 1, 128), lambda n: (n, 0, 0))),
        compiler_params=_PAR,
    )(x, g, b, w, pb, target)
    # sum over (N, L) of per-token channel-mean MSE  (matches loss.sum()).
    return pred, jnp.sum(loss_n[:, 0, 0])


# ----------------------------- JAX glue / model -----------------------------

def patchify(imgs, p):
    # imgs: (N, 3, H, W) -> (N, h, w, p*p*3)   (matches the torch einsum exactly)
    N, C, H, W = imgs.shape
    h, w = H // p, W // p
    x = imgs.reshape(N, C, h, p, w, p)
    x = jnp.einsum('nchpwq->nhwpqc', x)
    return x.reshape(N, h, w, p * p * C)


def forward(params, imgs, x, *, num_heads, patch_size):
    # x: encoder features NCHW = (N, C_enc, h, w); imgs: (N, 3, H, W)
    N, Cenc, h, w = x.shape
    L = h * w
    xt = jnp.transpose(x, (0, 2, 3, 1)).reshape(N, L, Cenc)     # x.permute(0,2,3,1)
    pos = params['pos_embed'].reshape(1, L, -1)                 # frozen (zeros)
    xt = embed(xt, params['embed_w'], params['embed_b'], pos)   # decoder_embed + pos
    for bp in params['blocks']:
        xt = decoder_block(xt, bp, num_heads)
    D = params['pred_w'].shape[1]
    target = patchify(imgs, patch_size).reshape(N, L, D)
    pred, loss = pred_head_loss(xt, params['norm_g'], params['norm_b'],
                                params['pred_w'], params['pred_b'], target)
    return pred.reshape(N, h, w, D), loss


def init_params(key, embed_dim, dec_dim, depth, mlp_ratio, patch_size, in_chans,
                grid_size, num_heads):
    hidden = int(dec_dim * mlp_ratio)
    pred_dim = patch_size * patch_size * in_chans
    hd = dec_dim // num_heads
    scale = hd ** -0.5
    ks = iter(jax.random.split(key, 8 + 12 * depth))

    def wgen(shape):
        return 0.02 * jax.random.normal(next(ks), shape, jnp.float32)

    params = {
        'embed_w': wgen((embed_dim, dec_dim)).astype(jnp.bfloat16),
        'embed_b': wgen((1, dec_dim)),
        'pos_embed': jnp.zeros((1, grid_size, grid_size, dec_dim), jnp.float32),
        'norm_g': jnp.ones((1, dec_dim), jnp.float32),
        'norm_b': jnp.zeros((1, dec_dim), jnp.float32),
        'pred_w': wgen((dec_dim, pred_dim)).astype(jnp.bfloat16),
        'pred_b': wgen((1, pred_dim)),
        'blocks': [],
    }
    for _ in range(depth):
        qkv_w = wgen((dec_dim, 3 * dec_dim))
        qkv_b = wgen((1, 3 * dec_dim))
        # Fold the attention scale (head_dim**-0.5) into the Q slice of the
        # fused QKV weights/bias at init time: ((x@Wq+bq)*s) == x@(Wq*s)+bq*s.
        qkv_w = qkv_w.at[:, :dec_dim].multiply(scale)
        qkv_b = qkv_b.at[:, :dec_dim].multiply(scale)
        params['blocks'].append({
            'ln1_g': jnp.ones((1, dec_dim), jnp.float32),
            'ln1_b': jnp.zeros((1, dec_dim), jnp.float32),
            'qkv_w': qkv_w.astype(jnp.bfloat16),
            'qkv_b': qkv_b,
            'proj_w': wgen((dec_dim, dec_dim)).astype(jnp.bfloat16),
            'proj_b': wgen((1, dec_dim)),
            'ln2_g': jnp.ones((1, dec_dim), jnp.float32),
            'ln2_b': jnp.zeros((1, dec_dim), jnp.float32),
            'mlp_w1': wgen((dec_dim, hidden)).astype(jnp.bfloat16),
            'mlp_b1': wgen((1, hidden)),
            'mlp_w2': wgen((hidden, dec_dim)).astype(jnp.bfloat16),
            'mlp_b2': wgen((1, dec_dim)),
        })
    return params


if __name__ == "__main__":
    # Small but forward-consistent config.
    IMG_SIZE, PATCH, IN_CHANS = 32, 8, 3
    EMBED_DIM, DEC_DIM, DEPTH, NUM_HEADS, MLP_RATIO = 32, 32, 2, 4, 4.0
    GRID = IMG_SIZE // PATCH          # 4 -> L = 16 tokens
    N = 2

    key = jax.random.PRNGKey(0)
    k_param, k_img, k_x = jax.random.split(key, 3)
    params = init_params(k_param, EMBED_DIM, DEC_DIM, DEPTH, MLP_RATIO,
                         PATCH, IN_CHANS, GRID, NUM_HEADS)
    imgs = jax.random.normal(k_img, (N, IN_CHANS, IMG_SIZE, IMG_SIZE), jnp.float32)
    x = jax.random.normal(k_x, (N, EMBED_DIM, GRID, GRID), jnp.float32)

    fwd = jax.jit(functools.partial(forward, num_heads=NUM_HEADS, patch_size=PATCH))
    pred, loss = fwd(params, imgs, x)
    jax.block_until_ready((pred, loss))

    assert pred.shape == (N, GRID, GRID, PATCH * PATCH * IN_CHANS)
    assert loss.shape == ()
    assert bool(jnp.isfinite(loss))
    print("KERNEL_OK")
</pallas_src>

<mosaic_0001>
module attributes {stable_mosaic.version = 11 : i64} {
  func.func @_embed_kernel(%arg0: i32, %arg1: memref<1x16x32xf32, #tpu.memory_space<vmem>>, %arg2: memref<32x32xbf16, #tpu.memory_space<vmem>>, %arg3: memref<1x32xf32, #tpu.memory_space<vmem>>, %arg4: memref<1x16x32xf32, #tpu.memory_space<vmem>>, %arg5: memref<1x16x32xf32, #tpu.memory_space<vmem>>) attributes {dimension_semantics = [#tpu.dimension_semantics<parallel>], iteration_bounds = array<i64: 2>, scalar_prefetch = 0 : i64, scratch_operands = 0 : i64, tpu.core_type = #tpu.core_type<tc>, window_params = [{transform_indices = @transform_0, window_bounds = array<i64: 1, 16, 32>}, {pipeline_mode = #tpu.pipeline_mode<synchronous>, transform_indices = @transform_1, window_bounds = array<i64: 32, 32>}, {pipeline_mode = #tpu.pipeline_mode<synchronous>, transform_indices = @transform_2, window_bounds = array<i64: 1, 32>}, {pipeline_mode = #tpu.pipeline_mode<synchronous>, transform_indices = @transform_3, window_bounds = array<i64: 1, 16, 32>}, {transform_indices = @transform_4, window_bounds = array<i64: 1, 16, 32>}]} {
    %c0 = arith.constant 0 : index
    %c0_0 = arith.constant 0 : index
    %c0_1 = arith.constant 0 : index
    %0 = vector.load %arg1[%c0, %c0_0, %c0_1] : memref<1x16x32xf32, #tpu.memory_space<vmem>>, vector<1x16x32xf32>
    %1 = vector.shape_cast %0 : vector<1x16x32xf32> to vector<16x32xf32>
    %2 = arith.truncf %1 : vector<16x32xf32> to vector<16x32xbf16>
    %c0_2 = arith.constant 0 : index
    %c0_3 = arith.constant 0 : index
    %3 = vector.load %arg2[%c0_2, %c0_3] : memref<32x32xbf16, #tpu.memory_space<vmem>>, vector<32x32xbf16>
    %cst = arith.constant dense<0.000000e+00> : vector<16x32xf32>
    %4 = tpu.matmul %2, %3, %cst {dimension_numbers = #tpu.dot_dimension_numbers<[1], [0], [0], [1], [0, 0, 1, 1], [], []>} : vector<16x32xbf16>, vector<32x32xbf16>, vector<16x32xf32> -> vector<16x32xf32>
    %c0_4 = arith.constant 0 : index
    %c0_5 = arith.constant 0 : index
    %5 = vector.load %arg3[%c0_4, %c0_5] : memref<1x32xf32, #tpu.memory_space<vmem>>, vector<1x32xf32>
    %6 = vector.broadcast %5 : vector<1x32xf32> to vector<16x32xf32>
    %7 = arith.addf %4, %6 : vector<16x32xf32>
    %c0_6 = arith.constant 0 : index
    %c0_7 = arith.constant 0 : index
    %c0_8 = arith.constant 0 : index
    %8 = vector.load %arg4[%c0_6, %c0_7, %c0_8] : memref<1x16x32xf32, #tpu.memory_space<vmem>>, vector<1x16x32xf32>
    %9 = vector.shape_cast %8 : vector<1x16x32xf32> to vector<16x32xf32>
    %10 = arith.addf %7, %9 : vector<16x32xf32>
    %c0_9 = arith.constant 0 : index
    %c0_10 = arith.constant 0 : index
    %c0_11 = arith.constant 0 : index
    %11 = vector.load %arg5[%c0_9, %c0_10, %c0_11] : memref<1x16x32xf32, #tpu.memory_space<vmem>>, vector<1x16x32xf32>
    %12 = vector.shape_cast %11 : vector<1x16x32xf32> to vector<16x32xf32>
    %13 = vector.shape_cast %10 : vector<16x32xf32> to vector<1x16x32xf32>
    tpu.vector_store %arg5[%c0_9, %c0_10, %c0_11], %13 {strides = array<i32>} : memref<1x16x32xf32, #tpu.memory_space<vmem>>, vector<1x16x32xf32>,
    return
  }
  func.func @transform_0(%arg0: i32) -> (i32, i32, i32) {
    %c0_i32 = arith.constant 0 : i32
    %c0_i32_0 = arith.constant 0 : i32
    %c0_i32_1 = arith.constant 0 : i32
    return %arg0, %c0_i32, %c0_i32_0 : i32, i32, i32
  }
  func.func @transform_1(%arg0: i32) -> (i32, i32) {
    %c0_i32 = arith.constant 0 : i32
    %c0_i32_0 = arith.constant 0 : i32
    %c0_i32_1 = arith.constant 0 : i32
    return %c0_i32, %c0_i32_0 : i32, i32
  }
  func.func @transform_2(%arg0: i32) -> (i32, i32) {
    %c0_i32 = arith.constant 0 : i32
    %c0_i32_0 = arith.constant 0 : i32
    %c0_i32_1 = arith.constant 0 : i32
    return %c0_i32, %c0_i32_0 : i32, i32
  }
  func.func @transform_3(%arg0: i32) -> (i32, i32, i32) {
    %c0_i32 = arith.constant 0 : i32
    %c0_i32_0 = arith.constant 0 : i32
    %c0_i32_1 = arith.constant 0 : i32
    %c0_i32_2 = arith.constant 0 : i32
    return %c0_i32, %c0_i32_0, %c0_i32_1 : i32, i32, i32
  }
  func.func @transform_4(%arg0: i32) -> (i32, i32, i32) {
    %c0_i32 = arith.constant 0 : i32
    %c0_i32_0 = arith.constant 0 : i32
    %c0_i32_1 = arith.constant 0 : i32
    return %arg0, %c0_i32, %c0_i32_0 : i32, i32, i32
  }
}

module attributes {stable_mosaic.version = 11 : i64} {
  func.func @_block_kernel(%arg0: i32, %arg1: memref<1x16x32xf32, #tpu.memory_space<vmem>>, %arg2: memref<1x32xf32, #tpu.memory_space<vmem>>, %arg3: memref<1x32xf32, #tpu.memory_space<vmem>>, %arg4: memref<32x96xbf16, #tpu.memory_space<vmem>>, %arg5: memref<1x96xf32, #tpu.memory_space<vmem>>, %arg6: memref<32x32xbf16, #tpu.memory_space<vmem>>, %arg7: memref<1x32xf32, #tpu.memory_space<vmem>>, %arg8: memref<1x32xf32, #tpu.memory_space<vmem>>, %arg9: memref<1x32xf32, #tpu.memory_space<vmem>>, %arg10: memref<32x128xbf16, #tpu.memory_space<vmem>>, %arg11: memref<1x128xf32, #tpu.memory_space<vmem>>, %arg12: memref<128x32xbf16, #tpu.memory_space<vmem>>, %arg13: memref<1x32xf32, #tpu.memory_space<vmem>>, %arg14: memref<1x16x32xf32, #tpu.memory_space<vmem>>, %arg15: memref<16x32xf32, #tpu.memory_space<vmem>>) attributes {dimension_semantics = [#tpu.dimension_semantics<parallel>], iteration_bounds = array<i64: 2>, scalar_prefetch = 0 : i64, scratch_operands = 1 : i64, tpu.core_type = #tpu.core_type<tc>, window_params = [{transform_indices = @transform_0, window_bounds = array<i64: 1, 16, 32>}, {pipeline_mode = #tpu.pipeline_mode<synchronous>, transform_indices = @transform_1, window_bounds = array<i64: 1, 32>}, {pipeline_mode = #tpu.pipeline_mode<synchronous>, transform_indices = @transform_2, window_bounds = array<i64: 1, 32>}, {pipeline_mode = #tpu.pipeline_mode<synchronous>, transform_indices = @transform_3, window_bounds = array<i64: 32, 96>}, {pipeline_mode = #tpu.pipeline_mode<synchronous>, transform_indices = @transform_4, window_bounds = array<i64: 1, 96>}, {pipeline_mode = #tpu.pipeline_mode<synchronous>, transform_indices = @transform_5, window_bounds = array<i64: 32, 32>}, {pipeline_mode = #tpu.pipeline_mode<synchronous>, transform_indices = @transform_6, window_bounds = array<i64: 1, 32>}, {pipeline_mode = #tpu.pipeline_mode<synchronous>, transform_indices = @transform_7, window_bounds = array<i64: 1, 32>}, {pipeline_mode = #tpu.pipeline_mode<synchronous>, transform_indices = @transform_8, window_bounds = array<i64: 1, 32>}, {pipeline_mode = #tpu.pipeline_mode<synchronous>, transform_indices = @transform_9, window_bounds = array<i64: 32, 128>}, {pipeline_mode = #tpu.pipeline_mode<synchronous>, transform_indices = @transform_10, window_bounds = array<i64: 1, 128>}, {pipeline_mode = #tpu.pipeline_mode<synchronous>, transform_indices = @transform_11, window_bounds = array<i64: 128, 32>}, {pipeline_mode = #tpu.pipeline_mode<synchronous>, transform_indices = @transform_12, window_bounds = array<i64: 1, 32>}, {transform_indices = @transform_13, window_bounds = array<i64: 1, 16, 32>}]} {
    %c0 = arith.constant 0 : index
    %c0_0 = arith.constant 0 : index
    %c0_1 = arith.constant 0 : index
    %0 = vector.load %arg1[%c0, %c0_0, %c0_1] : memref<1x16x32xf32, #tpu.memory_space<vmem>>, vector<1x16x32xf32>
    %1 = vector.shape_cast %0 : vector<1x16x32xf32> to vector<16x32xf32>
    %cst = arith.constant dense<0.000000e+00> : vector<16xf32>
    %2 = vector.multi_reduction <add>, %1, %cst [1] : vector<16x32xf32> to vector<16xf32>
    %3 = vector.shape_cast %2 : vector<16xf32> to vector<16x1xf32>
    %cst_2 = arith.constant 3.200000e+01 : f32
    %4 = vector.broadcast %cst_2 : f32 to vector<16x1xf32>
    %5 = arith.divf %3, %4 : vector<16x1xf32>
    %6 = vector.broadcast %5 : vector<16x1xf32> to vector<16x32xf32>
    %7 = arith.subf %1, %6 : vector<16x32xf32>
    %8 = arith.mulf %7, %7 : vector<16x32xf32>
    %cst_3 = arith.constant dense<0.000000e+00> : vector<16xf32>
    %9 = vector.multi_reduction <add>, %8, %cst_3 [1] : vector<16x32xf32> to vector<16xf32>
    %10 = vector.shape_cast %9 : vector<16xf32> to vector<16x1xf32>
    %cst_4 = arith.constant 3.200000e+01 : f32
    %11 = vector.broadcast %cst_4 : f32 to vector<16x1xf32>
    %12 = arith.divf %10, %11 : vector<16x1xf32>
    %13 = vector.broadcast %5 : vector<16x1xf32> to vector<16x32xf32>
    %14 = arith.subf %1, %13 : vector<16x32xf32>
    %cst_5 = arith.constant 9.99999974E-6 : f32
    %15 = vector.broadcast %cst_5 : f32 to vector<16x1xf32>
    %16 = arith.addf %12, %15 : vector<16x1xf32>
    %17 = math.rsqrt %16 : vector<16x1xf32>
    %18 = vector.broadcast %17 : vector<16x1xf32> to vector<16x32xf32>
    %19 = arith.mulf %14, %18 : vector<16x32xf32>
    %c0_6 = arith.constant 0 : index
    %c0_7 = arith.constant 0 : index
    %20 = vector.load %arg2[%c0_6, %c0_7] : memref<1x32xf32, #tpu.memory_space<vmem>>, vector<1x32xf32>
    %21 = vector.broadcast %20 : vector<1x32xf32> to vector<16x32xf32>
    %22 = arith.mulf %19, %21 : vector<16x32xf32>
    %c0_8 = arith.constant 0 : index
    %c0_9 = arith.constant 0 : index
    %23 = vector.load %arg3[%c0_8, %c0_9] : memref<1x32xf32, #tpu.memory_space<vmem>>, vector<1x32xf32>
    %24 = vector.broadcast %23 : vector<1x32xf32> to vector<16x32xf32>
    %25 = arith.addf %22, %24 : vector<16x32xf32>
    %26 = arith.truncf %25 : vector<16x32xf32> to vector<16x32xbf16>
    %c0_10 = arith.constant 0 : index
    %c0_11 = arith.constant 0 : index
    %27 = vector.load %arg4[%c0_10, %c0_11] : memref<32x96xbf16, #tpu.memory_space<vmem>>, vector<32x96xbf16>
    %cst_12 = arith.constant dense<0.000000e+00> : vector<16x96xf32>
    %28 = tpu.matmul %26, %27, %cst_12 {dimension_numbers = #tpu.dot_dimension_numbers<[1], [0], [0], [1], [0, 0, 1, 1], [], []>} : vector<16x32xbf16>, vector<32x96xbf16>, vector<16x96xf32> -> vector<16x96xf32>
    %c0_13 = arith.constant 0 : index
    %c0_14 = arith.constant 0 : index
    %29 = vector.load %arg5[%c0_13, %c0_14] : memref<1x96xf32, #tpu.memory_space<vmem>>, vector<1x96xf32>
    %30 = vector.broadcast %29 : vector<1x96xf32> to vector<16x96xf32>
    %31 = arith.addf %28, %30 : vector<16x96xf32>
    %32 = vector.extract_strided_slice %31 {offsets = [0, 0], sizes = [16, 32], strides = [1, 1]} : vector<16x96xf32> to vector<16x32xf32>
    %33 = vector.extract_strided_slice %31 {offsets = [0, 32], sizes = [16, 32], strides = [1, 1]} : vector<16x96xf32> to vector<16x32xf32>
    %34 = vector.extract_strided_slice %31 {offsets = [0, 64], sizes = [16, 32], strides = [1, 1]} : vector<16x96xf32> to vector<16x32xf32>
    %35 = tpu.transpose %33, [1, 0] : vector<16x32xf32> -> vector<32x16xf32>
    %36 = arith.truncf %35 : vector<32x16xf32> to vector<32x16xbf16>
    %37 = vector.extract_strided_slice %32 {offsets = [0, 0], sizes = [16, 8], strides = [1, 1]} : vector<16x32xf32> to vector<16x8xf32>
    %38 = arith.truncf %37 : vector<16x8xf32> to vector<16x8xbf16>
    %39 = vector.extract_strided_slice %34 {offsets = [0, 0], sizes = [16, 8], strides = [1, 1]} : vector<16x32xf32> to vector<16x8xf32>
    %40 = arith.truncf %39 : vector<16x8xf32> to vector<16x8xbf16>
    %41 = vector.extract_strided_slice %36 {offsets = [0, 0], sizes = [8, 16], strides = [1, 1]} : vector<32x16xbf16> to vector<8x16xbf16>
    %cst_15 = arith.constant dense<0.000000e+00> : vector<16x16xf32>
    %42 = tpu.matmul %38, %41, %cst_15 {dimension_numbers = #tpu.dot_dimension_numbers<[1], [0], [0], [1], [0, 0, 1, 1], [], []>} : vector<16x8xbf16>, vector<8x16xbf16>, vector<16x16xf32> -> vector<16x16xf32>
    %cst_16 = arith.constant dense<0xFF800000> : vector<16xf32>
    %43 = vector.multi_reduction <maximumf>, %42, %cst_16 [1] : vector<16x16xf32> to vector<16xf32>
    %44 = vector.shape_cast %43 : vector<16xf32> to vector<16x1xf32>
    %45 = vector.broadcast %44 : vector<16x1xf32> to vector<16x16xf32>
    %46 = arith.subf %42, %45 : vector<16x16xf32>
    %47 = math.exp %46 : vector<16x16xf32>
    %cst_17 = arith.constant dense<0.000000e+00> : vector<16xf32>
    %48 = vector.multi_reduction <add>, %47, %cst_17 [1] : vector<16x16xf32> to vector<16xf32>
    %49 = vector.shape_cast %48 : vector<16xf32> to vector<16x1xf32>
    %50 = tpu.reciprocal %49 {approx = true} : vector<16x1xf32> -> vector<16x1xf32>
    %51 = vector.broadcast %50 : vector<16x1xf32> to vector<16x16xf32>
    %52 = arith.mulf %47, %51 : vector<16x16xf32>
    %53 = arith.truncf %52 : vector<16x16xf32> to vector<16x16xbf16>
    %cst_18 = arith.constant dense<0.000000e+00> : vector<16x8xf32>
    %54 = tpu.matmul %53, %40, %cst_18 {dimension_numbers = #tpu.dot_dimension_numbers<[1], [0], [0], [1], [0, 0, 1, 1], [], []>} : vector<16x16xbf16>, vector<16x8xbf16>, vector<16x8xf32> -> vector<16x8xf32>
    %c0_19 = arith.constant 0 : index
    %c0_20 = arith.constant 0 : index
    %55 = vector.load %arg15[%c0_19, %c0_20] : memref<16x32xf32, #tpu.memory_space<vmem>>, vector<16x8xf32>
    tpu.vector_store %arg15[%c0_19, %c0_20], %54 {strides = array<i32>} : memref<16x32xf32, #tpu.memory_space<vmem>>, vector<16x8xf32>,
    %56 = vector.extract_strided_slice %32 {offsets = [0, 8], sizes = [16, 8], strides = [1, 1]} : vector<16x32xf32> to vector<16x8xf32>
    %57 = arith.truncf %56 : vector<16x8xf32> to vector<16x8xbf16>
    %58 = vector.extract_strided_slice %34 {offsets = [0, 8], sizes = [16, 8], strides = [1, 1]} : vector<16x32xf32> to vector<16x8xf32>
    %59 = arith.truncf %58 : vector<16x8xf32> to vector<16x8xbf16>
    %60 = vector.extract_strided_slice %36 {offsets = [8, 0], sizes = [8, 16], strides = [1, 1]} : vector<32x16xbf16> to vector<8x16xbf16>
    %cst_21 = arith.constant dense<0.000000e+00> : vector<16x16xf32>
    %61 = tpu.matmul %57, %60, %cst_21 {dimension_numbers = #tpu.dot_dimension_numbers<[1], [0], [0], [1], [0, 0, 1, 1], [], []>} : vector<16x8xbf16>, vector<8x16xbf16>, vector<16x16xf32> -> vector<16x16xf32>
    %cst_22 = arith.constant dense<0xFF800000> : vector<16xf32>
    %62 = vector.multi_reduction <maximumf>, %61, %cst_22 [1] : vector<16x16xf32> to vector<16xf32>
    %63 = vector.shape_cast %62 : vector<16xf32> to vector<16x1xf32>
    %64 = vector.broadcast %63 : vector<16x1xf32> to vector<16x16xf32>
    %65 = arith.subf %61, %64 : vector<16x16xf32>
    %66 = math.exp %65 : vector<16x16xf32>
    %cst_23 = arith.constant dense<0.000000e+00> : vector<16xf32>
    %67 = vector.multi_reduction <add>, %66, %cst_23 [1] : vector<16x16xf32> to vector<16xf32>
    %68 = vector.shape_cast %67 : vector<16xf32> to vector<16x1xf32>
    %69 = tpu.reciprocal %68 {approx = true} : vector<16x1xf32> -> vector<16x1xf32>
    %70 = vector.broadcast %69 : vector<16x1xf32> to vector<16x16xf32>
    %71 = arith.mulf %66, %70 : vector<16x16xf32>
    %72 = arith.truncf %71 : vector<16x16xf32> to vector<16x16xbf16>
    %cst_24 = arith.constant dense<0.000000e+00> : vector<16x8xf32>
    %73 = tpu.matmul %72, %59, %cst_24 {dimension_numbers = #tpu.dot_dimension_numbers<[1], [0], [0], [1], [0, 0, 1, 1], [], []>} : vector<16x16xbf16>, vector<16x8xbf16>, vector<16x8xf32> -> vector<16x8xf32>
    %c0_25 = arith.constant 0 : index
    %c8 = arith.constant 8 : index
    %74 = vector.load %arg15[%c0_25, %c8] : memref<16x32xf32, #tpu.memory_space<vmem>>, vector<16x8xf32>
    tpu.vector_store %arg15[%c0_25, %c8], %73 {strides = array<i32>} : memref<16x32xf32, #tpu.memory_space<vmem>>, vector<16x8xf32>,
    %75 = vector.extract_strided_slice %32 {offsets = [0, 16], sizes = [16, 8], strides = [1, 1]} : vector<16x32xf32> to vector<16x8xf32>
    %76 = arith.truncf %75 : vector<16x8xf32> to vector<16x8xbf16>
    %77 = vector.extract_strided_slice %34 {offsets = [0, 16], sizes = [16, 8], strides = [1, 1]} : vector<16x32xf32> to vector<16x8xf32>
    %78 = arith.truncf %77 : vector<16x8xf32> to vector<16x8xbf16>
    %79 = vector.extract_strided_slice %36 {offsets = [16, 0], sizes = [8, 16], strides = [1, 1]} : vector<32x16xbf16> to vector<8x16xbf16>
    %cst_26 = arith.constant dense<0.000000e+00> : vector<16x16xf32>
    %80 = tpu.matmul %76, %79, %cst_26 {dimension_numbers = #tpu.dot_dimension_numbers<[1], [0], [0], [1], [0, 0, 1, 1], [], []>} : vector<16x8xbf16>, vector<8x16xbf16>, vector<16x16xf32> -> vector<16x16xf32>
    %cst_27 = arith.constant dense<0xFF800000> : vector<16xf32>
    %81 = vector.multi_reduction <maximumf>, %80, %cst_27 [1] : vector<16x16xf32> to vector<16xf32>
    %82 = vector.shape_cast %81 : vector<16xf32> to vector<16x1xf32>
    %83 = vector.broadcast %82 : vector<16x1xf32> to vector<16x16xf32>
    %84 = arith.subf %80, %83 : vector<16x16xf32>
    %85 = math.exp %84 : vector<16x16xf32>
    %cst_28 = arith.constant dense<0.000000e+00> : vector<16xf32>
    %86 = vector.multi_reduction <add>, %85, %cst_28 [1] : vector<16x16xf32> to vector<16xf32>
    %87 = vector.shape_cast %86 : vector<16xf32> to vector<16x1xf32>
    %88 = tpu.reciprocal %87 {approx = true} : vector<16x1xf32> -> vector<16x1xf32>
    %89 = vector.broadcast %88 : vector<16x1xf32> to vector<16x16xf32>
    %90 = arith.mulf %85, %89 : vector<16x16xf32>
    %91 = arith.truncf %90 : vector<16x16xf32> to vector<16x16xbf16>
    %cst_29 = arith.constant dense<0.000000e+00> : vector<16x8xf32>
    %92 = tpu.matmul %91, %78, %cst_29 {dimension_numbers = #tpu.dot_dimension_numbers<[1], [0], [0], [1], [0, 0, 1, 1], [], []>} : vector<16x16xbf16>, vector<16x8xbf16>, vector<16x8xf32> -> vector<16x8xf32>
    %c0_30 = arith.constant 0 : index
    %c16 = arith.constant 16 : index
    %93 = vector.load %arg15[%c0_30, %c16] : memref<16x32xf32, #tpu.memory_space<vmem>>, vector<16x8xf32>
    tpu.vector_store %arg15[%c0_30, %c16], %92 {strides = array<i32>} : memref<16x32xf32, #tpu.memory_space<vmem>>, vector<16x8xf32>,
    %94 = vector.extract_strided_slice %32 {offsets = [0, 24], sizes = [16, 8], strides = [1, 1]} : vector<16x32xf32> to vector<16x8xf32>
    %95 = arith.truncf %94 : vector<16x8xf32> to vector<16x8xbf16>
    %96 = vector.extract_strided_slice %34 {offsets = [0, 24], sizes = [16, 8], strides = [1, 1]} : vector<16x32xf32> to vector<16x8xf32>
    %97 = arith.truncf %96 : vector<16x8xf32> to vector<16x8xbf16>
    %98 = vector.extract_strided_slice %36 {offsets = [24, 0], sizes = [8, 16], strides = [1, 1]} : vector<32x16xbf16> to vector<8x16xbf16>
    %cst_31 = arith.constant dense<0.000000e+00> : vector<16x16xf32>
    %99 = tpu.matmul %95, %98, %cst_31 {dimension_numbers = #tpu.dot_dimension_numbers<[1], [0], [0], [1], [0, 0, 1, 1], [], []>} : vector<16x8xbf16>, vector<8x16xbf16>, vector<16x16xf32> -> vector<16x16xf32>
    %cst_32 = arith.constant dense<0xFF800000> : vector<16xf32>
    %100 = vector.multi_reduction <maximumf>, %99, %cst_32 [1] : vector<16x16xf32> to vector<16xf32>
    %101 = vector.shape_cast %100 : vector<16xf32> to vector<16x1xf32>
    %102 = vector.broadcast %101 : vector<16x1xf32> to vector<16x16xf32>
    %103 = arith.subf %99, %102 : vector<16x16xf32>
    %104 = math.exp %103 : vector<16x16xf32>
    %cst_33 = arith.constant dense<0.000000e+00> : vector<16xf32>
    %105 = vector.multi_reduction <add>, %104, %cst_33 [1] : vector<16x16xf32> to vector<16xf32>
    %106 = vector.shape_cast %105 : vector<16xf32> to vector<16x1xf32>
    %107 = tpu.reciprocal %106 {approx = true} : vector<16x1xf32> -> vector<16x1xf32>
    %108 = vector.broadcast %107 : vector<16x1xf32> to vector<16x16xf32>
    %109 = arith.mulf %104, %108 : vector<16x16xf32>
    %110 = arith.truncf %109 : vector<16x16xf32> to vector<16x16xbf16>
    %cst_34 = arith.constant dense<0.000000e+00> : vector<16x8xf32>
    %111 = tpu.matmul %110, %97, %cst_34 {dimension_numbers = #tpu.dot_dimension_numbers<[1], [0], [0], [1], [0, 0, 1, 1], [], []>} : vector<16x16xbf16>, vector<16x8xbf16>, vector<16x8xf32> -> vector<16x8xf32>
    %c0_35 = arith.constant 0 : index
    %c24 = arith.constant 24 : index
    %112 = vector.load %arg15[%c0_35, %c24] : memref<16x32xf32, #tpu.memory_space<vmem>>, vector<16x8xf32>
    tpu.vector_store %arg15[%c0_35, %c24], %111 {strides = array<i32>} : memref<16x32xf32, #tpu.memory_space<vmem>>, vector<16x8xf32>,
    %c0_36 = arith.constant 0 : index
    %c0_37 = arith.constant 0 : index
    %113 = vector.load %arg15[%c0_36, %c0_37] : memref<16x32xf32, #tpu.memory_space<vmem>>, vector<16x32xf32>
    %114 = arith.truncf %113 : vector<16x32xf32> to vector<16x32xbf16>
    %c0_38 = arith.constant 0 : index
    %c0_39 = arith.constant 0 : index
    %115 = vector.load %arg6[%c0_38, %c0_39] : memref<32x32xbf16, #tpu.memory_space<vmem>>, vector<32x32xbf16>
    %cst_40 = arith.constant dense<0.000000e+00> : vector<16x32xf32>
    %116 = tpu.matmul %114, %115, %cst_40 {dimension_numbers = #tpu.dot_dimension_numbers<[1], [0], [0], [1], [0, 0, 1, 1], [], []>} : vector<16x32xbf16>, vector<32x32xbf16>, vector<16x32xf32> -> vector<16x32xf32>
    %c0_41 = arith.constant 0 : index
    %c0_42 = arith.constant 0 : index
    %117 = vector.load %arg7[%c0_41, %c0_42] : memref<1x32xf32, #tpu.memory_space<vmem>>, vector<1x32xf32>
    %118 = vector.broadcast %117 : vector<1x32xf32> to vector<16x32xf32>
    %119 = arith.addf %116, %118 : vector<16x32xf32>
    %120 = arith.addf %1, %119 : vector<16x32xf32>
    %cst_43 = arith.constant dense<0.000000e+00> : vector<16xf32>
    %121 = vector.multi_reduction <add>, %120, %cst_43 [1] : vector<16x32xf32> to vector<16xf32>
    %122 = vector.shape_cast %121 : vector<16xf32> to vector<16x1xf32>
    %cst_44 = arith.constant 3.200000e+01 : f32
    %123 = vector.broadcast %cst_44 : f32 to vector<16x1xf32>
    %124 = arith.divf %122, %123 : vector<16x1xf32>
    %125 = vector.broadcast %124 : vector<16x1xf32> to vector<16x32xf32>
    %126 = arith.subf %120, %125 : vector<16x32xf32>
    %127 = arith.mulf %126, %126 : vector<16x32xf32>
    %cst_45 = arith.constant dense<0.000000e+00> : vector<16xf32>
    %128 = vector.multi_reduction <add>, %127, %cst_45 [1] : vector<16x32xf32> to vector<16xf32>
    %129 = vector.shape_cast %128 : vector<16xf32> to vector<16x1xf32>
    %cst_46 = arith.constant 3.200000e+01 : f32
    %130 = vector.broadcast %cst_46 : f32 to vector<16x1xf32>
    %131 = arith.divf %129, %130 : vector<16x1xf32>
    %132 = vector.broadcast %124 : vector<16x1xf32> to vector<16x32xf32>
    %133 = arith.subf %120, %132 : vector<16x32xf32>
    %cst_47 = arith.constant 9.99999974E-6 : f32
    %134 = vector.broadcast %cst_47 : f32 to vector<16x1xf32>
    %135 = arith.addf %131, %134 : vector<16x1xf32>
    %136 = math.rsqrt %135 : vector<16x1xf32>
    %137 = vector.broadcast %136 : vector<16x1xf32> to vector<16x32xf32>
    %138 = arith.mulf %133, %137 : vector<16x32xf32>
    %c0_48 = arith.constant 0 : index
    %c0_49 = arith.constant 0 : index
    %139 = vector.load %arg8[%c0_48, %c0_49] : memref<1x32xf32, #tpu.memory_space<vmem>>, vector<1x32xf32>
    %140 = vector.broadcast %139 : vector<1x32xf32> to vector<16x32xf32>
    %141 = arith.mulf %138, %140 : vector<16x32xf32>
    %c0_50 = arith.constant 0 : index
    %c0_51 = arith.constant 0 : index
    %142 = vector.load %arg9[%c0_50, %c0_51] : memref<1x32xf32, #tpu.memory_space<vmem>>, vector<1x32xf32>
    %143 = vector.broadcast %142 : vector<1x32xf32> to vector<16x32xf32>
    %144 = arith.addf %141, %143 : vector<16x32xf32>
    %145 = arith.truncf %144 : vector<16x32xf32> to vector<16x32xbf16>
    %c0_52 = arith.constant 0 : index
    %c0_53 = arith.constant 0 : index
    %146 = vector.load %arg10[%c0_52, %c0_53] : memref<32x128xbf16, #tpu.memory_space<vmem>>, vector<32x128xbf16>
    %cst_54 = arith.constant dense<0.000000e+00> : vector<16x128xf32>
    %147 = tpu.matmul %145, %146, %cst_54 {dimension_numbers = #tpu.dot_dimension_numbers<[1], [0], [0], [1], [0, 0, 1, 1], [], []>} : vector<16x32xbf16>, vector<32x128xbf16>, vector<16x128xf32> -> vector<16x128xf32>
    %c0_55 = arith.constant 0 : index
    %c0_56 = arith.constant 0 : index
    %148 = vector.load %arg11[%c0_55, %c0_56] : memref<1x128xf32, #tpu.memory_space<vmem>>, vector<1x128xf32>
    %149 = vector.broadcast %148 : vector<1x128xf32> to vector<16x128xf32>
    %150 = arith.addf %147, %149 : vector<16x128xf32>
    %cst_57 = arith.constant 5.000000e-01 : f32
    %151 = vector.broadcast %cst_57 : f32 to vector<16x128xf32>
    %152 = arith.mulf %151, %150 : vector<16x128xf32>
    %cst_58 = arith.constant 0.707106769 : f32
    %153 = vector.broadcast %cst_58 : f32 to vector<16x128xf32>
    %154 = arith.mulf %150, %153 : vector<16x128xf32>
    %155 = math.erf %154 : vector<16x128xf32>
    %cst_59 = arith.constant 1.000000e+00 : f32
    %156 = vector.broadcast %cst_59 : f32 to vector<16x128xf32>
    %157 = arith.addf %156, %155 : vector<16x128xf32>
    %158 = arith.mulf %152, %157 : vector<16x128xf32>
    %159 = arith.truncf %158 : vector<16x128xf32> to vector<16x128xbf16>
    %c0_60 = arith.constant 0 : index
    %c0_61 = arith.constant 0 : index
    %160 = vector.load %arg12[%c0_60, %c0_61] : memref<128x32xbf16, #tpu.memory_space<vmem>>, vector<128x32xbf16>
    %cst_62 = arith.constant dense<0.000000e+00> : vector<16x32xf32>
    %161 = tpu.matmul %159, %160, %cst_62 {dimension_numbers = #tpu.dot_dimension_numbers<[1], [0], [0], [1], [0, 0, 1, 1], [], []>} : vector<16x128xbf16>, vector<128x32xbf16>, vector<16x32xf32> -> vector<16x32xf32>
    %c0_63 = arith.constant 0 : index
    %c0_64 = arith.constant 0 : index
    %162 = vector.load %arg13[%c0_63, %c0_64] : memref<1x32xf32, #tpu.memory_space<vmem>>, vector<1x32xf32>
    %163 = vector.broadcast %162 : vector<1x32xf32> to vector<16x32xf32>
    %164 = arith.addf %161, %163 : vector<16x32xf32>
    %165 = arith.addf %120, %164 : vector<16x32xf32>
    %c0_65 = arith.constant 0 : index
    %c0_66 = arith.constant 0 : index
    %c0_67 = arith.constant 0 : index
    %166 = vector.load %arg14[%c0_65, %c0_66, %c0_67] : memref<1x16x32xf32, #tpu.memory_space<vmem>>, vector<1x16x32xf32>
    %167 = vector.shape_cast %166 : vector<1x16x32xf32> to vector<16x32xf32>
    %168 = vector.shape_cast %165 : vector<16x32xf32> to vector<1x16x32xf32>
    tpu.vector_store %arg14[%c0_65, %c0_66, %c0_67], %168 {strides = array<i32>} : memref<1x16x32xf32, #tpu.memory_space<vmem>>, vector<1x16x32xf32>,
    return
  }
  func.func @transform_0(%arg0: i32) -> (i32, i32, i32) {
    %c0_i32 = arith.constant 0 : i32
    %c0_i32_0 = arith.constant 0 : i32
    %c0_i32_1 = arith.constant 0 : i32
    return %arg0, %c0_i32, %c0_i32_0 : i32, i32, i32
  }
  func.func @transform_1(%arg0: i32) -> (i32, i32) {
    %c0_i32 = arith.constant 0 : i32
    %c0_i32_0 = arith.constant 0 : i32
    %c0_i32_1 = arith.constant 0 : i32
    return %c0_i32, %c0_i32_0 : i32, i32
  }
  func.func @transform_2(%arg0: i32) -> (i32, i32) {
    %c0_i32 = arith.constant 0 : i32
    %c0_i32_0 = arith.constant 0 : i32
    %c0_i32_1 = arith.constant 0 : i32
    return %c0_i32, %c0_i32_0 : i32, i32
  }
  func.func @transform_3(%arg0: i32) -> (i32, i32) {
    %c0_i32 = arith.constant 0 : i32
    %c0_i32_0 = arith.constant 0 : i32
    %c0_i32_1 = arith.constant 0 : i32
    return %c0_i32, %c0_i32_0 : i32, i32
  }
  func.func @transform_4(%arg0: i32) -> (i32, i32) {
    %c0_i32 = arith.constant 0 : i32
    %c0_i32_0 = arith.constant 0 : i32
    %c0_i32_1 = arith.constant 0 : i32
    return %c0_i32, %c0_i32_0 : i32, i32
  }
  func.func @transform_5(%arg0: i32) -> (i32, i32) {
    %c0_i32 = arith.constant 0 : i32
    %c0_i32_0 = arith.constant 0 : i32
    %c0_i32_1 = arith.constant 0 : i32
    return %c0_i32, %c0_i32_0 : i32, i32
  }
  func.func @transform_6(%arg0: i32) -> (i32, i32) {
    %c0_i32 = arith.constant 0 : i32
    %c0_i32_0 = arith.constant 0 : i32
    %c0_i32_1 = arith.constant 0 : i32
    return %c0_i32, %c0_i32_0 : i32, i32
  }
  func.func @transform_7(%arg0: i32) -> (i32, i32) {
    %c0_i32 = arith.constant 0 : i32
    %c0_i32_0 = arith.constant 0 : i32
    %c0_i32_1 = arith.constant 0 : i32
    return %c0_i32, %c0_i32_0 : i32, i32
  }
  func.func @transform_8(%arg0: i32) -> (i32, i32) {
    %c0_i32 = arith.constant 0 : i32
    %c0_i32_0 = arith.constant 0 : i32
    %c0_i32_1 = arith.constant 0 : i32
    return %c0_i32, %c0_i32_0 : i32, i32
  }
  func.func @transform_9(%arg0: i32) -> (i32, i32) {
    %c0_i32 = arith.constant 0 : i32
    %c0_i32_0 = arith.constant 0 : i32
    %c0_i32_1 = arith.constant 0 : i32
    return %c0_i32, %c0_i32_0 : i32, i32
  }
  func.func @transform_10(%arg0: i32) -> (i32, i32) {
    %c0_i32 = arith.constant 0 : i32
    %c0_i32_0 = arith.constant 0 : i32
    %c0_i32_1 = arith.constant 0 : i32
    return %c0_i32, %c0_i32_0 : i32, i32
  }
  func.func @transform_11(%arg0: i32) -> (i32, i32) {
    %c0_i32 = arith.constant 0 : i32
    %c0_i32_0 = arith.constant 0 : i32
    %c0_i32_1 = arith.constant 0 : i32
    return %c0_i32, %c0_i32_0 : i32, i32
  }
  func.func @transform_12(%arg0: i32) -> (i32, i32) {
    %c0_i32 = arith.constant 0 : i32
    %c0_i32_0 = arith.constant 0 : i32
    %c0_i32_1 = arith.constant 0 : i32
    return %c0_i32, %c0_i32_0 : i32, i32
  }
  func.func @transform_13(%arg0: i32) -> (i32, i32, i32) {
    %c0_i32 = arith.constant 0 : i32
    %c0_i32_0 = arith.constant 0 : i32
    %c0_i32_1 = arith.constant 0 : i32
    return %arg0, %c0_i32, %c0_i32_0 : i32, i32, i32
  }
}

module attributes {stable_mosaic.version = 11 : i64} {
  func.func @_head_loss_kernel(%arg0: i32, %arg1: memref<1x16x32xf32, #tpu.memory_space<vmem>>, %arg2: memref<1x32xf32, #tpu.memory_space<vmem>>, %arg3: memref<1x32xf32, #tpu.memory_space<vmem>>, %arg4: memref<32x192xbf16, #tpu.memory_space<vmem>>, %arg5: memref<1x192xf32, #tpu.memory_space<vmem>>, %arg6: memref<1x16x192xf32, #tpu.memory_space<vmem>>, %arg7: memref<1x16x192xf32, #tpu.memory_space<vmem>>, %arg8: memref<1x1x128xf32, #tpu.memory_space<vmem>>) attributes {dimension_semantics = [#tpu.dimension_semantics<parallel>], iteration_bounds = array<i64: 2>, scalar_prefetch = 0 : i64, scratch_operands = 0 : i64, tpu.core_type = #tpu.core_type<tc>, window_params = [{transform_indices = @transform_0, window_bounds = array<i64: 1, 16, 32>}, {pipeline_mode = #tpu.pipeline_mode<synchronous>, transform_indices = @transform_1, window_bounds = array<i64: 1, 32>}, {pipeline_mode = #tpu.pipeline_mode<synchronous>, transform_indices = @transform_2, window_bounds = array<i64: 1, 32>}, {pipeline_mode = #tpu.pipeline_mode<synchronous>, transform_indices = @transform_3, window_bounds = array<i64: 32, 192>}, {pipeline_mode = #tpu.pipeline_mode<synchronous>, transform_indices = @transform_4, window_bounds = array<i64: 1, 192>}, {transform_indices = @transform_5, window_bounds = array<i64: 1, 16, 192>}, {transform_indices = @transform_6, window_bounds = array<i64: 1, 16, 192>}, {transform_indices = @transform_7, window_bounds = array<i64: 1, 1, 128>}]} {
    %c0 = arith.constant 0 : index
    %c0_0 = arith.constant 0 : index
    %c0_1 = arith.constant 0 : index
    %0 = vector.load %arg1[%c0, %c0_0, %c0_1] : memref<1x16x32xf32, #tpu.memory_space<vmem>>, vector<1x16x32xf32>
    %1 = vector.shape_cast %0 : vector<1x16x32xf32> to vector<16x32xf32>
    %cst = arith.constant dense<0.000000e+00> : vector<16xf32>
    %2 = vector.multi_reduction <add>, %1, %cst [1] : vector<16x32xf32> to vector<16xf32>
    %3 = vector.shape_cast %2 : vector<16xf32> to vector<16x1xf32>
    %cst_2 = arith.constant 3.200000e+01 : f32
    %4 = vector.broadcast %cst_2 : f32 to vector<16x1xf32>
    %5 = arith.divf %3, %4 : vector<16x1xf32>
    %6 = vector.broadcast %5 : vector<16x1xf32> to vector<16x32xf32>
    %7 = arith.subf %1, %6 : vector<16x32xf32>
    %8 = arith.mulf %7, %7 : vector<16x32xf32>
    %cst_3 = arith.constant dense<0.000000e+00> : vector<16xf32>
    %9 = vector.multi_reduction <add>, %8, %cst_3 [1] : vector<16x32xf32> to vector<16xf32>
    %10 = vector.shape_cast %9 : vector<16xf32> to vector<16x1xf32>
    %cst_4 = arith.constant 3.200000e+01 : f32
    %11 = vector.broadcast %cst_4 : f32 to vector<16x1xf32>
    %12 = arith.divf %10, %11 : vector<16x1xf32>
    %13 = vector.broadcast %5 : vector<16x1xf32> to vector<16x32xf32>
    %14 = arith.subf %1, %13 : vector<16x32xf32>
    %cst_5 = arith.constant 9.99999974E-6 : f32
    %15 = vector.broadcast %cst_5 : f32 to vector<16x1xf32>
    %16 = arith.addf %12, %15 : vector<16x1xf32>
    %17 = math.rsqrt %16 : vector<16x1xf32>
    %18 = vector.broadcast %17 : vector<16x1xf32> to vector<16x32xf32>
    %19 = arith.mulf %14, %18 : vector<16x32xf32>
    %c0_6 = arith.constant 0 : index
    %c0_7 = arith.constant 0 : index
    %20 = vector.load %arg2[%c0_6, %c0_7] : memref<1x32xf32, #tpu.memory_space<vmem>>, vector<1x32xf32>
    %21 = vector.broadcast %20 : vector<1x32xf32> to vector<16x32xf32>
    %22 = arith.mulf %19, %21 : vector<16x32xf32>
    %c0_8 = arith.constant 0 : index
    %c0_9 = arith.constant 0 : index
    %23 = vector.load %arg3[%c0_8, %c0_9] : memref<1x32xf32, #tpu.memory_space<vmem>>, vector<1x32xf32>
    %24 = vector.broadcast %23 : vector<1x32xf32> to vector<16x32xf32>
    %25 = arith.addf %22, %24 : vector<16x32xf32>
    %26 = arith.truncf %25 : vector<16x32xf32> to vector<16x32xbf16>
    %c0_10 = arith.constant 0 : index
    %c0_11 = arith.constant 0 : index
    %27 = vector.load %arg4[%c0_10, %c0_11] : memref<32x192xbf16, #tpu.memory_space<vmem>>, vector<32x192xbf16>
    %cst_12 = arith.constant dense<0.000000e+00> : vector<16x192xf32>
    %28 = tpu.matmul %26, %27, %cst_12 {dimension_numbers = #tpu.dot_dimension_numbers<[1], [0], [0], [1], [0, 0, 1, 1], [], []>} : vector<16x32xbf16>, vector<32x192xbf16>, vector<16x192xf32> -> vector<16x192xf32>
    %c0_13 = arith.constant 0 : index
    %c0_14 = arith.constant 0 : index
    %29 = vector.load %arg5[%c0_13, %c0_14] : memref<1x192xf32, #tpu.memory_space<vmem>>, vector<1x192xf32>
    %30 = vector.broadcast %29 : vector<1x192xf32> to vector<16x192xf32>
    %31 = arith.addf %28, %30 : vector<16x192xf32>
    %c0_15 = arith.constant 0 : index
    %c0_16 = arith.constant 0 : index
    %c0_17 = arith.constant 0 : index
    %32 = vector.load %arg7[%c0_15, %c0_16, %c0_17] : memref<1x16x192xf32, #tpu.memory_space<vmem>>, vector<1x16x192xf32>
    %33 = vector.shape_cast %32 : vector<1x16x192xf32> to vector<16x192xf32>
    %34 = vector.shape_cast %31 : vector<16x192xf32> to vector<1x16x192xf32>
    tpu.vector_store %arg7[%c0_15, %c0_16, %c0_17], %34 {strides = array<i32>} : memref<1x16x192xf32, #tpu.memory_space<vmem>>, vector<1x16x192xf32>,
    %c0_18 = arith.constant 0 : index
    %c0_19 = arith.constant 0 : index
    %c0_20 = arith.constant 0 : index
    %35 = vector.load %arg6[%c0_18, %c0_19, %c0_20] : memref<1x16x192xf32, #tpu.memory_space<vmem>>, vector<1x16x192xf32>
    %36 = vector.shape_cast %35 : vector<1x16x192xf32> to vector<16x192xf32>
    %37 = arith.subf %31, %36 : vector<16x192xf32>
    %38 = arith.mulf %37, %37 : vector<16x192xf32>
    %cst_21 = arith.constant dense<0.000000e+00> : vector<16xf32>
    %39 = vector.multi_reduction <add>, %38, %cst_21 [1] : vector<16x192xf32> to vector<16xf32>
    %40 = vector.shape_cast %39 : vector<16xf32> to vector<16x1xf32>
    %cst_22 = arith.constant 1.920000e+02 : f32
    %41 = vector.broadcast %cst_22 : f32 to vector<16x1xf32>
    %42 = arith.divf %40, %41 : vector<16x1xf32>
    %cst_23 = arith.constant dense<0.000000e+00> : vector<1xf32>
    %43 = vector.multi_reduction <add>, %42, %cst_23 [0] : vector<16x1xf32> to vector<1xf32>
    %44 = vector.shape_cast %43 : vector<1xf32> to vector<1x1xf32>
    %45 = vector.shape_cast %44 : vector<1x1xf32> to vector<1x1xf32>
    %46 = vector.broadcast %45 : vector<1x1xf32> to vector<1x128xf32>
    %c0_24 = arith.constant 0 : index
    %c0_25 = arith.constant 0 : index
    %c0_26 = arith.constant 0 : index
    %47 = vector.load %arg8[%c0_24, %c0_25, %c0_26] : memref<1x1x128xf32, #tpu.memory_space<vmem>>, vector<1x1x128xf32>
    %48 = vector.shape_cast %47 : vector<1x1x128xf32> to vector<1x128xf32>
    %49 = vector.shape_cast %46 : vector<1x128xf32> to vector<1x1x128xf32>
    tpu.vector_store %arg8[%c0_24, %c0_25, %c0_26], %49 {strides = array<i32>} : memref<1x1x128xf32, #tpu.memory_space<vmem>>, vector<1x1x128xf32>,
    return
  }
  func.func @transform_0(%arg0: i32) -> (i32, i32, i32) {
    %c0_i32 = arith.constant 0 : i32
    %c0_i32_0 = arith.constant 0 : i32
    %c0_i32_1 = arith.constant 0 : i32
    return %arg0, %c0_i32, %c0_i32_0 : i32, i32, i32
  }
  func.func @transform_1(%arg0: i32) -> (i32, i32) {
    %c0_i32 = arith.constant 0 : i32
    %c0_i32_0 = arith.constant 0 : i32
    %c0_i32_1 = arith.constant 0 : i32
    return %c0_i32, %c0_i32_0 : i32, i32
  }
  func.func @transform_2(%arg0: i32) -> (i32, i32) {
    %c0_i32 = arith.constant 0 : i32
    %c0_i32_0 = arith.constant 0 : i32
    %c0_i32_1 = arith.constant 0 : i32
    return %c0_i32, %c0_i32_0 : i32, i32
  }
  func.func @transform_3(%arg0: i32) -> (i32, i32) {
    %c0_i32 = arith.constant 0 : i32
    %c0_i32_0 = arith.constant 0 : i32
    %c0_i32_1 = arith.constant 0 : i32
    return %c0_i32, %c0_i32_0 : i32, i32
  }
  func.func @transform_4(%arg0: i32) -> (i32, i32) {
    %c0_i32 = arith.constant 0 : i32
    %c0_i32_0 = arith.constant 0 : i32
    %c0_i32_1 = arith.constant 0 : i32
    return %c0_i32, %c0_i32_0 : i32, i32
  }
  func.func @transform_5(%arg0: i32) -> (i32, i32, i32) {
    %c0_i32 = arith.constant 0 : i32
    %c0_i32_0 = arith.constant 0 : i32
    %c0_i32_1 = arith.constant 0 : i32
    return %arg0, %c0_i32, %c0_i32_0 : i32, i32, i32
  }
  func.func @transform_6(%arg0: i32) -> (i32, i32, i32) {
    %c0_i32 = arith.constant 0 : i32
    %c0_i32_0 = arith.constant 0 : i32
    %c0_i32_1 = arith.constant 0 : i32
    return %arg0, %c0_i32, %c0_i32_0 : i32, i32, i32
  }
  func.func @transform_7(%arg0: i32) -> (i32, i32, i32) {
    %c0_i32 = arith.constant 0 : i32
    %c0_i32_0 = arith.constant 0 : i32
    %c0_i32_1 = arith.constant 0 : i32
    return %arg0, %c0_i32, %c0_i32_0 : i32, i32, i32
  }
}

</mosaic_0001>

<llo_original>
// kernel: forward.4
$region0: #{forward.4}
  #allocation0 [shape = 'u32[]', space=smem, size = 0x4, offset = 0x4, fixed_abs, tag = 'smem constant byte address 0x4 - core index']
  #allocation1 [shape = 'u32[144,128]{1,0:T(1,128)}', space=vmem, size = 0x12000, scoped, tag = 'internal scratch']
  %s0 = inlined_call_operand.hbm [shape: f32[2,16,32], index: 0, kind: input, shape index: {}]
  %s1 = inlined_call_operand.hbm [shape: bf16[32,32], index: 1, kind: input, shape index: {}]
  %s2 = inlined_call_operand.hbm [shape: f32[1,32], index: 2, kind: input, shape index: {}]
  %s3 = inlined_call_operand.hbm [shape: f32[1,16,32], index: 3, kind: input, shape index: {}]
  %s4 = inlined_call_operand.hbm [shape: f32[2,16,32], index: 4, kind: output, shape index: {}]
  %s5 = sld [smem:[#allocation0]]
  $region65: #{forward.4} parent=0
    _
  %s7 = ssub.s32 1, %s5
  %s8 = scalar_select 0, %s7, %s5
  $region1: #{forward.4} parent=0
    #allocation2 [shape = 'u8[16384]{0}', space=vmem, size = 0x4000, scoped, tag = 'input window, operand 0']
    #allocation3 [shape = 's32[2]{0}', space=sflag, size = 0x8, scoped, tag = 'scoped memory for forward.4']
    #allocation4 [shape = 's32[2]{0}', space=sflag, size = 0x8, scoped, tag = 'scoped memory for forward.4']
    #allocation5 [shape = 'u8[8192]{0}', space=vmem, size = 0x2000, scoped, tag = 'input window, operand 1, single buffered']
    #allocation6 [shape = 's32[1]{0}', space=sflag, size = 0x4, scoped, tag = 'scoped memory for forward.4']
    #allocation7 [shape = 'u8[512]{0}', space=vmem, size = 0x400, scoped, tag = 'input window, operand 2, single buffered']
    #allocation8 [shape = 'u8[8192]{0}', space=vmem, size = 0x2000, scoped, tag = 'input window, operand 3, single buffered']
    #allocation9 [shape = 's32[1]{0}', space=sflag, size = 0x4, scoped, tag = 'scoped memory for forward.4']
    #allocation10 [shape = 'u8[16384]{0}', space=vmem, size = 0x4000, scoped, tag = 'output window, operand 0']
    %9 = vsyncpa [#allocation3], 0
    %s10 = scalar_lea.sflag [#allocation3], 1
    %11 = vsyncpa %s10, 0
    %12 = vsyncpa [#allocation6], 0
    %13 = vsyncpa [#allocation9], 0
    %14 = vsyncpa [#allocation4], 0
    %s15 = scalar_lea.sflag [#allocation4], 1
    %16 = vsyncpa %s15, 0
    loop: start=0, step=1, limit=4
    $region2: #{forward.4} parent=1 // loop_pre_header
      _
    $region3: #{forward.4} parent=1 // loop_header
      %s18 = sphi 0, %s22
      %p19 = scmp.ge.s32.totalorder %s18, 4
      %s28 = sphi 0, %s30
      %s31 = sphi 0, %s28
      %s32 = sphi 0, %s31
      %s48 = sphi 0, %s32
      %s52 = sphi 0, %s52
      %s54 = sphi 0, %s52
      %s55 = sphi 0, %s54
      %s69 = sphi 0, %s55
      %s73 = sphi 0, %s73
      %s75 = sphi 0, %s73
      %s76 = sphi 0, %s75
      %s90 = sphi 0, %s76
      %s94 = sphi 0, %s94
      %s96 = sphi 0, %s94
      %s97 = sphi 0, %s96
      %s111 = sphi 0, %s97
      %s117 = sphi 0, %s119
      %s120 = sphi 0, %s117
      %s121 = sphi 0, %s120
      %s137 = sphi 0, %s121
    $region4: #{forward.4} parent=1 // loop_header_branch
      %21 = sbr.rel (%p19) target = $region8
    $region5: #{forward.4} parent=1 // loop_body
      %s23 = ssub.s32 %s18, 1
      %s24 = ssub.s32 %s18, 2
      %s25 = sadd.s32 %s18, 1
      %s26 = ssub.s32 %s18, %s25
      %p27 = scmp.eq.s32.totalorder %s26, 0
      %s29 = sadd.s32 %s28, 1
      %s30 = scalar_select %p27, %s28, %s29
      %p33 = pneg %p27
      %p34 = scmp.eq.s32.totalorder %s18, 1
      %p35 = por %p33, %p34
      %p36 = scmp.ne.s32.totalorder %s28, %s31
      %p37 = scmp.eq.s32.totalorder %s18, 0
      %p38 = por %p36, %p37
      %p39 = scmp.ne.s32.totalorder %s28, %s31
      %p40 = scmp.eq.s32.totalorder %s23, 1
      %p41 = por %p39, %p40
      %p42 = scmp.ne.s32.totalorder %s31, %s32
      %p43 = scmp.eq.s32.totalorder %s23, 0
      %p44 = por %p42, %p43
      %p45 = scmp.ne.s32.totalorder %s31, %s32
      %p46 = scmp.eq.s32.totalorder %s24, 1
      %p47 = por %p45, %p46
      %p49 = scmp.ne.s32.totalorder %s32, %s48
      %p50 = scmp.eq.s32.totalorder %s24, 0
      %p51 = por %p49, %p50
      %s53 = sadd.s32 %s52, 1
      %p56 = scmp.eq.s32.totalorder %s18, 1
      %p57 = scmp.ne.s32.totalorder %s52, %s54
      %p58 = scmp.eq.s32.totalorder %s18, 0
      %p59 = por %p57, %p58
      %p60 = scmp.ne.s32.totalorder %s52, %s54
      %p61 = scmp.eq.s32.totalorder %s23, 1
      %p62 = por %p60, %p61
      %p63 = scmp.ne.s32.totalorder %s54, %s55
      %p64 = scmp.eq.s32.totalorder %s23, 0
      %p65 = por %p63, %p64
      %p66 = scmp.ne.s32.totalorder %s54, %s55
      %p67 = scmp.eq.s32.totalorder %s24, 1
      %p68 = por %p66, %p67
      %p70 = scmp.ne.s32.totalorder %s55, %s69
      %p71 = scmp.eq.s32.totalorder %s24, 0
      %p72 = por %p70, %p71
      %s74 = sadd.s32 %s73, 1
      %p77 = scmp.eq.s32.totalorder %s18, 1
      %p78 = scmp.ne.s32.totalorder %s73, %s75
      %p79 = scmp.eq.s32.totalorder %s18, 0
      %p80 = por %p78, %p79
      %p81 = scmp.ne.s32.totalorder %s73, %s75
      %p82 = scmp.eq.s32.totalorder %s23, 1
      %p83 = por %p81, %p82
      %p84 = scmp.ne.s32.totalorder %s75, %s76
      %p85 = scmp.eq.s32.totalorder %s23, 0
      %p86 = por %p84, %p85
      %p87 = scmp.ne.s32.totalorder %s75, %s76
      %p88 = scmp.eq.s32.totalorder %s24, 1
      %p89 = por %p87, %p88
      %p91 = scmp.ne.s32.totalorder %s76, %s90
      %p92 = scmp.eq.s32.totalorder %s24, 0
      %p93 = por %p91, %p92
      %s95 = sadd.s32 %s94, 1
      %p98 = scmp.eq.s32.totalorder %s18, 1
      %p99 = scmp.ne.s32.totalorder %s94, %s96
      %p100 = scmp.eq.s32.totalorder %s18, 0
      %p101 = por %p99, %p100
      %p102 = scmp.ne.s32.totalorder %s94, %s96
      %p103 = scmp.eq.s32.totalorder %s23, 1
      %p104 = por %p102, %p103
      %p105 = scmp.ne.s32.totalorder %s96, %s97
      %p106 = scmp.eq.s32.totalorder %s23, 0
      %p107 = por %p105, %p106
      %p108 = scmp.ne.s32.totalorder %s96, %s97
      %p109 = scmp.eq.s32.totalorder %s24, 1
      %p110 = por %p108, %p109
      %p112 = scmp.ne.s32.totalorder %s97, %s111
      %p113 = scmp.eq.s32.totalorder %s24, 0
      %p114 = por %p112, %p113
      %s115 = ssub.s32 %s18, %s25
      %p116 = scmp.eq.s32.totalorder %s115, 0
      %s118 = sadd.s32 %s117, 1
      %s119 = scalar_select %p116, %s117, %s118
      %p122 = pneg %p116
      %p123 = scmp.eq.s32.totalorder %s18, 1
      %p124 = por %p122, %p123
      %p125 = scmp.ne.s32.totalorder %s117, %s120
      %p126 = scmp.eq.s32.totalorder %s18, 0
      %p127 = por %p125, %p126
      %p128 = scmp.ne.s32.totalorder %s117, %s120
      %p129 = scmp.eq.s32.totalorder %s23, 1
      %p130 = por %p128, %p129
      %p131 = scmp.ne.s32.totalorder %s120, %s121
      %p132 = scmp.eq.s32.totalorder %s23, 0
      %p133 = por %p131, %p132
      %p134 = scmp.ne.s32.totalorder %s120, %s121
      %p135 = scmp.eq.s32.totalorder %s24, 1
      %p136 = por %p134, %p135
      %p138 = scmp.ne.s32.totalorder %s121, %s137
      %p139 = scmp.eq.s32.totalorder %s24, 0
      %p140 = por %p138, %p139
      %p141 = scmp.le.s32.totalorder 1, %s18
      %p142 = scmp.lt.s32.totalorder %s18, 3
      %p143 = pnand %p141, %p142
      %p144 = pneg %p143
      // Predicated region
      $region9: #{forward.4} parent=5 // pred_check
        _
      $region10: #{forward.4} parent=5 // pred_check_branch
        %146 = sbr.rel (%p143) target = $region12
      $region11: #{forward.4} parent=5 // pred_region
        %s147 = ssub.s32 %s18, 1
        // Predicated region
        $region13: #{forward.4} parent=11 // pred_check
          %p148 = pneg %p65
        $region14: #{forward.4} parent=11 // pred_check_branch
          %150 = sbr.rel (%p148) target = $region16
        $region15: #{forward.4} parent=11 // pred_region
          %s152 = ssub.s32 256, 256
          %153 = vsyncadd [#allocation6], %s152
          %s154 = sshll.u32 [#allocation5], 4
          %s155 = int_to_ptr.vmem [resolvable:$true] %s154
          %160 = dma.hbm_to_vmem [thread:$0]  %s1, 256, %s155, [#allocation6], 64, 64, 4
        $region16: #{forward.4} parent=11 // pred_fallthru
          _
        // Predicated region
        $region17: #{forward.4} parent=11 // pred_check
          %p161 = pneg %p86
        $region18: #{forward.4} parent=11 // pred_check_branch
          %163 = sbr.rel (%p161) target = $region20
        $region19: #{forward.4} parent=11 // pred_region
          %s165 = ssub.s32 16, 16
          %166 = vsyncadd [#allocation6], %s165
          %s168 = sshll.u32 [#allocation7], 4
          %s169 = int_to_ptr.vmem [resolvable:$true] %s168
          %171 = dma.hbm_to_vmem [thread:$0]  %s2, 16, %s169, [#allocation6]
        $region20: #{forward.4} parent=11 // pred_fallthru
          _
        // Predicated region
        $region21: #{forward.4} parent=11 // pred_check
          %p172 = pneg %p107
        $region22: #{forward.4} parent=11 // pred_check_branch
          %174 = sbr.rel (%p172) target = $region24
        $region23: #{forward.4} parent=11 // pred_region
          %s176 = ssub.s32 256, 256
          %177 = vsyncadd [#allocation9], %s176
          %s178 = sshll.u32 [#allocation8], 4
          %s179 = int_to_ptr.vmem [resolvable:$true] %s178
          %184 = dma.hbm_to_vmem [thread:$0]  %s3, 256, %s179, [#allocation9], 128, 128, 8
        $region24: #{forward.4} parent=11 // pred_fallthru
          _
      $region12: #{forward.4} parent=5 // pred_fallthru
        _
      %p185 = scmp.lt.s32.totalorder %s18, 2
      // Predicated region
      $region25: #{forward.4} parent=5 // pred_check
        %p186 = pneg %p185
      $region26: #{forward.4} parent=5 // pred_check_branch
        %188 = sbr.rel (%p186) target = $region28
      $region27: #{forward.4} parent=5 // pred_region
        // Predicated region
        $region29: #{forward.4} parent=27 // pred_check
          %p189 = pneg %p38
        $region30: #{forward.4} parent=27 // pred_check_branch
          %191 = sbr.rel (%p189) target = $region32
        $region31: #{forward.4} parent=27 // pred_region
          %s192 = sand.u32 %s28, 1
          %s193 = scalar_lea.sflag [#allocation3], %s192
          %s194 = sand.u32 %s28, 1
          %s195 = smul.addr %s194, 16
          %s196 = scalar_lea.vmem [#allocation2], %s195
          %s198 = ssub.s32 256, 256
          %199 = vsyncadd %s193, %s198
          %s200 = smul.addr %s18, 2
          %s201 = smul.addr %s200, 128
          %s202 = scalar_lea.hbm %s0, %s201
          %s203 = sshll.u32 %s196, 4
          %s204 = int_to_ptr.vmem [resolvable:$true] %s203
          %209 = dma.hbm_to_vmem [thread:$0]  %s202, 256, %s204, %s193, 128, 128, 8
        $region32: #{forward.4} parent=27 // pred_fallthru
          _
      $region28: #{forward.4} parent=5 // pred_fallthru
        _
      %p210 = scmp.le.s32.totalorder 1, %s18
      %p211 = scmp.lt.s32.totalorder %s18, 3
      %p212 = pnand %p210, %p211
      %p213 = pneg %p212
      // Predicated region
      $region33: #{forward.4} parent=5 // pred_check
        _
      $region34: #{forward.4} parent=5 // pred_check_branch
        %215 = sbr.rel (%p212) target = $region36
      $region35: #{forward.4} parent=5 // pred_region
        %s216 = ssub.s32 %s18, 1
        %s217 = sand.u32 %s31, 1
        %s218 = scalar_lea.sflag [#allocation3], %s217
        %s219 = sand.u32 %s31, 1
        %s220 = smul.addr %s219, 16
        %s221 = scalar_lea.vmem [#allocation2], %s220
        // Predicated region
        $region37: #{forward.4} parent=35 // pred_check
          %p222 = pneg %p44
        $region38: #{forward.4} parent=35 // pred_check_branch
          %224 = sbr.rel (%p222) target = $region40
        $region39: #{forward.4} parent=35 // pred_region
          %225 = dma.done %s218, 256
        $region40: #{forward.4} parent=35 // pred_fallthru
          _
        // Predicated region
        $region41: #{forward.4} parent=35 // pred_check
          %p226 = pneg %p65
        $region42: #{forward.4} parent=35 // pred_check_branch
          %228 = sbr.rel (%p226) target = $region44
        $region43: #{forward.4} parent=35 // pred_region
          %229 = dma.done [#allocation6], 256
        $region44: #{forward.4} parent=35 // pred_fallthru
          _
        // Predicated region
        $region45: #{forward.4} parent=35 // pred_check
          %p230 = pneg %p86
        $region46: #{forward.4} parent=35 // pred_check_branch
          %232 = sbr.rel (%p230) target = $region48
        $region47: #{forward.4} parent=35 // pred_region
          %233 = dma.done [#allocation6], 16
        $region48: #{forward.4} parent=35 // pred_fallthru
          _
        // Predicated region
        $region49: #{forward.4} parent=35 // pred_check
          %p234 = pneg %p107
        $region50: #{forward.4} parent=35 // pred_check_branch
          %236 = sbr.rel (%p234) target = $region52
        $region51: #{forward.4} parent=35 // pred_region
          %237 = dma.done [#allocation9], 256
        $region52: #{forward.4} parent=35 // pred_fallthru
          _
        %s238 = sand.u32 %s31, 1
        %s239 = scalar_lea.sflag [#allocation3], %s238
        %s240 = sand.u32 %s31, 1
        %s241 = smul.addr %s240, 16
        %s242 = scalar_lea.vmem [#allocation2], %s241
        %p243 = pneg %p44
        %p244 = pneg %p41
        %p245 = pneg %p65
        %p246 = pneg %p62
        %p247 = pneg %p86
        %p248 = pneg %p83
        %p249 = pneg %p107
        %p250 = pneg %p104
        %p251 = pneg %p133
        %p252 = pneg %p130
        %s253 = sand.u32 %s120, 1
        %s254 = scalar_lea.sflag [#allocation4], %s253
        %s255 = sand.u32 %s120, 1
        %s256 = smul.addr %s255, 16
        %s257 = scalar_lea.vmem [#allocation10], %s256
        %v259 = vld [vmem:[%s221] sm:$0xff]
        %v260 = vld [vmem:[%s221 + $0x8] sm:$0xff]
        %v261 = vpack.c.bf16 %v260, %v259
        %v262 = vld [vmem:[#allocation5] sm:$0xf]
        %v263 = vld [vmem:[#allocation5 + $0x4] sm:$0xf]
        %v264 = vld [vmem:[#allocation5 + $0x8] sm:$0xf]
        %v265 = vld [vmem:[#allocation5 + $0xc] sm:$0xf]
        %v266 = vld [vmem:[#allocation7] sm:$0x1]
        %v268 = vlaneseq
        %v269 = vshrl.u32 %v268, 7
        %v270 = vsub.s32 0, %v269
        %v271 = vrot.slane %v266, %v270
        %v277 = vunpack.c.l.b16 %v262
        %v278 = vunpack.c.l.b16 %v263
        %v279 = vunpack.c.l.b16 %v264
        %v280 = vunpack.c.l.b16 %v265
        %v281 = vpack.c.b16 %v278, %v277
        %v282 = vpack.c.b16 %v280, %v279
        %vm285 = vcmask 261120
        %v287 = vsel %vm285, %v261, 0
        %289 = vmatprep.subr.bf16.mxu0 0
        %290 = vmatpush1.bf16.msra.mxu0 %v281
        %291 = vmatprep.subr.bf16.mxu0 0
        %292 = vmatpush1.bf16.msra.mxu0 %v282
        %293 = vmatprep.subr.bf16.mxu0 0
        %294 = vmatpush1.bf16.msra.mxu0 0
        %295 = vmatprep.subr.bf16.mxu0 0
        %296 = vmatpush1.bf16.msra.mxu0 0
        %297 = vmatprep.subr.bf16.mxu0 0
        %298 = vmatpush1.bf16.msra.mxu0 0
        %299 = vmatprep.subr.bf16.mxu0 0
        %300 = vmatpush1.bf16.msra.mxu0 0
        %301 = vmatprep.subr.bf16.mxu0 0
        %302 = vmatpush1.bf16.msra.mxu0 0
        %303 = vmatprep.subr.bf16.mxu0 0
        %304 = vmatpush1.bf16.msra.mxu0 0
        %305 = vmatprep.subr.bf16.mxu0 0
        %306 = vmatpush1.bf16.msra.mxu0 0
        %307 = vmatprep.subr.bf16.mxu0 0
        %308 = vmatpush1.bf16.msra.mxu0 0
        %309 = vmatprep.subr.bf16.mxu0 0
        %310 = vmatpush1.bf16.msra.mxu0 0
        %311 = vmatprep.subr.bf16.mxu0 0
        %312 = vmatpush1.bf16.msra.mxu0 0
        %313 = vmatprep.subr.bf16.mxu0 0
        %314 = vmatpush1.bf16.msra.mxu0 0
        %315 = vmatprep.subr.bf16.mxu0 0
        %316 = vmatpush1.bf16.msra.mxu0 0
        %317 = vmatprep.subr.bf16.mxu0 0
        %318 = vmatpush1.bf16.msra.mxu0 0
        %319 = vmatprep.subr.bf16.mxu0 0
        %320 = vmatpush1.bf16.msra.mxu0 0
        %321 = vmatprep.mubr.bf16.mxu0 0
        %322 = vmatmul.mubr.bf16.gmra.mrb[0].mxu0 %v287
        %v323 = vpop.f32.mrb[0].mxu0
        %v324 = vadd.f32 %v271, %v323
        %v325 = vpop.f32.mrb[0].mxu0
        %v326 = vpop.f32.mrb[0].mxu0
        %v327 = vadd.f32 %v271, %v326
        %v328 = vpop.f32.mrb[0].mxu0
        %329 = vdwg.mxu0
        %v330 = vld [vmem:[#allocation8] sm:$0xff]
        %v331 = vld [vmem:[#allocation8 + $0x8] sm:$0xff]
        %v332 = vadd.f32 %v324, %v330
        %v333 = vadd.f32 %v327, %v331
        %334 = vst.msk [vmem:[%s257] sm:$0xff] %vm285, %v332
        %335 = vst.msk [vmem:[%s257 + $0x8] sm:$0xff] %vm285, %v333
        %s336 = sand.u32 %s120, 1
        %s337 = scalar_lea.sflag [#allocation4], %s336
        %s338 = sand.u32 %s120, 1
        %s339 = smul.addr %s338, 16
        %s340 = scalar_lea.vmem [#allocation10], %s339
        // Predicated region
        $region53: #{forward.4} parent=35 // pred_check
          %p341 = pneg %p130
        $region54: #{forward.4} parent=35 // pred_check_branch
          %343 = sbr.rel (%p341) target = $region56
        $region55: #{forward.4} parent=35 // pred_region
          %s345 = ssub.s32 256, 256
          %346 = vsyncadd %s337, %s345
          %s347 = smul.addr %s23, 2
          %s348 = smul.addr %s347, 128
          %s349 = scalar_lea.hbm %s4, %s348
          %s350 = sshll.u32 %s340, 4
          %s351 = int_to_ptr.vmem [resolvable:$true] %s350
          %356 = dma.vmem_to_hbm [thread:$0]  %s351, 256, %s349, %s337, 128, 128, 8
        $region56: #{forward.4} parent=35 // pred_fallthru
          _
      $region36: #{forward.4} parent=5 // pred_fallthru
        _
      %p357 = scmp.le.s32.totalorder 2, %s18
      // Predicated region
      $region57: #{forward.4} parent=5 // pred_check
        %p358 = pneg %p357
      $region58: #{forward.4} parent=5 // pred_check_branch
        %360 = sbr.rel (%p358) target = $region60
      $region59: #{forward.4} parent=5 // pred_region
        %s361 = ssub.s32 %s18, 2
        // Predicated region
        $region61: #{forward.4} parent=59 // pred_check
          %p362 = pneg %p136
        $region62: #{forward.4} parent=59 // pred_check_branch
          %364 = sbr.rel (%p362) target = $region64
        $region63: #{forward.4} parent=59 // pred_region
          %s365 = sand.u32 %s121, 1
          %s366 = scalar_lea.sflag [#allocation4], %s365
          %s367 = sand.u32 %s121, 1
          %s368 = smul.addr %s367, 16
          %s369 = scalar_lea.vmem [#allocation10], %s368
          %370 = dma.done %s366, 256
        $region64: #{forward.4} parent=59 // pred_fallthru
          _
      $region60: #{forward.4} parent=5 // pred_fallthru
        _
    $region6: #{forward.4} parent=1 // loop_footer
      %s22 = sadd.s32 1, %s18
    $region7: #{forward.4} parent=1 // loop_footer_branch
      %17 = sbr.rel target = $region3
    $region8: #{forward.4} parent=1 // loop_exit
      _
    %371 = vsyncpa [#allocation3], 1
    %s372 = scalar_lea.sflag [#allocation3], 1
    %373 = vsyncpa %s372, 1
    %374 = vsyncpa [#allocation6], 1
    %375 = vsyncpa [#allocation9], 1
    %376 = vsyncpa [#allocation4], 1
    %s377 = scalar_lea.sflag [#allocation4], 1
    %378 = vsyncpa %s377, 1

// kernel: forward.5
$region0: #{forward.5}
  #allocation0 [shape = 'u32[]', space=smem, size = 0x4, offset = 0x4, fixed_abs, tag = 'smem constant byte address 0x4 - core index']
  #allocation1 [shape = 'u32[144,128]{1,0:T(1,128)}', space=vmem, size = 0x12000, scoped, tag = 'internal scratch']
  #allocation2 [shape = 'f32[16,32]{1,0:T(8,128)}', space=vmem, size = 0x2000, scoped, tag = 'scratch operand']
  %s0 = inlined_call_operand.hbm [shape: f32[2,16,32], index: 0, kind: input, shape index: {}]
  %s1 = inlined_call_operand.hbm [shape: f32[1,32], index: 1, kind: input, shape index: {}]
  %s2 = inlined_call_operand.hbm [shape: f32[1,32], index: 2, kind: input, shape index: {}]
  %s3 = inlined_call_operand.hbm [shape: bf16[32,96], index: 3, kind: input, shape index: {}]
  %s4 = inlined_call_operand.hbm [shape: f32[1,96], index: 4, kind: input, shape index: {}]
  %s5 = inlined_call_operand.hbm [shape: bf16[32,32], index: 5, kind: input, shape index: {}]
  %s6 = inlined_call_operand.hbm [shape: f32[1,32], index: 6, kind: input, shape index: {}]
  %s7 = inlined_call_operand.hbm [shape: f32[1,32], index: 7, kind: input, shape index: {}]
  %s8 = inlined_call_operand.hbm [shape: f32[1,32], index: 8, kind: input, shape index: {}]
  %s9 = inlined_call_operand.hbm [shape: bf16[32,128], index: 9, kind: input, shape index: {}]
  %s10 = inlined_call_operand.hbm [shape: f32[1,128], index: 10, kind: input, shape index: {}]
  %s11 = inlined_call_operand.hbm [shape: bf16[128,32], index: 11, kind: input, shape index: {}]
  %s12 = inlined_call_operand.hbm [shape: f32[1,32], index: 12, kind: input, shape index: {}]
  %s13 = inlined_call_operand.hbm [shape: f32[2,16,32], index: 13, kind: output, shape index: {}]
  %s14 = sld [smem:[#allocation0]]
  $region137: #{forward.5} parent=0
    _
  %s16 = ssub.s32 1, %s14
  %s17 = scalar_select 0, %s16, %s14
  $region1: #{forward.5} parent=0
    #allocation3 [shape = 'u8[16384]{0}', space=vmem, size = 0x4000, scoped, tag = 'input window, operand 0']
    #allocation4 [shape = 's32[2]{0}', space=sflag, size = 0x8, scoped, tag = 'scoped memory for forward.5']
    #allocation5 [shape = 's32[2]{0}', space=sflag, size = 0x8, scoped, tag = 'scoped memory for forward.5']
    #allocation6 [shape = 'u8[512]{0}', space=vmem, size = 0x400, scoped, tag = 'input window, operand 1, single buffered']
    #allocation7 [shape = 's32[1]{0}', space=sflag, size = 0x4, scoped, tag = 'scoped memory for forward.5']
    #allocation8 [shape = 'u8[512]{0}', space=vmem, size = 0x400, scoped, tag = 'input window, operand 2, single buffered']
    #allocation9 [shape = 'u8[8192]{0}', space=vmem, size = 0x2000, scoped, tag = 'input window, operand 3, single buffered']
    #allocation10 [shape = 's32[1]{0}', space=sflag, size = 0x4, scoped, tag = 'scoped memory for forward.5']
    #allocation11 [shape = 'u8[512]{0}', space=vmem, size = 0x400, scoped, tag = 'input window, operand 4, single buffered']
    #allocation12 [shape = 'u8[8192]{0}', space=vmem, size = 0x2000, scoped, tag = 'input window, operand 5, single buffered']
    #allocation13 [shape = 's32[1]{0}', space=sflag, size = 0x4, scoped, tag = 'scoped memory for forward.5']
    #allocation14 [shape = 'u8[512]{0}', space=vmem, size = 0x400, scoped, tag = 'input window, operand 6, single buffered']
    #allocation15 [shape = 'u8[512]{0}', space=vmem, size = 0x400, scoped, tag = 'input window, operand 7, single buffered']
    #allocation16 [shape = 's32[1]{0}', space=sflag, size = 0x4, scoped, tag = 'scoped memory for forward.5']
    #allocation17 [shape = 'u8[512]{0}', space=vmem, size = 0x400, scoped, tag = 'input window, operand 8, single buffered']
    #allocation18 [shape = 'u8[8192]{0}', space=vmem, size = 0x2000, scoped, tag = 'input window, operand 9, single buffered']
    #allocation19 [shape = 's32[1]{0}', space=sflag, size = 0x4, scoped, tag = 'scoped memory for forward.5']
    #allocation20 [shape = 'u8[512]{0}', space=vmem, size = 0x400, scoped, tag = 'input window, operand 10, single buffered']
    #allocation21 [shape = 'u8[32768]{0}', space=vmem, size = 0x8000, scoped, tag = 'input window, operand 11, single buffered']
    #allocation22 [shape = 's32[1]{0}', space=sflag, size = 0x4, scoped, tag = 'scoped memory for forward.5']
    #allocation23 [shape = 'u8[512]{0}', space=vmem, size = 0x400, scoped, tag = 'input window, operand 12, single buffered']
    #allocation24 [shape = 'u8[16384]{0}', space=vmem, size = 0x4000, scoped, tag = 'output window, operand 0']
    %18 = vsyncpa [#allocation4], 0
    %s19 = scalar_lea.sflag [#allocation4], 1
    %20 = vsyncpa %s19, 0
    %21 = vsyncpa [#allocation7], 0
    %22 = vsyncpa [#allocation10], 0
    %23 = vsyncpa [#allocation13], 0
    %24 = vsyncpa [#allocation16], 0
    %25 = vsyncpa [#allocation19], 0
    %26 = vsyncpa [#allocation22], 0
    %27 = vsyncpa [#allocation5], 0
    %s28 = scalar_lea.sflag [#allocation5], 1
    %29 = vsyncpa %s28, 0
    loop: start=0, step=1, limit=4
    $region2: #{forward.5} parent=1 // loop_pre_header
      _
    $region3: #{forward.5} parent=1 // loop_header
      %s31 = sphi 0, %s35
      %p32 = scmp.ge.s32.totalorder %s31, 4
      %s41 = sphi 0, %s43
      %s44 = sphi 0, %s41
      %s45 = sphi 0, %s44
      %s61 = sphi 0, %s45
      %s65 = sphi 0, %s65
      %s67 = sphi 0, %s65
      %s68 = sphi 0, %s67
      %s82 = sphi 0, %s68
      %s86 = sphi 0, %s86
      %s88 = sphi 0, %s86
      %s89 = sphi 0, %s88
      %s103 = sphi 0, %s89
      %s107 = sphi 0, %s107
      %s109 = sphi 0, %s107
      %s110 = sphi 0, %s109
      %s124 = sphi 0, %s110
      %s128 = sphi 0, %s128
      %s130 = sphi 0, %s128
      %s131 = sphi 0, %s130
      %s145 = sphi 0, %s131
      %s149 = sphi 0, %s149
      %s151 = sphi 0, %s149
      %s152 = sphi 0, %s151
      %s166 = sphi 0, %s152
      %s170 = sphi 0, %s170
      %s172 = sphi 0, %s170
      %s173 = sphi 0, %s172
      %s187 = sphi 0, %s173
      %s191 = sphi 0, %s191
      %s193 = sphi 0, %s191
      %s194 = sphi 0, %s193
      %s208 = sphi 0, %s194
      %s212 = sphi 0, %s212
      %s214 = sphi 0, %s212
      %s215 = sphi 0, %s214
      %s229 = sphi 0, %s215
      %s233 = sphi 0, %s233
      %s235 = sphi 0, %s233
      %s236 = sphi 0, %s235
      %s250 = sphi 0, %s236
      %s254 = sphi 0, %s254
      %s256 = sphi 0, %s254
      %s257 = sphi 0, %s256
      %s271 = sphi 0, %s257
      %s275 = sphi 0, %s275
      %s277 = sphi 0, %s275
      %s278 = sphi 0, %s277
      %s292 = sphi 0, %s278
      %s296 = sphi 0, %s296
      %s298 = sphi 0, %s296
      %s299 = sphi 0, %s298
      %s313 = sphi 0, %s299
      %s319 = sphi 0, %s321
      %s322 = sphi 0, %s319
      %s323 = sphi 0, %s322
      %s339 = sphi 0, %s323
    $region4: #{forward.5} parent=1 // loop_header_branch
      %34 = sbr.rel (%p32) target = $region8
    $region5: #{forward.5} parent=1 // loop_body
      %s36 = ssub.s32 %s31, 1
      %s37 = ssub.s32 %s31, 2
      %s38 = sadd.s32 %s31, 1
      %s39 = ssub.s32 %s31, %s38
      %p40 = scmp.eq.s32.totalorder %s39, 0
      %s42 = sadd.s32 %s41, 1
      %s43 = scalar_select %p40, %s41, %s42
      %p46 = pneg %p40
      %p47 = scmp.eq.s32.totalorder %s31, 1
      %p48 = por %p46, %p47
      %p49 = scmp.ne.s32.totalorder %s41, %s44
      %p50 = scmp.eq.s32.totalorder %s31, 0
      %p51 = por %p49, %p50
      %p52 = scmp.ne.s32.totalorder %s41, %s44
      %p53 = scmp.eq.s32.totalorder %s36, 1
      %p54 = por %p52, %p53
      %p55 = scmp.ne.s32.totalorder %s44, %s45
      %p56 = scmp.eq.s32.totalorder %s36, 0
      %p57 = por %p55, %p56
      %p58 = scmp.ne.s32.totalorder %s44, %s45
      %p59 = scmp.eq.s32.totalorder %s37, 1
      %p60 = por %p58, %p59
      %p62 = scmp.ne.s32.totalorder %s45, %s61
      %p63 = scmp.eq.s32.totalorder %s37, 0
      %p64 = por %p62, %p63
      %s66 = sadd.s32 %s65, 1
      %p69 = scmp.eq.s32.totalorder %s31, 1
      %p70 = scmp.ne.s32.totalorder %s65, %s67
      %p71 = scmp.eq.s32.totalorder %s31, 0
      %p72 = por %p70, %p71
      %p73 = scmp.ne.s32.totalorder %s65, %s67
      %p74 = scmp.eq.s32.totalorder %s36, 1
      %p75 = por %p73, %p74
      %p76 = scmp.ne.s32.totalorder %s67, %s68
      %p77 = scmp.eq.s32.totalorder %s36, 0
      %p78 = por %p76, %p77
      %p79 = scmp.ne.s32.totalorder %s67, %s68
      %p80 = scmp.eq.s32.totalorder %s37, 1
      %p81 = por %p79, %p80
      %p83 = scmp.ne.s32.totalorder %s68, %s82
      %p84 = scmp.eq.s32.totalorder %s37, 0
      %p85 = por %p83, %p84
      %s87 = sadd.s32 %s86, 1
      %p90 = scmp.eq.s32.totalorder %s31, 1
      %p91 = scmp.ne.s32.totalorder %s86, %s88
      %p92 = scmp.eq.s32.totalorder %s31, 0
      %p93 = por %p91, %p92
      %p94 = scmp.ne.s32.totalorder %s86, %s88
      %p95 = scmp.eq.s32.totalorder %s36, 1
      %p96 = por %p94, %p95
      %p97 = scmp.ne.s32.totalorder %s88, %s89
      %p98 = scmp.eq.s32.totalorder %s36, 0
      %p99 = por %p97, %p98
      %p100 = scmp.ne.s32.totalorder %s88, %s89
      %p101 = scmp.eq.s32.totalorder %s37, 1
      %p102 = por %p100, %p101
      %p104 = scmp.ne.s32.totalorder %s89, %s103
      %p105 = scmp.eq.s32.totalorder %s37, 0
      %p106 = por %p104, %p105
      %s108 = sadd.s32 %s107, 1
      %p111 = scmp.eq.s32.totalorder %s31, 1
      %p112 = scmp.ne.s32.totalorder %s107, %s109
      %p113 = scmp.eq.s32.totalorder %s31, 0
      %p114 = por %p112, %p113
      %p115 = scmp.ne.s32.totalorder %s107, %s109
      %p116 = scmp.eq.s32.totalorder %s36, 1
      %p117 = por %p115, %p116
      %p118 = scmp.ne.s32.totalorder %s109, %s110
      %p119 = scmp.eq.s32.totalorder %s36, 0
      %p120 = por %p118, %p119
      %p121 = scmp.ne.s32.totalorder %s109, %s110
      %p122 = scmp.eq.s32.totalorder %s37, 1
      %p123 = por %p121, %p122
      %p125 = scmp.ne.s32.totalorder %s110, %s124
      %p126 = scmp.eq.s32.totalorder %s37, 0
      %p127 = por %p125, %p126
      %s129 = sadd.s32 %s128, 1
      %p132 = scmp.eq.s32.totalorder %s31, 1
      %p133 = scmp.ne.s32.totalorder %s128, %s130
      %p134 = scmp.eq.s32.totalorder %s31, 0
      %p135 = por %p133, %p134
      %p136 = scmp.ne.s32.totalorder %s128, %s130
      %p137 = scmp.eq.s32.totalorder %s36, 1
      %p138 = por %p136, %p137
      %p139 = scmp.ne.s32.totalorder %s130, %s131
      %p140 = scmp.eq.s32.totalorder %s36, 0
      %p141 = por %p139, %p140
      %p142 = scmp.ne.s32.totalorder %s130, %s131
      %p143 = scmp.eq.s32.totalorder %s37, 1
      %p144 = por %p142, %p143
      %p146 = scmp.ne.s32.totalorder %s131, %s145
      %p147 = scmp.eq.s32.totalorder %s37, 0
      %p148 = por %p146, %p147
      %s150 = sadd.s32 %s149, 1
      %p153 = scmp.eq.s32.totalorder %s31, 1
      %p154 = scmp.ne.s32.totalorder %s149, %s151
      %p155 = scmp.eq.s32.totalorder %s31, 0
      %p156 = por %p154, %p155
      %p157 = scmp.ne.s32.totalorder %s149, %s151
      %p158 = scmp.eq.s32.totalorder %s36, 1
      %p159 = por %p157, %p158
      %p160 = scmp.ne.s32.totalorder %s151, %s152
      %p161 = scmp.eq.s32.totalorder %s36, 0
      %p162 = por %p160, %p161
      %p163 = scmp.ne.s32.totalorder %s151, %s152
      %p164 = scmp.eq.s32.totalorder %s37, 1
      %p165 = por %p163, %p164
      %p167 = scmp.ne.s32.totalorder %s152, %s166
      %p168 = scmp.eq.s32.totalorder %s37, 0
      %p169 = por %p167, %p168
      %s171 = sadd.s32 %s170, 1
      %p174 = scmp.eq.s32.totalorder %s31, 1
      %p175 = scmp.ne.s32.totalorder %s170, %s172
      %p176 = scmp.eq.s32.totalorder %s31, 0
      %p177 = por %p175, %p176
      %p178 = scmp.ne.s32.totalorder %s170, %s172
      %p179 = scmp.eq.s32.totalorder %s36, 1
      %p180 = por %p178, %p179
      %p181 = scmp.ne.s32.totalorder %s172, %s173
      %p182 = scmp.eq.s32.totalorder %s36, 0
      %p183 = por %p181, %p182
      %p184 = scmp.ne.s32.totalorder %s172, %s173
      %p185 = scmp.eq.s32.totalorder %s37, 1
      %p186 = por %p184, %p185
      %p188 = scmp.ne.s32.totalorder %s173, %s187
      %p189 = scmp.eq.s32.totalorder %s37, 0
      %p190 = por %p188, %p189
      %s192 = sadd.s32 %s191, 1
      %p195 = scmp.eq.s32.totalorder %s31, 1
      %p196 = scmp.ne.s32.totalorder %s191, %s193
      %p197 = scmp.eq.s32.totalorder %s31, 0
      %p198 = por %p196, %p197
      %p199 = scmp.ne.s32.totalorder %s191, %s193
      %p200 = scmp.eq.s32.totalorder %s36, 1
      %p201 = por %p199, %p200
      %p202 = scmp.ne.s32.totalorder %s193, %s194
      %p203 = scmp.eq.s32.totalorder %s36, 0
      %p204 = por %p202, %p203
      %p205 = scmp.ne.s32.totalorder %s193, %s194
      %p206 = scmp.eq.s32.totalorder %s37, 1
      %p207 = por %p205, %p206
      %p209 = scmp.ne.s32.totalorder %s194, %s208
      %p210 = scmp.eq.s32.totalorder %s37, 0
      %p211 = por %p209, %p210
      %s213 = sadd.s32 %s212, 1
      %p216 = scmp.eq.s32.totalorder %s31, 1
      %p217 = scmp.ne.s32.totalorder %s212, %s214
      %p218 = scmp.eq.s32.totalorder %s31, 0
      %p219 = por %p217, %p218
      %p220 = scmp.ne.s32.totalorder %s212, %s214
      %p221 = scmp.eq.s32.totalorder %s36, 1
      %p222 = por %p220, %p221
      %p223 = scmp.ne.s32.totalorder %s214, %s215
      %p224 = scmp.eq.s32.totalorder %s36, 0
      %p225 = por %p223, %p224
      %p226 = scmp.ne.s32.totalorder %s214, %s215
      %p227 = scmp.eq.s32.totalorder %s37, 1
      %p228 = por %p226, %p227
      %p230 = scmp.ne.s32.totalorder %s215, %s229
      %p231 = scmp.eq.s32.totalorder %s37, 0
      %p232 = por %p230, %p231
      %s234 = sadd.s32 %s233, 1
      %p237 = scmp.eq.s32.totalorder %s31, 1
      %p238 = scmp.ne.s32.totalorder %s233, %s235
      %p239 = scmp.eq.s32.totalorder %s31, 0
      %p240 = por %p238, %p239
      %p241 = scmp.ne.s32.totalorder %s233, %s235
      %p242 = scmp.eq.s32.totalorder %s36, 1
      %p243 = por %p241, %p242
      %p244 = scmp.ne.s32.totalorder %s235, %s236
      %p245 = scmp.eq.s32.totalorder %s36, 0
      %p246 = por %p244, %p245
      %p247 = scmp.ne.s32.totalorder %s235, %s236
      %p248 = scmp.eq.s32.totalorder %s37, 1
      %p249 = por %p247, %p248
      %p251 = scmp.ne.s32.totalorder %s236, %s250
      %p252 = scmp.eq.s32.totalorder %s37, 0
      %p253 = por %p251, %p252
      %s255 = sadd.s32 %s254, 1
      %p258 = scmp.eq.s32.totalorder %s31, 1
      %p259 = scmp.ne.s32.totalorder %s254, %s256
      %p260 = scmp.eq.s32.totalorder %s31, 0
      %p261 = por %p259, %p260
      %p262 = scmp.ne.s32.totalorder %s254, %s256
      %p263 = scmp.eq.s32.totalorder %s36, 1
      %p264 = por %p262, %p263
      %p265 = scmp.ne.s32.totalorder %s256, %s257
      %p266 = scmp.eq.s32.totalorder %s36, 0
      %p267 = por %p265, %p266
      %p268 = scmp.ne.s32.totalorder %s256, %s257
      %p269 = scmp.eq.s32.totalorder %s37, 1
      %p270 = por %p268, %p269
      %p272 = scmp.ne.s32.totalorder %s257, %s271
      %p273 = scmp.eq.s32.totalorder %s37, 0
      %p274 = por %p272, %p273
      %s276 = sadd.s32 %s275, 1
      %p279 = scmp.eq.s32.totalorder %s31, 1
      %p280 = scmp.ne.s32.totalorder %s275, %s277
      %p281 = scmp.eq.s32.totalorder %s31, 0
      %p282 = por %p280, %p281
      %p283 = scmp.ne.s32.totalorder %s275, %s277
      %p284 = scmp.eq.s32.totalorder %s36, 1
      %p285 = por %p283, %p284
      %p286 = scmp.ne.s32.totalorder %s277, %s278
      %p287 = scmp.eq.s32.totalorder %s36, 0
      %p288 = por %p286, %p287
      %p289 = scmp.ne.s32.totalorder %s277, %s278
      %p290 = scmp.eq.s32.totalorder %s37, 1
      %p291 = por %p289, %p290
      %p293 = scmp.ne.s32.totalorder %s278, %s292
      %p294 = scmp.eq.s32.totalorder %s37, 0
      %p295 = por %p293, %p294
      %s297 = sadd.s32 %s296, 1
      %p300 = scmp.eq.s32.totalorder %s31, 1
      %p301 = scmp.ne.s32.totalorder %s296, %s298
      %p302 = scmp.eq.s32.totalorder %s31, 0
      %p303 = por %p301, %p302
      %p304 = scmp.ne.s32.totalorder %s296, %s298
      %p305 = scmp.eq.s32.totalorder %s36, 1
      %p306 = por %p304, %p305
      %p307 = scmp.ne.s32.totalorder %s298, %s299
      %p308 = scmp.eq.s32.totalorder %s36, 0
      %p309 = por %p307, %p308
      %p310 = scmp.ne.s32.totalorder %s298, %s299
      %p311 = scmp.eq.s32.totalorder %s37, 1
      %p312 = por %p310, %p311
      %p314 = scmp.ne.s32.totalorder %s299, %s313
      %p315 = scmp.eq.s32.totalorder %s37, 0
      %p316 = por %p314, %p315
      %s317 = ssub.s32 %s31, %s38
      %p318 = scmp.eq.s32.totalorder %s317, 0
      %s320 = sadd.s32 %s319, 1
      %s321 = scalar_select %p318, %s319, %s320
      %p324 = pneg %p318
      %p325 = scmp.eq.s32.totalorder %s31, 1
      %p326 = por %p324, %p325
      %p327 = scmp.ne.s32.totalorder %s319, %s322
      %p328 = scmp.eq.s32.totalorder %s31, 0
      %p329 = por %p327, %p328
      %p330 = scmp.ne.s32.totalorder %s319, %s322
      %p331 = scmp.eq.s32.totalorder %s36, 1
      %p332 = por %p330, %p331
      %p333 = scmp.ne.s32.totalorder %s322, %s323
      %p334 = scmp.eq.s32.totalorder %s36, 0
      %p335 = por %p333, %p334
      %p336 = scmp.ne.s32.totalorder %s322, %s323
      %p337 = scmp.eq.s32.totalorder %s37, 1
      %p338 = por %p336, %p337
      %p340 = scmp.ne.s32.totalorder %s323, %s339
      %p341 = scmp.eq.s32.totalorder %s37, 0
      %p342 = por %p340, %p341
      %p343 = scmp.le.s32.totalorder 1, %s31
      %p344 = scmp.lt.s32.totalorder %s31, 3
      %p345 = pnand %p343, %p344
      %p346 = pneg %p345
      // Predicated region
      $region9: #{forward.5} parent=5 // pred_check
        _
      $region10: #{forward.5} parent=5 // pred_check_branch
        %348 = sbr.rel (%p345) target = $region12
      $region11: #{forward.5} parent=5 // pred_region
        %s349 = ssub.s32 %s31, 1
        // Predicated region
        $region13: #{forward.5} parent=11 // pred_check
          %p350 = pneg %p78
        $region14: #{forward.5} parent=11 // pred_check_branch
          %352 = sbr.rel (%p350) target = $region16
        $region15: #{forward.5} parent=11 // pred_region
          %s354 = ssub.s32 16, 16
          %355 = vsyncadd [#allocation7], %s354
          %s357 = sshll.u32 [#allocation6], 4
          %s358 = int_to_ptr.vmem [resolvable:$true] %s357
          %360 = dma.hbm_to_vmem [thread:$0]  %s1, 16, %s358, [#allocation7]
        $region16: #{forward.5} parent=11 // pred_fallthru
          _
        // Predicated region
        $region17: #{forward.5} parent=11 // pred_check
          %p361 = pneg %p99
        $region18: #{forward.5} parent=11 // pred_check_branch
          %363 = sbr.rel (%p361) target = $region20
        $region19: #{forward.5} parent=11 // pred_region
          %s365 = ssub.s32 16, 16
          %366 = vsyncadd [#allocation7], %s365
          %s368 = sshll.u32 [#allocation8], 4
          %s369 = int_to_ptr.vmem [resolvable:$true] %s368
          %371 = dma.hbm_to_vmem [thread:$0]  %s2, 16, %s369, [#allocation7]
        $region20: #{forward.5} parent=11 // pred_fallthru
          _
        // Predicated region
        $region21: #{forward.5} parent=11 // pred_check
          %p372 = pneg %p120
        $region22: #{forward.5} parent=11 // pred_check_branch
          %374 = sbr.rel (%p372) target = $region24
        $region23: #{forward.5} parent=11 // pred_region
          %s376 = ssub.s32 256, 256
          %377 = vsyncadd [#allocation10], %s376
          %s378 = sshll.u32 [#allocation9], 4
          %s379 = int_to_ptr.vmem [resolvable:$true] %s378
          %384 = dma.hbm_to_vmem [thread:$0]  %s3, 256, %s379, [#allocation10], 64, 64, 4
        $region24: #{forward.5} parent=11 // pred_fallthru
          _
        // Predicated region
        $region25: #{forward.5} parent=11 // pred_check
          %p385 = pneg %p141
        $region26: #{forward.5} parent=11 // pred_check_branch
          %387 = sbr.rel (%p385) target = $region28
        $region27: #{forward.5} parent=11 // pred_region
          %s389 = ssub.s32 16, 16
          %390 = vsyncadd [#allocation10], %s389
          %s392 = sshll.u32 [#allocation11], 4
          %s393 = int_to_ptr.vmem [resolvable:$true] %s392
          %395 = dma.hbm_to_vmem [thread:$0]  %s4, 16, %s393, [#allocation10]
        $region28: #{forward.5} parent=11 // pred_fallthru
          _
        // Predicated region
        $region29: #{forward.5} parent=11 // pred_check
          %p396 = pneg %p162
        $region30: #{forward.5} parent=11 // pred_check_branch
          %398 = sbr.rel (%p396) target = $region32
        $region31: #{forward.5} parent=11 // pred_region
          %s400 = ssub.s32 256, 256
          %401 = vsyncadd [#allocation13], %s400
          %s402 = sshll.u32 [#allocation12], 4
          %s403 = int_to_ptr.vmem [resolvable:$true] %s402
          %408 = dma.hbm_to_vmem [thread:$0]  %s5, 256, %s403, [#allocation13], 64, 64, 4
        $region32: #{forward.5} parent=11 // pred_fallthru
          _
        // Predicated region
        $region33: #{forward.5} parent=11 // pred_check
          %p409 = pneg %p183
        $region34: #{forward.5} parent=11 // pred_check_branch
          %411 = sbr.rel (%p409) target = $region36
        $region35: #{forward.5} parent=11 // pred_region
          %s413 = ssub.s32 16, 16
          %414 = vsyncadd [#allocation13], %s413
          %s416 = sshll.u32 [#allocation14], 4
          %s417 = int_to_ptr.vmem [resolvable:$true] %s416
          %419 = dma.hbm_to_vmem [thread:$0]  %s6, 16, %s417, [#allocation13]
        $region36: #{forward.5} parent=11 // pred_fallthru
          _
        // Predicated region
        $region37: #{forward.5} parent=11 // pred_check
          %p420 = pneg %p204
        $region38: #{forward.5} parent=11 // pred_check_branch
          %422 = sbr.rel (%p420) target = $region40
        $region39: #{forward.5} parent=11 // pred_region
          %s424 = ssub.s32 16, 16
          %425 = vsyncadd [#allocation16], %s424
          %s427 = sshll.u32 [#allocation15], 4
          %s428 = int_to_ptr.vmem [resolvable:$true] %s427
          %430 = dma.hbm_to_vmem [thread:$0]  %s7, 16, %s428, [#allocation16]
        $region40: #{forward.5} parent=11 // pred_fallthru
          _
        // Predicated region
        $region41: #{forward.5} parent=11 // pred_check
          %p431 = pneg %p225
        $region42: #{forward.5} parent=11 // pred_check_branch
          %433 = sbr.rel (%p431) target = $region44
        $region43: #{forward.5} parent=11 // pred_region
          %s435 = ssub.s32 16, 16
          %436 = vsyncadd [#allocation16], %s435
          %s438 = sshll.u32 [#allocation17], 4
          %s439 = int_to_ptr.vmem [resolvable:$true] %s438
          %441 = dma.hbm_to_vmem [thread:$0]  %s8, 16, %s439, [#allocation16]
        $region44: #{forward.5} parent=11 // pred_fallthru
          _
        // Predicated region
        $region45: #{forward.5} parent=11 // pred_check
          %p442 = pneg %p246
        $region46: #{forward.5} parent=11 // pred_check_branch
          %444 = sbr.rel (%p442) target = $region48
        $region47: #{forward.5} parent=11 // pred_region
          %s446 = ssub.s32 256, 256
          %447 = vsyncadd [#allocation19], %s446
          %s448 = sshll.u32 [#allocation18], 4
          %s449 = int_to_ptr.vmem [resolvable:$true] %s448
          %454 = dma.hbm_to_vmem [thread:$0]  %s9, 256, %s449, [#allocation19], 64, 64, 4
        $region48: #{forward.5} parent=11 // pred_fallthru
          _
        // Predicated region
        $region49: #{forward.5} parent=11 // pred_check
          %p455 = pneg %p267
        $region50: #{forward.5} parent=11 // pred_check_branch
          %457 = sbr.rel (%p455) target = $region52
        $region51: #{forward.5} parent=11 // pred_region
          %s459 = ssub.s32 16, 16
          %460 = vsyncadd [#allocation19], %s459
          %s462 = sshll.u32 [#allocation20], 4
          %s463 = int_to_ptr.vmem [resolvable:$true] %s462
          %465 = dma.hbm_to_vmem [thread:$0]  %s10, 16, %s463, [#allocation19]
        $region52: #{forward.5} parent=11 // pred_fallthru
          _
        // Predicated region
        $region53: #{forward.5} parent=11 // pred_check
          %p466 = pneg %p288
        $region54: #{forward.5} parent=11 // pred_check_branch
          %468 = sbr.rel (%p466) target = $region56
        $region55: #{forward.5} parent=11 // pred_region
          %s470 = ssub.s32 1024, 1024
          %471 = vsyncadd [#allocation22], %s470
          %s472 = sshll.u32 [#allocation21], 4
          %s473 = int_to_ptr.vmem [resolvable:$true] %s472
          %478 = dma.hbm_to_vmem [thread:$0]  %s11, 1024, %s473, [#allocation22], 64, 64, 4
        $region56: #{forward.5} parent=11 // pred_fallthru
          _
        // Predicated region
        $region57: #{forward.5} parent=11 // pred_check
          %p479 = pneg %p309
        $region58: #{forward.5} parent=11 // pred_check_branch
          %481 = sbr.rel (%p479) target = $region60
        $region59: #{forward.5} parent=11 // pred_region
          %s483 = ssub.s32 16, 16
          %484 = vsyncadd [#allocation22], %s483
          %s486 = sshll.u32 [#allocation23], 4
          %s487 = int_to_ptr.vmem [resolvable:$true] %s486
          %489 = dma.hbm_to_vmem [thread:$0]  %s12, 16, %s487, [#allocation22]
        $region60: #{forward.5} parent=11 // pred_fallthru
          _
      $region12: #{forward.5} parent=5 // pred_fallthru
        _
      %p490 = scmp.lt.s32.totalorder %s31, 2
      // Predicated region
      $region61: #{forward.5} parent=5 // pred_check
        %p491 = pneg %p490
      $region62: #{forward.5} parent=5 // pred_check_branch
        %493 = sbr.rel (%p491) target = $region64
      $region63: #{forward.5} parent=5 // pred_region
        // Predicated region
        $region65: #{forward.5} parent=63 // pred_check
          %p494 = pneg %p51
        $region66: #{forward.5} parent=63 // pred_check_branch
          %496 = sbr.rel (%p494) target = $region68
        $region67: #{forward.5} parent=63 // pred_region
          %s497 = sand.u32 %s41, 1
          %s498 = scalar_lea.sflag [#allocation4], %s497
          %s499 = sand.u32 %s41, 1
          %s500 = smul.addr %s499, 16
          %s501 = scalar_lea.vmem [#allocation3], %s500
          %s503 = ssub.s32 256, 256
          %504 = vsyncadd %s498, %s503
          %s505 = smul.addr %s31, 2
          %s506 = smul.addr %s505, 128
          %s507 = scalar_lea.hbm %s0, %s506
          %s508 = sshll.u32 %s501, 4
          %s509 = int_to_ptr.vmem [resolvable:$true] %s508
          %514 = dma.hbm_to_vmem [thread:$0]  %s507, 256, %s509, %s498, 128, 128, 8
        $region68: #{forward.5} parent=63 // pred_fallthru
          _
      $region64: #{forward.5} parent=5 // pred_fallthru
        _
      %p515 = scmp.le.s32.totalorder 1, %s31
      %p516 = scmp.lt.s32.totalorder %s31, 3
      %p517 = pnand %p515, %p516
      %p518 = pneg %p517
      // Predicated region
      $region69: #{forward.5} parent=5 // pred_check
        _
      $region70: #{forward.5} parent=5 // pred_check_branch
        %520 = sbr.rel (%p517) target = $region72
      $region71: #{forward.5} parent=5 // pred_region
        %s521 = ssub.s32 %s31, 1
        %s522 = sand.u32 %s44, 1
        %s523 = scalar_lea.sflag [#allocation4], %s522
        %s524 = sand.u32 %s44, 1
        %s525 = smul.addr %s524, 16
        %s526 = scalar_lea.vmem [#allocation3], %s525
        // Predicated region
        $region73: #{forward.5} parent=71 // pred_check
          %p527 = pneg %p57
        $region74: #{forward.5} parent=71 // pred_check_branch
          %529 = sbr.rel (%p527) target = $region76
        $region75: #{forward.5} parent=71 // pred_region
          %530 = dma.done %s523, 256
        $region76: #{forward.5} parent=71 // pred_fallthru
          _
        // Predicated region
        $region77: #{forward.5} parent=71 // pred_check
          %p531 = pneg %p78
        $region78: #{forward.5} parent=71 // pred_check_branch
          %533 = sbr.rel (%p531) target = $region80
        $region79: #{forward.5} parent=71 // pred_region
          %534 = dma.done [#allocation7], 16
        $region80: #{forward.5} parent=71 // pred_fallthru
          _
        // Predicated region
        $region81: #{forward.5} parent=71 // pred_check
          %p535 = pneg %p99
        $region82: #{forward.5} parent=71 // pred_check_branch
          %537 = sbr.rel (%p535) target = $region84
        $region83: #{forward.5} parent=71 // pred_region
          %538 = dma.done [#allocation7], 16
        $region84: #{forward.5} parent=71 // pred_fallthru
          _
        // Predicated region
        $region85: #{forward.5} parent=71 // pred_check
          %p539 = pneg %p120
        $region86: #{forward.5} parent=71 // pred_check_branch
          %541 = sbr.rel (%p539) target = $region88
        $region87: #{forward.5} parent=71 // pred_region
          %542 = dma.done [#allocation10], 256
        $region88: #{forward.5} parent=71 // pred_fallthru
          _
        // Predicated region
        $region89: #{forward.5} parent=71 // pred_check
          %p543 = pneg %p141
        $region90: #{forward.5} parent=71 // pred_check_branch
          %545 = sbr.rel (%p543) target = $region92
        $region91: #{forward.5} parent=71 // pred_region
          %546 = dma.done [#allocation10], 16
        $region92: #{forward.5} parent=71 // pred_fallthru
          _
        // Predicated region
        $region93: #{forward.5} parent=71 // pred_check
          %p547 = pneg %p162
        $region94: #{forward.5} parent=71 // pred_check_branch
          %549 = sbr.rel (%p547) target = $region96
        $region95: #{forward.5} parent=71 // pred_region
          %550 = dma.done [#allocation13], 256
        $region96: #{forward.5} parent=71 // pred_fallthru
          _
        // Predicated region
        $region97: #{forward.5} parent=71 // pred_check
          %p551 = pneg %p183
        $region98: #{forward.5} parent=71 // pred_check_branch
          %553 = sbr.rel (%p551) target = $region100
        $region99: #{forward.5} parent=71 // pred_region
          %554 = dma.done [#allocation13], 16
        $region100: #{forward.5} parent=71 // pred_fallthru
          _
        // Predicated region
        $region101: #{forward.5} parent=71 // pred_check
          %p555 = pneg %p204
        $region102: #{forward.5} parent=71 // pred_check_branch
          %557 = sbr.rel (%p555) target = $region104
        $region103: #{forward.5} parent=71 // pred_region
          %558 = dma.done [#allocation16], 16
        $region104: #{forward.5} parent=71 // pred_fallthru
          _
        // Predicated region
        $region105: #{forward.5} parent=71 // pred_check
          %p559 = pneg %p225
        $region106: #{forward.5} parent=71 // pred_check_branch
          %561 = sbr.rel (%p559) target = $region108
        $region107: #{forward.5} parent=71 // pred_region
          %562 = dma.done [#allocation16], 16
        $region108: #{forward.5} parent=71 // pred_fallthru
          _
        // Predicated region
        $region109: #{forward.5} parent=71 // pred_check
          %p563 = pneg %p246
        $region110: #{forward.5} parent=71 // pred_check_branch
          %565 = sbr.rel (%p563) target = $region112
        $region111: #{forward.5} parent=71 // pred_region
          %566 = dma.done [#allocation19], 256
        $region112: #{forward.5} parent=71 // pred_fallthru
          _
        // Predicated region
        $region113: #{forward.5} parent=71 // pred_check
          %p567 = pneg %p267
        $region114: #{forward.5} parent=71 // pred_check_branch
          %569 = sbr.rel (%p567) target = $region116
        $region115: #{forward.5} parent=71 // pred_region
          %570 = dma.done [#allocation19], 16
        $region116: #{forward.5} parent=71 // pred_fallthru
          _
        // Predicated region
        $region117: #{forward.5} parent=71 // pred_check
          %p571 = pneg %p288
        $region118: #{forward.5} parent=71 // pred_check_branch
          %573 = sbr.rel (%p571) target = $region120
        $region119: #{forward.5} parent=71 // pred_region
          %574 = dma.done [#allocation22], 1024
        $region120: #{forward.5} parent=71 // pred_fallthru
          _
        // Predicated region
        $region121: #{forward.5} parent=71 // pred_check
          %p575 = pneg %p309
        $region122: #{forward.5} parent=71 // pred_check_branch
          %577 = sbr.rel (%p575) target = $region124
        $region123: #{forward.5} parent=71 // pred_region
          %578 = dma.done [#allocation22], 16
        $region124: #{forward.5} parent=71 // pred_fallthru
          _
        %s579 = sand.u32 %s44, 1
        %s580 = scalar_lea.sflag [#allocation4], %s579
        %s581 = sand.u32 %s44, 1
        %s582 = smul.addr %s581, 16
        %s583 = scalar_lea.vmem [#allocation3], %s582
        %p584 = pneg %p57
        %p585 = pneg %p54
        %p586 = pneg %p78
        %p587 = pneg %p75
        %p588 = pneg %p99
        %p589 = pneg %p96
        %p590 = pneg %p120
        %p591 = pneg %p117
        %p592 = pneg %p141
        %p593 = pneg %p138
        %p594 = pneg %p162
        %p595 = pneg %p159
        %p596 = pneg %p183
        %p597 = pneg %p180
        %p598 = pneg %p204
        %p599 = pneg %p201
        %p600 = pneg %p225
        %p601 = pneg %p222
        %p602 = pneg %p246
        %p603 = pneg %p243
        %p604 = pneg %p267
        %p605 = pneg %p264
        %p606 = pneg %p288
        %p607 = pneg %p285
        %p608 = pneg %p309
        %p609 = pneg %p306
        %p610 = pneg %p335
        %p611 = pneg %p332
        %s612 = sand.u32 %s322, 1
        %s613 = scalar_lea.sflag [#allocation5], %s612
        %s614 = sand.u32 %s322, 1
        %s615 = smul.addr %s614, 16
        %s616 = scalar_lea.vmem [#allocation24], %s615
        %v618 = vld [vmem:[%s526] sm:$0xff]
        %v619 = vld [vmem:[%s526 + $0x8] sm:$0xff]
        %vm620 = vcmask 261120
        %v621 = vsel %vm620, %v618, 0.0
        %622 = vadd.xlane.f32.xlu0 %v621
        %v623 = vpop.xlane.xlu0 %622
        %v624 = vsel %vm620, %v619, 0.0
        %625 = vadd.xlane.f32.xlu0 %v624
        %v626 = vpop.xlane.xlu0 %625
        %v627 = vrcp.pop 32.0
        %v628 = vmul.f32 %v623, %v627
        %v629 = vmul.f32 %v626, %v627
        %v630 = vsub.f32 %v618, %v628
        %v631 = vsub.f32 %v619, %v629
        %v632 = vmul.f32 %v630, %v630
        %v633 = vmul.f32 %v631, %v631
        %v634 = vsel %vm620, %v632, 0.0
        %635 = vadd.xlane.f32.xlu0 %v634
        %v636 = vpop.xlane.xlu0 %635
        %v637 = vsel %vm620, %v633, 0.0
        %638 = vadd.xlane.f32.xlu0 %v637
        %v639 = vpop.xlane.xlu0 %638
        %v640 = vmul.f32 %v636, %v627
        %v641 = vmul.f32 %v639, %v627
        %v642 = vadd.f32 %v640, 1e-05
        %v643 = vadd.f32 %v641, 1e-05
        %v644 = vrsqrt.pop %v642
        %v645 = vrsqrt.pop %v643
        %v646 = vmul.f32 %v630, %v644
        %v647 = vmul.f32 %v631, %v645
        %v648 = vld [vmem:[#allocation6] sm:$0x1]
        %v650 = vlaneseq
        %v651 = vshrl.u32 %v650, 7
        %v652 = vsub.s32 0, %v651
        %v653 = vrot.slane %v648, %v652
        %v655 = vmul.f32 %v646, %v653
        %v656 = vmul.f32 %v647, %v653
        %v657 = vld [vmem:[#allocation8] sm:$0x1]
        %v659 = vlaneseq
        %v660 = vshrl.u32 %v659, 7
        %v661 = vsub.s32 0, %v660
        %v662 = vrot.slane %v657, %v661
        %v664 = vadd.f32 %v655, %v662
        %v665 = vadd.f32 %v656, %v662
        %v666 = vpack.c.bf16 %v665, %v664
        %v667 = vld [vmem:[#allocation9] sm:$0xf]
        %v668 = vld [vmem:[#allocation9 + $0x4] sm:$0xf]
        %v669 = vld [vmem:[#allocation9 + $0x8] sm:$0xf]
        %v670 = vld [vmem:[#allocation9 + $0xc] sm:$0xf]
        %v671 = vld [vmem:[#allocation11] sm:$0x1]
        %v673 = vlaneseq
        %v674 = vshrl.u32 %v673, 7
        %v675 = vsub.s32 0, %v674
        %v676 = vrot.slane %v671, %v675
        %v682 = vunpack.c.l.b16 %v667
        %v683 = vunpack.c.l.b16 %v668
        %v684 = vunpack.c.l.b16 %v669
        %v685 = vunpack.c.l.b16 %v670
        %v686 = vpack.c.b16 %v683, %v682
        %v687 = vpack.c.b16 %v685, %v684
        %v691 = vsel %vm620, %v666, 0
        %693 = vmatprep.subr.bf16.mxu0 0
        %694 = vmatpush1.bf16.msra.mxu0 %v686
        %695 = vmatprep.subr.bf16.mxu0 0
        %696 = vmatpush1.bf16.msra.mxu0 %v687
        %697 = vmatprep.subr.bf16.mxu0 0
        %698 = vmatpush1.bf16.msra.mxu0 0
        %699 = vmatprep.subr.bf16.mxu0 0
        %700 = vmatpush1.bf16.msra.mxu0 0
        %701 = vmatprep.subr.bf16.mxu0 0
        %702 = vmatpush1.bf16.msra.mxu0 0
        %703 = vmatprep.subr.bf16.mxu0 0
        %704 = vmatpush1.bf16.msra.mxu0 0
        %705 = vmatprep.subr.bf16.mxu0 0
        %706 = vmatpush1.bf16.msra.mxu0 0
        %707 = vmatprep.subr.bf16.mxu0 0
        %708 = vmatpush1.bf16.msra.mxu0 0
        %709 = vmatprep.subr.bf16.mxu0 0
        %710 = vmatpush1.bf16.msra.mxu0 0
        %711 = vmatprep.subr.bf16.mxu0 0
        %712 = vmatpush1.bf16.msra.mxu0 0
        %713 = vmatprep.subr.bf16.mxu0 0
        %714 = vmatpush1.bf16.msra.mxu0 0
        %715 = vmatprep.subr.bf16.mxu0 0
        %716 = vmatpush1.bf16.msra.mxu0 0
        %717 = vmatprep.subr.bf16.mxu0 0
        %718 = vmatpush1.bf16.msra.mxu0 0
        %719 = vmatprep.subr.bf16.mxu0 0
        %720 = vmatpush1.bf16.msra.mxu0 0
        %721 = vmatprep.subr.bf16.mxu0 0
        %722 = vmatpush1.bf16.msra.mxu0 0
        %723 = vmatprep.subr.bf16.mxu0 0
        %724 = vmatpush1.bf16.msra.mxu0 0
        %725 = vmatprep.mubr.bf16.mxu0 0
        %726 = vmatmul.mubr.bf16.gmra.mrb[0].mxu0 %v691
        %v727 = vpop.f32.mrb[0].mxu0
        %v728 = vadd.f32 %v676, %v727
        %v729 = vpop.f32.mrb[0].mxu0
        %v730 = vpop.f32.mrb[0].mxu0
        %v731 = vadd.f32 %v676, %v730
        %v732 = vpop.f32.mrb[0].mxu0
        %733 = vdwg.mxu0
        %736 = vrot.lane.b32.xlu0 %v728, 96
        %v737 = vpop.permute.xlu0 %736
        %738 = vrot.lane.b32.xlu0 %v731, 96
        %v739 = vpop.permute.xlu0 %738
        %742 = vxpose.xlu0.b32.start [1/16] %v737, 128
        %743 = vxpose.xlu0.b32.cont [2/16] %v739, 128
        %744 = vxpose.xlu0.b32.cont [3/16] 0.0, 128
        %745 = vxpose.xlu0.b32.cont [4/16] 0.0, 128
        %746 = vxpose.xlu0.b32.cont [5/16] 0.0, 128
        %747 = vxpose.xlu0.b32.cont [6/16] 0.0, 128
        %748 = vxpose.xlu0.b32.cont [7/16] 0.0, 128
        %749 = vxpose.xlu0.b32.cont [8/16] 0.0, 128
        %750 = vxpose.xlu0.b32.cont [9/16] 0.0, 128
        %751 = vxpose.xlu0.b32.cont [10/16] 0.0, 128
        %752 = vxpose.xlu0.b32.cont [11/16] 0.0, 128
        %753 = vxpose.xlu0.b32.cont [12/16] 0.0, 128
        %754 = vxpose.xlu0.b32.cont [13/16] 0.0, 128
        %755 = vxpose.xlu0.b32.cont [14/16] 0.0, 128
        %756 = vxpose.xlu0.b32.cont [15/16] 0.0, 128
        %757 = vxpose.xlu0.b32.end [16/16] 0.0, 128
        %v758 = vpop.trf.xlu0
        %v759 = vpop.trf.xlu0
        %v760 = vpop.trf.xlu0
        %v761 = vpop.trf.xlu0
        %v762 = vpop.trf.xlu0
        %v763 = vpop.trf.xlu0
        %v764 = vpop.trf.xlu0
        %v765 = vpop.trf.xlu0
        %v766 = vpop.trf.xlu0
        %v767 = vpop.trf.xlu0
        %v768 = vpop.trf.xlu0
        %v769 = vpop.trf.xlu0
        %v770 = vpop.trf.xlu0
        %v771 = vpop.trf.xlu0
        %v772 = vpop.trf.xlu0
        %v773 = vpop.trf.xlu0
        %v774 = vpack.c.bf16 %v759, %v758
        %v775 = vpack.c.bf16 %v761, %v760
        %v776 = vpack.c.bf16 %v731, %v728
        %vm777 = vcmask 64512
        %v779 = vsel %vm777, %v776, 0
        %vm781 = vcmask 1043456
        %v783 = vsel %vm781, %v774, 0
        %785 = vmatprep.subr.bf16.mxu0 0
        %786 = vmatpush1.bf16.msra.mxu0 %v783
        %787 = vmatprep.subr.bf16.mxu0 0
        %788 = vmatpush1.bf16.msra.mxu0 0
        %789 = vmatprep.subr.bf16.mxu0 0
        %790 = vmatpush1.bf16.msra.mxu0 0
        %791 = vmatprep.subr.bf16.mxu0 0
        %792 = vmatpush1.bf16.msra.mxu0 0
        %793 = vmatprep.subr.bf16.mxu0 0
        %794 = vmatpush1.bf16.msra.mxu0 0
        %795 = vmatprep.subr.bf16.mxu0 0
        %796 = vmatpush1.bf16.msra.mxu0 0
        %797 = vmatprep.subr.bf16.mxu0 0
        %798 = vmatpush1.bf16.msra.mxu0 0
        %799 = vmatprep.subr.bf16.mxu0 0
        %800 = vmatpush1.bf16.msra.mxu0 0
        %801 = vmatprep.subr.bf16.mxu0 0
        %802 = vmatpush1.bf16.msra.mxu0 0
        %803 = vmatprep.subr.bf16.mxu0 0
        %804 = vmatpush1.bf16.msra.mxu0 0
        %805 = vmatprep.subr.bf16.mxu0 0
        %806 = vmatpush1.bf16.msra.mxu0 0
        %807 = vmatprep.subr.bf16.mxu0 0
        %808 = vmatpush1.bf16.msra.mxu0 0
        %809 = vmatprep.subr.bf16.mxu0 0
        %810 = vmatpush1.bf16.msra.mxu0 0
        %811 = vmatprep.subr.bf16.mxu0 0
        %812 = vmatpush1.bf16.msra.mxu0 0
        %813 = vmatprep.subr.bf16.mxu0 0
        %814 = vmatpush1.bf16.msra.mxu0 0
        %815 = vmatprep.subr.bf16.mxu0 0
        %816 = vmatpush1.bf16.msra.mxu0 0
        %817 = vmatprep.mubr.bf16.mxu0 0
        %818 = vmatmul.mubr.bf16.gmra.mrb[0].mxu0 %v779
        %v819 = vpop.f32.mrb[0].mxu0
        %v820 = vadd.f32 0.0, %v819
        %v821 = vpop.f32.mrb[0].mxu0
        %v822 = vpop.f32.mrb[0].mxu0
        %v823 = vadd.f32 0.0, %v822
        %v824 = vpop.f32.mrb[0].mxu0
        %825 = vdwg.mxu0
        %vm826 = vcmask 130048
        %v827 = vsel %vm826, %v820, -inf
        %828 = vmax.xlane.f32.xlu0 %v827
        %v829 = vpop.xlane.xlu0 %828
        %v830 = vsel %vm826, %v823, -inf
        %831 = vmax.xlane.f32.xlu0 %v830
        %v832 = vpop.xlane.xlu0 %831
        %v833 = vsub.f32 %v820, %v829
        %v834 = vsub.f32 %v823, %v832
        %v835 = vmul.f32 %v833, 1.442695
        %v836 = vpow.pop %v835
        %v837 = vmul.f32 %v834, 1.442695
        %v838 = vpow.pop %v837
        %v839 = vsel %vm826, %v836, 0.0
        %840 = vadd.xlane.f32.xlu0 %v839
        %v841 = vpop.xlane.xlu0 %840
        %v842 = vsel %vm826, %v838, 0.0
        %843 = vadd.xlane.f32.xlu0 %v842
        %v844 = vpop.xlane.xlu0 %843
        %v845 = vrcp.pop %v841
        %v846 = vrcp.pop %v844
        %v847 = vmul.f32 %v836, %v845
        %v848 = vmul.f32 %v838, %v846
        %v849 = vpack.c.bf16 %v848, %v847
        %851 = vrot.lane.b32.xlu0 %v776, 64
        %v852 = vpop.permute.xlu0 %851
        %v855 = vsel %vm826, %v849, 0
        %857 = vmatprep.subr.bf16.mxu0 0
        %858 = vmatpush1.bf16.msra.mxu0 %v852
        %859 = vmatprep.subr.bf16.mxu0 0
        %860 = vmatpush1.bf16.msra.mxu0 0
        %861 = vmatprep.subr.bf16.mxu0 0
        %862 = vmatpush1.bf16.msra.mxu0 0
        %863 = vmatprep.subr.bf16.mxu0 0
        %864 = vmatpush1.bf16.msra.mxu0 0
        %865 = vmatprep.subr.bf16.mxu0 0
        %866 = vmatpush1.bf16.msra.mxu0 0
        %867 = vmatprep.subr.bf16.mxu0 0
        %868 = vmatpush1.bf16.msra.mxu0 0
        %869 = vmatprep.subr.bf16.mxu0 0
        %870 = vmatpush1.bf16.msra.mxu0 0
        %871 = vmatprep.subr.bf16.mxu0 0
        %872 = vmatpush1.bf16.msra.mxu0 0
        %873 = vmatprep.subr.bf16.mxu0 0
        %874 = vmatpush1.bf16.msra.mxu0 0
        %875 = vmatprep.subr.bf16.mxu0 0
        %876 = vmatpush1.bf16.msra.mxu0 0
        %877 = vmatprep.subr.bf16.mxu0 0
        %878 = vmatpush1.bf16.msra.mxu0 0
        %879 = vmatprep.subr.bf16.mxu0 0
        %880 = vmatpush1.bf16.msra.mxu0 0
        %881 = vmatprep.subr.bf16.mxu0 0
        %882 = vmatpush1.bf16.msra.mxu0 0
        %883 = vmatprep.subr.bf16.mxu0 0
        %884 = vmatpush1.bf16.msra.mxu0 0
        %885 = vmatprep.subr.bf16.mxu0 0
        %886 = vmatpush1.bf16.msra.mxu0 0
        %887 = vmatprep.subr.bf16.mxu0 0
        %888 = vmatpush1.bf16.msra.mxu0 0
        %889 = vmatprep.mubr.bf16.mxu0 0
        %890 = vmatmul.mubr.bf16.gmra.mrb[0].mxu0 %v855
        %v891 = vpop.f32.mrb[0].mxu0
        %v892 = vadd.f32 0.0, %v891
        %v893 = vpop.f32.mrb[0].mxu0
        %v894 = vpop.f32.mrb[0].mxu0
        %v895 = vadd.f32 0.0, %v894
        %v896 = vpop.f32.mrb[0].mxu0
        %897 = vdwg.mxu0
        %898 = vst.msk [vmem:[#allocation2] sm:$0xff] %vm777, %v892
        %899 = vst.msk [vmem:[#allocation2 + $0x8] sm:$0xff] %vm777, %v895
        %900 = vrot.lane.b32.xlu0 %v776, 120
        %v901 = vpop.permute.xlu0 %900
        %v903 = vrot.slane %v774, 4
        %v905 = vsel %vm777, %v901, 0
        %v908 = vsel %vm781, %v903, 0
        %910 = vmatprep.subr.bf16.mxu0 0
        %911 = vmatpush1.bf16.msra.mxu0 %v908
        %912 = vmatprep.subr.bf16.mxu0 0
        %913 = vmatpush1.bf16.msra.mxu0 0
        %914 = vmatprep.subr.bf16.mxu0 0
        %915 = vmatpush1.bf16.msra.mxu0 0
        %916 = vmatprep.subr.bf16.mxu0 0
        %917 = vmatpush1.bf16.msra.mxu0 0
        %918 = vmatprep.subr.bf16.mxu0 0
        %919 = vmatpush1.bf16.msra.mxu0 0
        %920 = vmatprep.subr.bf16.mxu0 0
        %921 = vmatpush1.bf16.msra.mxu0 0
        %922 = vmatprep.subr.bf16.mxu0 0
        %923 = vmatpush1.bf16.msra.mxu0 0
        %924 = vmatprep.subr.bf16.mxu0 0
        %925 = vmatpush1.bf16.msra.mxu0 0
        %926 = vmatprep.subr.bf16.mxu0 0
        %927 = vmatpush1.bf16.msra.mxu0 0
        %928 = vmatprep.subr.bf16.mxu0 0
        %929 = vmatpush1.bf16.msra.mxu0 0
        %930 = vmatprep.subr.bf16.mxu0 0
        %931 = vmatpush1.bf16.msra.mxu0 0
        %932 = vmatprep.subr.bf16.mxu0 0
        %933 = vmatpush1.bf16.msra.mxu0 0
        %934 = vmatprep.subr.bf16.mxu0 0
        %935 = vmatpush1.bf16.msra.mxu0 0
        %936 = vmatprep.subr.bf16.mxu0 0
        %937 = vmatpush1.bf16.msra.mxu0 0
        %938 = vmatprep.subr.bf16.mxu0 0
        %939 = vmatpush1.bf16.msra.mxu0 0
        %940 = vmatprep.subr.bf16.mxu0 0
        %941 = vmatpush1.bf16.msra.mxu0 0
        %942 = vmatprep.mubr.bf16.mxu0 0
        %943 = vmatmul.mubr.bf16.gmra.mrb[0].mxu0 %v905
        %v944 = vpop.f32.mrb[0].mxu0
        %v945 = vadd.f32 0.0, %v944
        %v946 = vpop.f32.mrb[0].mxu0
        %v947 = vpop.f32.mrb[0].mxu0
        %v948 = vadd.f32 0.0, %v947
        %v949 = vpop.f32.mrb[0].mxu0
        %950 = vdwg.mxu0
        %v951 = vsel %vm826, %v945, -inf
        %952 = vmax.xlane.f32.xlu0 %v951
        %v953 = vpop.xlane.xlu0 %952
        %v954 = vsel %vm826, %v948, -inf
        %955 = vmax.xlane.f32.xlu0 %v954
        %v956 = vpop.xlane.xlu0 %955
        %v957 = vsub.f32 %v945, %v953
        %v958 = vsub.f32 %v948, %v956
        %v959 = vmul.f32 %v957, 1.442695
        %v960 = vpow.pop %v959
        %v961 = vmul.f32 %v958, 1.442695
        %v962 = vpow.pop %v961
        %v963 = vsel %vm826, %v960, 0.0
        %964 = vadd.xlane.f32.xlu0 %v963
        %v965 = vpop.xlane.xlu0 %964
        %v966 = vsel %vm826, %v962, 0.0
        %967 = vadd.xlane.f32.xlu0 %v966
        %v968 = vpop.xlane.xlu0 %967
        %v969 = vrcp.pop %v965
        %v970 = vrcp.pop %v968
        %v971 = vmul.f32 %v960, %v969
        %v972 = vmul.f32 %v962, %v970
        %v973 = vpack.c.bf16 %v972, %v971
        %974 = vrot.lane.b32.xlu0 %v776, 56
        %v975 = vpop.permute.xlu0 %974
        %v978 = vsel %vm826, %v973, 0
        %980 = vmatprep.subr.bf16.mxu0 0
        %981 = vmatpush1.bf16.msra.mxu0 %v975
        %982 = vmatprep.subr.bf16.mxu0 0
        %983 = vmatpush1.bf16.msra.mxu0 0
        %984 = vmatprep.subr.bf16.mxu0 0
        %985 = vmatpush1.bf16.msra.mxu0 0
        %986 = vmatprep.subr.bf16.mxu0 0
        %987 = vmatpush1.bf16.msra.mxu0 0
        %988 = vmatprep.subr.bf16.mxu0 0
        %989 = vmatpush1.bf16.msra.mxu0 0
        %990 = vmatprep.subr.bf16.mxu0 0
        %991 = vmatpush1.bf16.msra.mxu0 0
        %992 = vmatprep.subr.bf16.mxu0 0
        %993 = vmatpush1.bf16.msra.mxu0 0
        %994 = vmatprep.subr.bf16.mxu0 0
        %995 = vmatpush1.bf16.msra.mxu0 0
        %996 = vmatprep.subr.bf16.mxu0 0
        %997 = vmatpush1.bf16.msra.mxu0 0
        %998 = vmatprep.subr.bf16.mxu0 0
        %999 = vmatpush1.bf16.msra.mxu0 0
        %1000 = vmatprep.subr.bf16.mxu0 0
        %1001 = vmatpush1.bf16.msra.mxu0 0
        %1002 = vmatprep.subr.bf16.mxu0 0
        %1003 = vmatpush1.bf16.msra.mxu0 0
        %1004 = vmatprep.subr.bf16.mxu0 0
        %1005 = vmatpush1.bf16.msra.mxu0 0
        %1006 = vmatprep.subr.bf16.mxu0 0
        %1007 = vmatpush1.bf16.msra.mxu0 0
        %1008 = vmatprep.subr.bf16.mxu0 0
        %1009 = vmatpush1.bf16.msra.mxu0 0
        %1010 = vmatprep.subr.bf16.mxu0 0
        %1011 = vmatpush1.bf16.msra.mxu0 0
        %1012 = vmatprep.mubr.bf16.mxu0 0
        %1013 = vmatmul.mubr.bf16.gmra.mrb[0].mxu0 %v978
        %v1014 = vpop.f32.mrb[0].mxu0
        %v1015 = vadd.f32 0.0, %v1014
        %v1016 = vpop.f32.mrb[0].mxu0
        %v1017 = vpop.f32.mrb[0].mxu0
        %v1018 = vadd.f32 0.0, %v1017
        %v1019 = vpop.f32.mrb[0].mxu0
        %1020 = vdwg.mxu0
        %1023 = vrot.lane.b32.xlu0 %v1015, 8
        %v1024 = vpop.permute.xlu0 %1023
        %1025 = vrot.lane.b32.xlu0 %v1018, 8
        %v1026 = vpop.permute.xlu0 %1025
        %vm1029 = vcmask 130112
        %1030 = vst.msk [vmem:[#allocation2] sm:$0xff] %vm1029, %v1024
        %1031 = vst.msk [vmem:[#allocation2 + $0x8] sm:$0xff] %vm1029, %v1026
        %1032 = vrot.lane.b32.xlu0 %v776, 112
        %v1033 = vpop.permute.xlu0 %1032
        %v1035 = vsel %vm777, %v1033, 0
        %v1038 = vsel %vm781, %v775, 0
        %1040 = vmatprep.subr.bf16.mxu0 0
        %1041 = vmatpush1.bf16.msra.mxu0 %v1038
        %1042 = vmatprep.subr.bf16.mxu0 0
        %1043 = vmatpush1.bf16.msra.mxu0 0
        %1044 = vmatprep.subr.bf16.mxu0 0
        %1045 = vmatpush1.bf16.msra.mxu0 0
        %1046 = vmatprep.subr.bf16.mxu0 0
        %1047 = vmatpush1.bf16.msra.mxu0 0
        %1048 = vmatprep.subr.bf16.mxu0 0
        %1049 = vmatpush1.bf16.msra.mxu0 0
        %1050 = vmatprep.subr.bf16.mxu0 0
        %1051 = vmatpush1.bf16.msra.mxu0 0
        %1052 = vmatprep.subr.bf16.mxu0 0
        %1053 = vmatpush1.bf16.msra.mxu0 0
        %1054 = vmatprep.subr.bf16.mxu0 0
        %1055 = vmatpush1.bf16.msra.mxu0 0
        %1056 = vmatprep.subr.bf16.mxu0 0
        %1057 = vmatpush1.bf16.msra.mxu0 0
        %1058 = vmatprep.subr.bf16.mxu0 0
        %1059 = vmatpush1.bf16.msra.mxu0 0
        %1060 = vmatprep.subr.bf16.mxu0 0
        %1061 = vmatpush1.bf16.msra.mxu0 0
        %1062 = vmatprep.subr.bf16.mxu0 0
        %1063 = vmatpush1.bf16.msra.mxu0 0
        %1064 = vmatprep.subr.bf16.mxu0 0
        %1065 = vmatpush1.bf16.msra.mxu0 0
        %1066 = vmatprep.subr.bf16.mxu0 0
        %1067 = vmatpush1.bf16.msra.mxu0 0
        %1068 = vmatprep.subr.bf16.mxu0 0
        %1069 = vmatpush1.bf16.msra.mxu0 0
        %1070 = vmatprep.subr.bf16.mxu0 0
        %1071 = vmatpush1.bf16.msra.mxu0 0
        %1072 = vmatprep.mubr.bf16.mxu0 0
        %1073 = vmatmul.mubr.bf16.gmra.mrb[0].mxu0 %v1035
        %v1074 = vpop.f32.mrb[0].mxu0
        %v1075 = vadd.f32 0.0, %v1074
        %v1076 = vpop.f32.mrb[0].mxu0
        %v1077 = vpop.f32.mrb[0].mxu0
        %v1078 = vadd.f32 0.0, %v1077
        %v1079 = vpop.f32.mrb[0].mxu0
        %1080 = vdwg.mxu0
        %v1081 = vsel %vm826, %v1075, -inf
        %1082 = vmax.xlane.f32.xlu0 %v1081
        %v1083 = vpop.xlane.xlu0 %1082
        %v1084 = vsel %vm826, %v1078, -inf
        %1085 = vmax.xlane.f32.xlu0 %v1084
        %v1086 = vpop.xlane.xlu0 %1085
        %v1087 = vsub.f32 %v1075, %v1083
        %v1088 = vsub.f32 %v1078, %v1086
        %v1089 = vmul.f32 %v1087, 1.442695
        %v1090 = vpow.pop %v1089
        %v1091 = vmul.f32 %v1088, 1.442695
        %v1092 = vpow.pop %v1091
        %v1093 = vsel %vm826, %v1090, 0.0
        %1094 = vadd.xlane.f32.xlu0 %v1093
        %v1095 = vpop.xlane.xlu0 %1094
        %v1096 = vsel %vm826, %v1092, 0.0
        %1097 = vadd.xlane.f32.xlu0 %v1096
        %v1098 = vpop.xlane.xlu0 %1097
        %v1099 = vrcp.pop %v1095
        %v1100 = vrcp.pop %v1098
        %v1101 = vmul.f32 %v1090, %v1099
        %v1102 = vmul.f32 %v1092, %v1100
        %v1103 = vpack.c.bf16 %v1102, %v1101
        %1104 = vrot.lane.b32.xlu0 %v776, 48
        %v1105 = vpop.permute.xlu0 %1104
        %v1108 = vsel %vm826, %v1103, 0
        %1110 = vmatprep.subr.bf16.mxu0 0
        %1111 = vmatpush1.bf16.msra.mxu0 %v1105
        %1112 = vmatprep.subr.bf16.mxu0 0
        %1113 = vmatpush1.bf16.msra.mxu0 0
        %1114 = vmatprep.subr.bf16.mxu0 0
        %1115 = vmatpush1.bf16.msra.mxu0 0
        %1116 = vmatprep.subr.bf16.mxu0 0
        %1117 = vmatpush1.bf16.msra.mxu0 0
        %1118 = vmatprep.subr.bf16.mxu0 0
        %1119 = vmatpush1.bf16.msra.mxu0 0
        %1120 = vmatprep.subr.bf16.mxu0 0
        %1121 = vmatpush1.bf16.msra.mxu0 0
        %1122 = vmatprep.subr.bf16.mxu0 0
        %1123 = vmatpush1.bf16.msra.mxu0 0
        %1124 = vmatprep.subr.bf16.mxu0 0
        %1125 = vmatpush1.bf16.msra.mxu0 0
        %1126 = vmatprep.subr.bf16.mxu0 0
        %1127 = vmatpush1.bf16.msra.mxu0 0
        %1128 = vmatprep.subr.bf16.mxu0 0
        %1129 = vmatpush1.bf16.msra.mxu0 0
        %1130 = vmatprep.subr.bf16.mxu0 0
        %1131 = vmatpush1.bf16.msra.mxu0 0
        %1132 = vmatprep.subr.bf16.mxu0 0
        %1133 = vmatpush1.bf16.msra.mxu0 0
        %1134 = vmatprep.subr.bf16.mxu0 0
        %1135 = vmatpush1.bf16.msra.mxu0 0
        %1136 = vmatprep.subr.bf16.mxu0 0
        %1137 = vmatpush1.bf16.msra.mxu0 0
        %1138 = vmatprep.subr.bf16.mxu0 0
        %1139 = vmatpush1.bf16.msra.mxu0 0
        %1140 = vmatprep.subr.bf16.mxu0 0
        %1141 = vmatpush1.bf16.msra.mxu0 0
        %1142 = vmatprep.mubr.bf16.mxu0 0
        %1143 = vmatmul.mubr.bf16.gmra.mrb[0].mxu0 %v1108
        %v1144 = vpop.f32.mrb[0].mxu0
        %v1145 = vadd.f32 0.0, %v1144
        %v1146 = vpop.f32.mrb[0].mxu0
        %v1147 = vpop.f32.mrb[0].mxu0
        %v1148 = vadd.f32 0.0, %v1147
        %v1149 = vpop.f32.mrb[0].mxu0
        %1150 = vdwg.mxu0
        %1153 = vrot.lane.b32.xlu0 %v1145, 16
        %v1154 = vpop.permute.xlu0 %1153
        %1155 = vrot.lane.b32.xlu0 %v1148, 16
        %v1156 = vpop.permute.xlu0 %1155
        %vm1159 = vcmask 195712
        %1160 = vst.msk [vmem:[#allocation2] sm:$0xff] %vm1159, %v1154
        %1161 = vst.msk [vmem:[#allocation2 + $0x8] sm:$0xff] %vm1159, %v1156
        %1162 = vrot.lane.b32.xlu0 %v776, 104
        %v1163 = vpop.permute.xlu0 %1162
        %v1165 = vrot.slane %v775, 4
        %v1167 = vsel %vm777, %v1163, 0
        %v1170 = vsel %vm781, %v1165, 0
        %1172 = vmatprep.subr.bf16.mxu0 0
        %1173 = vmatpush1.bf16.msra.mxu0 %v1170
        %1174 = vmatprep.subr.bf16.mxu0 0
        %1175 = vmatpush1.bf16.msra.mxu0 0
        %1176 = vmatprep.subr.bf16.mxu0 0
        %1177 = vmatpush1.bf16.msra.mxu0 0
        %1178 = vmatprep.subr.bf16.mxu0 0
        %1179 = vmatpush1.bf16.msra.mxu0 0
        %1180 = vmatprep.subr.bf16.mxu0 0
        %1181 = vmatpush1.bf16.msra.mxu0 0
        %1182 = vmatprep.subr.bf16.mxu0 0
        %1183 = vmatpush1.bf16.msra.mxu0 0
        %1184 = vmatprep.subr.bf16.mxu0 0
        %1185 = vmatpush1.bf16.msra.mxu0 0
        %1186 = vmatprep.subr.bf16.mxu0 0
        %1187 = vmatpush1.bf16.msra.mxu0 0
        %1188 = vmatprep.subr.bf16.mxu0 0
        %1189 = vmatpush1.bf16.msra.mxu0 0
        %1190 = vmatprep.subr.bf16.mxu0 0
        %1191 = vmatpush1.bf16.msra.mxu0 0
        %1192 = vmatprep.subr.bf16.mxu0 0
        %1193 = vmatpush1.bf16.msra.mxu0 0
        %1194 = vmatprep.subr.bf16.mxu0 0
        %1195 = vmatpush1.bf16.msra.mxu0 0
        %1196 = vmatprep.subr.bf16.mxu0 0
        %1197 = vmatpush1.bf16.msra.mxu0 0
        %1198 = vmatprep.subr.bf16.mxu0 0
        %1199 = vmatpush1.bf16.msra.mxu0 0
        %1200 = vmatprep.subr.bf16.mxu0 0
        %1201 = vmatpush1.bf16.msra.mxu0 0
        %1202 = vmatprep.subr.bf16.mxu0 0
        %1203 = vmatpush1.bf16.msra.mxu0 0
        %1204 = vmatprep.mubr.bf16.mxu0 0
        %1205 = vmatmul.mubr.bf16.gmra.mrb[0].mxu0 %v1167
        %v1206 = vpop.f32.mrb[0].mxu0
        %v1207 = vadd.f32 0.0, %v1206
        %v1208 = vpop.f32.mrb[0].mxu0
        %v1209 = vpop.f32.mrb[0].mxu0
        %v1210 = vadd.f32 0.0, %v1209
        %v1211 = vpop.f32.mrb[0].mxu0
        %1212 = vdwg.mxu0
        %v1213 = vsel %vm826, %v1207, -inf
        %1214 = vmax.xlane.f32.xlu0 %v1213
        %v1215 = vpop.xlane.xlu0 %1214
        %v1216 = vsel %vm826, %v1210, -inf
        %1217 = vmax.xlane.f32.xlu0 %v1216
        %v1218 = vpop.xlane.xlu0 %1217
        %v1219 = vsub.f32 %v1207, %v1215
        %v1220 = vsub.f32 %v1210, %v1218
        %v1221 = vmul.f32 %v1219, 1.442695
        %v1222 = vpow.pop %v1221
        %v1223 = vmul.f32 %v1220, 1.442695
        %v1224 = vpow.pop %v1223
        %v1225 = vsel %vm826, %v1222, 0.0
        %1226 = vadd.xlane.f32.xlu0 %v1225
        %v1227 = vpop.xlane.xlu0 %1226
        %v1228 = vsel %vm826, %v1224, 0.0
        %1229 = vadd.xlane.f32.xlu0 %v1228
        %v1230 = vpop.xlane.xlu0 %1229
        %v1231 = vrcp.pop %v1227
        %v1232 = vrcp.pop %v1230
        %v1233 = vmul.f32 %v1222, %v1231
        %v1234 = vmul.f32 %v1224, %v1232
        %v1235 = vpack.c.bf16 %v1234, %v1233
        %1236 = vrot.lane.b32.xlu0 %v776, 40
        %v1237 = vpop.permute.xlu0 %1236
        %v1240 = vsel %vm826, %v1235, 0
        %1242 = vmatprep.subr.bf16.mxu0 0
        %1243 = vmatpush1.bf16.msra.mxu0 %v1237
        %1244 = vmatprep.subr.bf16.mxu0 0
        %1245 = vmatpush1.bf16.msra.mxu0 0
        %1246 = vmatprep.subr.bf16.mxu0 0
        %1247 = vmatpush1.bf16.msra.mxu0 0
        %1248 = vmatprep.subr.bf16.mxu0 0
        %1249 = vmatpush1.bf16.msra.mxu0 0
        %1250 = vmatprep.subr.bf16.mxu0 0
        %1251 = vmatpush1.bf16.msra.mxu0 0
        %1252 = vmatprep.subr.bf16.mxu0 0
        %1253 = vmatpush1.bf16.msra.mxu0 0
        %1254 = vmatprep.subr.bf16.mxu0 0
        %1255 = vmatpush1.bf16.msra.mxu0 0
        %1256 = vmatprep.subr.bf16.mxu0 0
        %1257 = vmatpush1.bf16.msra.mxu0 0
        %1258 = vmatprep.subr.bf16.mxu0 0
        %1259 = vmatpush1.bf16.msra.mxu0 0
        %1260 = vmatprep.subr.bf16.mxu0 0
        %1261 = vmatpush1.bf16.msra.mxu0 0
        %1262 = vmatprep.subr.bf16.mxu0 0
        %1263 = vmatpush1.bf16.msra.mxu0 0
        %1264 = vmatprep.subr.bf16.mxu0 0
        %1265 = vmatpush1.bf16.msra.mxu0 0
        %1266 = vmatprep.subr.bf16.mxu0 0
        %1267 = vmatpush1.bf16.msra.mxu0 0
        %1268 = vmatprep.subr.bf16.mxu0 0
        %1269 = vmatpush1.bf16.msra.mxu0 0
        %1270 = vmatprep.subr.bf16.mxu0 0
        %1271 = vmatpush1.bf16.msra.mxu0 0
        %1272 = vmatprep.subr.bf16.mxu0 0
        %1273 = vmatpush1.bf16.msra.mxu0 0
        %1274 = vmatprep.mubr.bf16.mxu0 0
        %1275 = vmatmul.mubr.bf16.gmra.mrb[0].mxu0 %v1240
        %v1276 = vpop.f32.mrb[0].mxu0
        %v1277 = vadd.f32 0.0, %v1276
        %v1278 = vpop.f32.mrb[0].mxu0
        %v1279 = vpop.f32.mrb[0].mxu0
        %v1280 = vadd.f32 0.0, %v1279
        %v1281 = vpop.f32.mrb[0].mxu0
        %1282 = vdwg.mxu0
        %1285 = vrot.lane.b32.xlu0 %v1277, 24
        %v1286 = vpop.permute.xlu0 %1285
        %1287 = vrot.lane.b32.xlu0 %v1280, 24
        %v1288 = vpop.permute.xlu0 %1287
        %vm1291 = vcmask 261312
        %1292 = vst.msk [vmem:[#allocation2] sm:$0xff] %vm1291, %v1286
        %1293 = vst.msk [vmem:[#allocation2 + $0x8] sm:$0xff] %vm1291, %v1288
        %v1294 = vld [vmem:[#allocation2] sm:$0xff]
        %v1295 = vld [vmem:[#allocation2 + $0x8] sm:$0xff]
        %v1296 = vpack.c.bf16 %v1295, %v1294
        %v1297 = vld [vmem:[#allocation12] sm:$0xf]
        %v1298 = vld [vmem:[#allocation12 + $0x4] sm:$0xf]
        %v1299 = vld [vmem:[#allocation12 + $0x8] sm:$0xf]
        %v1300 = vld [vmem:[#allocation12 + $0xc] sm:$0xf]
        %v1301 = vld [vmem:[#allocation14] sm:$0x1]
        %v1303 = vlaneseq
        %v1304 = vshrl.u32 %v1303, 7
        %v1305 = vsub.s32 0, %v1304
        %v1306 = vrot.slane %v1301, %v1305
        %v1312 = vunpack.c.l.b16 %v1297
        %v1313 = vunpack.c.l.b16 %v1298
        %v1314 = vunpack.c.l.b16 %v1299
        %v1315 = vunpack.c.l.b16 %v1300
        %v1316 = vpack.c.b16 %v1313, %v1312
        %v1317 = vpack.c.b16 %v1315, %v1314
        %v1321 = vsel %vm620, %v1296, 0
        %1323 = vmatprep.subr.bf16.mxu0 0
        %1324 = vmatpush1.bf16.msra.mxu0 %v1316
        %1325 = vmatprep.subr.bf16.mxu0 0
        %1326 = vmatpush1.bf16.msra.mxu0 %v1317
        %1327 = vmatprep.subr.bf16.mxu0 0
        %1328 = vmatpush1.bf16.msra.mxu0 0
        %1329 = vmatprep.subr.bf16.mxu0 0
        %1330 = vmatpush1.bf16.msra.mxu0 0
        %1331 = vmatprep.subr.bf16.mxu0 0
        %1332 = vmatpush1.bf16.msra.mxu0 0
        %1333 = vmatprep.subr.bf16.mxu0 0
        %1334 = vmatpush1.bf16.msra.mxu0 0
        %1335 = vmatprep.subr.bf16.mxu0 0
        %1336 = vmatpush1.bf16.msra.mxu0 0
        %1337 = vmatprep.subr.bf16.mxu0 0
        %1338 = vmatpush1.bf16.msra.mxu0 0
        %1339 = vmatprep.subr.bf16.mxu0 0
        %1340 = vmatpush1.bf16.msra.mxu0 0
        %1341 = vmatprep.subr.bf16.mxu0 0
        %1342 = vmatpush1.bf16.msra.mxu0 0
        %1343 = vmatprep.subr.bf16.mxu0 0
        %1344 = vmatpush1.bf16.msra.mxu0 0
        %1345 = vmatprep.subr.bf16.mxu0 0
        %1346 = vmatpush1.bf16.msra.mxu0 0
        %1347 = vmatprep.subr.bf16.mxu0 0
        %1348 = vmatpush1.bf16.msra.mxu0 0
        %1349 = vmatprep.subr.bf16.mxu0 0
        %1350 = vmatpush1.bf16.msra.mxu0 0
        %1351 = vmatprep.subr.bf16.mxu0 0
        %1352 = vmatpush1.bf16.msra.mxu0 0
        %1353 = vmatprep.subr.bf16.mxu0 0
        %1354 = vmatpush1.bf16.msra.mxu0 0
        %1355 = vmatprep.mubr.bf16.mxu0 0
        %1356 = vmatmul.mubr.bf16.gmra.mrb[0].mxu0 %v1321
        %v1357 = vpop.f32.mrb[0].mxu0
        %v1358 = vadd.f32 %v1306, %v1357
        %v1359 = vpop.f32.mrb[0].mxu0
        %v1360 = vpop.f32.mrb[0].mxu0
        %v1361 = vadd.f32 %v1306, %v1360
        %v1362 = vpop.f32.mrb[0].mxu0
        %1363 = vdwg.mxu0
        %v1364 = vadd.f32 %v618, %v1358
        %v1365 = vadd.f32 %v619, %v1361
        %v1366 = vsel %vm620, %v1364, 0.0
        %1367 = vadd.xlane.f32.xlu0 %v1366
        %v1368 = vpop.xlane.xlu0 %1367
        %v1369 = vsel %vm620, %v1365, 0.0
        %1370 = vadd.xlane.f32.xlu0 %v1369
        %v1371 = vpop.xlane.xlu0 %1370
        %v1372 = vmul.f32 %v1368, %v627
        %v1373 = vmul.f32 %v1371, %v627
        %v1374 = vsub.f32 %v1364, %v1372
        %v1375 = vsub.f32 %v1365, %v1373
        %v1376 = vmul.f32 %v1374, %v1374
        %v1377 = vmul.f32 %v1375, %v1375
        %v1378 = vsel %vm620, %v1376, 0.0
        %1379 = vadd.xlane.f32.xlu0 %v1378
        %v1380 = vpop.xlane.xlu0 %1379
        %v1381 = vsel %vm620, %v1377, 0.0
        %1382 = vadd.xlane.f32.xlu0 %v1381
        %v1383 = vpop.xlane.xlu0 %1382
        %v1384 = vmul.f32 %v1380, %v627
        %v1385 = vmul.f32 %v1383, %v627
        %v1386 = vadd.f32 %v1384, 1e-05
        %v1387 = vadd.f32 %v1385, 1e-05
        %v1388 = vrsqrt.pop %v1386
        %v1389 = vrsqrt.pop %v1387
        %v1390 = vmul.f32 %v1374, %v1388
        %v1391 = vmul.f32 %v1375, %v1389
        %v1392 = vld [vmem:[#allocation15] sm:$0x1]
        %v1394 = vlaneseq
        %v1395 = vshrl.u32 %v1394, 7
        %v1396 = vsub.s32 0, %v1395
        %v1397 = vrot.slane %v1392, %v1396
        %v1399 = vmul.f32 %v1390, %v1397
        %v1400 = vmul.f32 %v1391, %v1397
        %v1401 = vld [vmem:[#allocation17] sm:$0x1]
        %v1403 = vlaneseq
        %v1404 = vshrl.u32 %v1403, 7
        %v1405 = vsub.s32 0, %v1404
        %v1406 = vrot.slane %v1401, %v1405
        %v1408 = vadd.f32 %v1399, %v1406
        %v1409 = vadd.f32 %v1400, %v1406
        %v1410 = vpack.c.bf16 %v1409, %v1408
        %v1411 = vld [vmem:[#allocation18] sm:$0xf]
        %v1412 = vld [vmem:[#allocation18 + $0x4] sm:$0xf]
        %v1413 = vld [vmem:[#allocation18 + $0x8] sm:$0xf]
        %v1414 = vld [vmem:[#allocation18 + $0xc] sm:$0xf]
        %v1415 = vld [vmem:[#allocation20] sm:$0x1]
        %v1417 = vlaneseq
        %v1418 = vshrl.u32 %v1417, 7
        %v1419 = vsub.s32 0, %v1418
        %v1420 = vrot.slane %v1415, %v1419
        %v1426 = vunpack.c.l.b16 %v1411
        %v1427 = vunpack.c.l.b16 %v1412
        %v1428 = vunpack.c.l.b16 %v1413
        %v1429 = vunpack.c.l.b16 %v1414
        %v1430 = vpack.c.b16 %v1427, %v1426
        %v1431 = vpack.c.b16 %v1429, %v1428
        %v1435 = vsel %vm620, %v1410, 0
        %1437 = vmatprep.subr.bf16.mxu0 0
        %1438 = vmatpush1.bf16.msra.mxu0 %v1430
        %1439 = vmatprep.subr.bf16.mxu0 0
        %1440 = vmatpush1.bf16.msra.mxu0 %v1431
        %1441 = vmatprep.subr.bf16.mxu0 0
        %1442 = vmatpush1.bf16.msra.mxu0 0
        %1443 = vmatprep.subr.bf16.mxu0 0
        %1444 = vmatpush1.bf16.msra.mxu0 0
        %1445 = vmatprep.subr.bf16.mxu0 0
        %1446 = vmatpush1.bf16.msra.mxu0 0
        %1447 = vmatprep.subr.bf16.mxu0 0
        %1448 = vmatpush1.bf16.msra.mxu0 0
        %1449 = vmatprep.subr.bf16.mxu0 0
        %1450 = vmatpush1.bf16.msra.mxu0 0
        %1451 = vmatprep.subr.bf16.mxu0 0
        %1452 = vmatpush1.bf16.msra.mxu0 0
        %1453 = vmatprep.subr.bf16.mxu0 0
        %1454 = vmatpush1.bf16.msra.mxu0 0
        %1455 = vmatprep.subr.bf16.mxu0 0
        %1456 = vmatpush1.bf16.msra.mxu0 0
        %1457 = vmatprep.subr.bf16.mxu0 0
        %1458 = vmatpush1.bf16.msra.mxu0 0
        %1459 = vmatprep.subr.bf16.mxu0 0
        %1460 = vmatpush1.bf16.msra.mxu0 0
        %1461 = vmatprep.subr.bf16.mxu0 0
        %1462 = vmatpush1.bf16.msra.mxu0 0
        %1463 = vmatprep.subr.bf16.mxu0 0
        %1464 = vmatpush1.bf16.msra.mxu0 0
        %1465 = vmatprep.subr.bf16.mxu0 0
        %1466 = vmatpush1.bf16.msra.mxu0 0
        %1467 = vmatprep.subr.bf16.mxu0 0
        %1468 = vmatpush1.bf16.msra.mxu0 0
        %1469 = vmatprep.mubr.bf16.mxu0 0
        %1470 = vmatmul.mubr.bf16.gmra.mrb[0].mxu0 %v1435
        %v1471 = vpop.f32.mrb[0].mxu0
        %v1472 = vadd.f32 %v1420, %v1471
        %v1473 = vpop.f32.mrb[0].mxu0
        %v1474 = vpop.f32.mrb[0].mxu0
        %v1475 = vadd.f32 %v1420, %v1474
        %v1476 = vpop.f32.mrb[0].mxu0
        %1477 = vdwg.mxu0
        %v1478 = vmul.f32 %v1472, 0.5
        %v1479 = vmul.f32 %v1475, 0.5
        %v1480 = vmul.f32 %v1472, 0.70710677
        %v1481 = vmul.f32 %v1475, 0.70710677
        %v1482 = verf.f32.pop %v1480
        %v1483 = verf.f32.pop %v1481
        %v1484 = vadd.f32 %v1482, 1.0
        %v1485 = vadd.f32 %v1483, 1.0
        %v1486 = vmul.f32 %v1478, %v1484
        %v1487 = vmul.f32 %v1479, %v1485
        %v1488 = vpack.c.bf16 %v1487, %v1486
        %v1489 = vld [vmem:[#allocation21] sm:$0xf]
        %v1490 = vld [vmem:[#allocation21 + $0x4] sm:$0xf]
        %v1491 = vld [vmem:[#allocation21 + $0x8] sm:$0xf]
        %v1492 = vld [vmem:[#allocation21 + $0xc] sm:$0xf]
        %v1493 = vld [vmem:[#allocation21 + $0x10] sm:$0xf]
        %v1494 = vld [vmem:[#allocation21 + $0x14] sm:$0xf]
        %v1495 = vld [vmem:[#allocation21 + $0x18] sm:$0xf]
        %v1496 = vld [vmem:[#allocation21 + $0x1c] sm:$0xf]
        %v1497 = vld [vmem:[#allocation21 + $0x20] sm:$0xf]
        %v1498 = vld [vmem:[#allocation21 + $0x24] sm:$0xf]
        %v1499 = vld [vmem:[#allocation21 + $0x28] sm:$0xf]
        %v1500 = vld [vmem:[#allocation21 + $0x2c] sm:$0xf]
        %v1501 = vld [vmem:[#allocation21 + $0x30] sm:$0xf]
        %v1502 = vld [vmem:[#allocation21 + $0x34] sm:$0xf]
        %v1503 = vld [vmem:[#allocation21 + $0x38] sm:$0xf]
        %v1504 = vld [vmem:[#allocation21 + $0x3c] sm:$0xf]
        %v1505 = vld [vmem:[#allocation23] sm:$0x1]
        %v1507 = vlaneseq
        %v1508 = vshrl.u32 %v1507, 7
        %v1509 = vsub.s32 0, %v1508
        %v1510 = vrot.slane %v1505, %v1509
        %v1528 = vunpack.c.l.b16 %v1489
        %v1529 = vunpack.c.l.b16 %v1490
        %v1530 = vunpack.c.l.b16 %v1491
        %v1531 = vunpack.c.l.b16 %v1492
        %v1532 = vunpack.c.l.b16 %v1493
        %v1533 = vunpack.c.l.b16 %v1494
        %v1534 = vunpack.c.l.b16 %v1495
        %v1535 = vunpack.c.l.b16 %v1496
        %v1536 = vunpack.c.l.b16 %v1497
        %v1537 = vunpack.c.l.b16 %v1498
        %v1538 = vunpack.c.l.b16 %v1499
        %v1539 = vunpack.c.l.b16 %v1500
        %v1540 = vunpack.c.l.b16 %v1501
        %v1541 = vunpack.c.l.b16 %v1502
        %v1542 = vunpack.c.l.b16 %v1503
        %v1543 = vunpack.c.l.b16 %v1504
        %v1544 = vpack.c.b16 %v1529, %v1528
        %v1545 = vpack.c.b16 %v1531, %v1530
        %v1546 = vpack.c.b16 %v1533, %v1532
        %v1547 = vpack.c.b16 %v1535, %v1534
        %v1548 = vpack.c.b16 %v1537, %v1536
        %v1549 = vpack.c.b16 %v1539, %v1538
        %v1550 = vpack.c.b16 %v1541, %v1540
        %v1551 = vpack.c.b16 %v1543, %v1542
        %1560 = vmatprep.subr.bf16.mxu0 0
        %1561 = vmatpush1.bf16.msra.mxu0 %v1544
        %1562 = vmatprep.subr.bf16.mxu0 0
        %1563 = vmatpush1.bf16.msra.mxu0 %v1545
        %1564 = vmatprep.subr.bf16.mxu0 0
        %1565 = vmatpush1.bf16.msra.mxu0 %v1546
        %1566 = vmatprep.subr.bf16.mxu0 0
        %1567 = vmatpush1.bf16.msra.mxu0 %v1547
        %1568 = vmatprep.subr.bf16.mxu0 0
        %1569 = vmatpush1.bf16.msra.mxu0 %v1548
        %1570 = vmatprep.subr.bf16.mxu0 0
        %1571 = vmatpush1.bf16.msra.mxu0 %v1549
        %1572 = vmatprep.subr.bf16.mxu0 0
        %1573 = vmatpush1.bf16.msra.mxu0 %v1550
        %1574 = vmatprep.subr.bf16.mxu0 0
        %1575 = vmatpush1.bf16.msra.mxu0 %v1551
        %1576 = vmatprep.subr.bf16.mxu0 0
        %1577 = vmatpush1.bf16.msra.mxu0 0
        %1578 = vmatprep.subr.bf16.mxu0 0
        %1579 = vmatpush1.bf16.msra.mxu0 0
        %1580 = vmatprep.subr.bf16.mxu0 0
        %1581 = vmatpush1.bf16.msra.mxu0 0
        %1582 = vmatprep.subr.bf16.mxu0 0
        %1583 = vmatpush1.bf16.msra.mxu0 0
        %1584 = vmatprep.subr.bf16.mxu0 0
        %1585 = vmatpush1.bf16.msra.mxu0 0
        %1586 = vmatprep.subr.bf16.mxu0 0
        %1587 = vmatpush1.bf16.msra.mxu0 0
        %1588 = vmatprep.subr.bf16.mxu0 0
        %1589 = vmatpush1.bf16.msra.mxu0 0
        %1590 = vmatprep.subr.bf16.mxu0 0
        %1591 = vmatpush1.bf16.msra.mxu0 0
        %1592 = vmatprep.mubr.bf16.mxu0 0
        %1593 = vmatmul.mubr.bf16.gmra.mrb[0].mxu0 %v1488
        %v1594 = vpop.f32.mrb[0].mxu0
        %v1595 = vadd.f32 %v1510, %v1594
        %v1596 = vpop.f32.mrb[0].mxu0
        %v1597 = vpop.f32.mrb[0].mxu0
        %v1598 = vadd.f32 %v1510, %v1597
        %v1599 = vpop.f32.mrb[0].mxu0
        %1600 = vdwg.mxu0
        %v1601 = vadd.f32 %v1364, %v1595
        %v1602 = vadd.f32 %v1365, %v1598
        %1603 = vst.msk [vmem:[%s616] sm:$0xff] %vm620, %v1601
        %1604 = vst.msk [vmem:[%s616 + $0x8] sm:$0xff] %vm620, %v1602
        %s1605 = sand.u32 %s322, 1
        %s1606 = scalar_lea.sflag [#allocation5], %s1605
        %s1607 = sand.u32 %s322, 1
        %s1608 = smul.addr %s1607, 16
        %s1609 = scalar_lea.vmem [#allocation24], %s1608
        // Predicated region
        $region125: #{forward.5} parent=71 // pred_check
          %p1610 = pneg %p332
        $region126: #{forward.5} parent=71 // pred_check_branch
          %1612 = sbr.rel (%p1610) target = $region128
        $region127: #{forward.5} parent=71 // pred_region
          %s1614 = ssub.s32 256, 256
          %1615 = vsyncadd %s1606, %s1614
          %s1616 = smul.addr %s36, 2
          %s1617 = smul.addr %s1616, 128
          %s1618 = scalar_lea.hbm %s13, %s1617
          %s1619 = sshll.u32 %s1609, 4
          %s1620 = int_to_ptr.vmem [resolvable:$true] %s1619
          %1625 = dma.vmem_to_hbm [thread:$0]  %s1620, 256, %s1618, %s1606, 128, 128, 8
        $region128: #{forward.5} parent=71 // pred_fallthru
          _
      $region72: #{forward.5} parent=5 // pred_fallthru
        _
      %p1626 = scmp.le.s32.totalorder 2, %s31
      // Predicated region
      $region129: #{forward.5} parent=5 // pred_check
        %p1627 = pneg %p1626
      $region130: #{forward.5} parent=5 // pred_check_branch
        %1629 = sbr.rel (%p1627) target = $region132
      $region131: #{forward.5} parent=5 // pred_region
        %s1630 = ssub.s32 %s31, 2
        // Predicated region
        $region133: #{forward.5} parent=131 // pred_check
          %p1631 = pneg %p338
        $region134: #{forward.5} parent=131 // pred_check_branch
          %1633 = sbr.rel (%p1631) target = $region136
        $region135: #{forward.5} parent=131 // pred_region
          %s1634 = sand.u32 %s323, 1
          %s1635 = scalar_lea.sflag [#allocation5], %s1634
          %s1636 = sand.u32 %s323, 1
          %s1637 = smul.addr %s1636, 16
          %s1638 = scalar_lea.vmem [#allocation24], %s1637
          %1639 = dma.done %s1635, 256
        $region136: #{forward.5} parent=131 // pred_fallthru
          _
      $region132: #{forward.5} parent=5 // pred_fallthru
        _
    $region6: #{forward.5} parent=1 // loop_footer
      %s35 = sadd.s32 1, %s31
    $region7: #{forward.5} parent=1 // loop_footer_branch
      %30 = sbr.rel target = $region3
    $region8: #{forward.5} parent=1 // loop_exit
      _
    %1640 = vsyncpa [#allocation4], 1
    %s1641 = scalar_lea.sflag [#allocation4], 1
    %1642 = vsyncpa %s1641, 1
    %1643 = vsyncpa [#allocation7], 1
    %1644 = vsyncpa [#allocation10], 1
    %1645 = vsyncpa [#allocation13], 1
    %1646 = vsyncpa [#allocation16], 1
    %1647 = vsyncpa [#allocation19], 1
    %1648 = vsyncpa [#allocation22], 1
    %1649 = vsyncpa [#allocation5], 1
    %s1650 = scalar_lea.sflag [#allocation5], 1
    %1651 = vsyncpa %s1650, 1

// kernel: forward.7
$region0: #{forward.7}
  #allocation0 [shape = 'u32[]', space=smem, size = 0x4, offset = 0x4, fixed_abs, tag = 'smem constant byte address 0x4 - core index']
  #allocation1 [shape = 'u32[144,128]{1,0:T(1,128)}', space=vmem, size = 0x12000, scoped, tag = 'internal scratch']
  %s0 = inlined_call_operand.hbm [shape: f32[2,16,32], index: 0, kind: input, shape index: {}]
  %s1 = inlined_call_operand.hbm [shape: f32[1,32], index: 1, kind: input, shape index: {}]
  %s2 = inlined_call_operand.hbm [shape: f32[1,32], index: 2, kind: input, shape index: {}]
  %s3 = inlined_call_operand.hbm [shape: bf16[32,192], index: 3, kind: input, shape index: {}]
  %s4 = inlined_call_operand.hbm [shape: f32[1,192], index: 4, kind: input, shape index: {}]
  %s5 = inlined_call_operand.hbm [shape: f32[2,16,192], index: 5, kind: input, shape index: {}]
  %s6 = inlined_call_operand.hbm [shape: f32[2,16,192], index: 6, kind: output, shape index: {0}]
  %s7 = inlined_call_operand.hbm [shape: f32[2,1,128], index: 7, kind: output, shape index: {1}]
  %8 = xla_tuple %s6, %s7
  %s9 = sld [smem:[#allocation0]]
  $region89: #{forward.7} parent=0
    _
  %s11 = ssub.s32 1, %s9
  %s12 = scalar_select 0, %s11, %s9
  $region1: #{forward.7} parent=0
    #allocation2 [shape = 'u8[16384]{0}', space=vmem, size = 0x4000, scoped, tag = 'input window, operand 0']
    #allocation3 [shape = 's32[2]{0}', space=sflag, size = 0x8, scoped, tag = 'scoped memory for forward.7']
    #allocation4 [shape = 's32[2]{0}', space=sflag, size = 0x8, scoped, tag = 'scoped memory for forward.7']
    #allocation5 [shape = 'u8[512]{0}', space=vmem, size = 0x400, scoped, tag = 'input window, operand 1, single buffered']
    #allocation6 [shape = 's32[1]{0}', space=sflag, size = 0x4, scoped, tag = 'scoped memory for forward.7']
    #allocation7 [shape = 'u8[512]{0}', space=vmem, size = 0x400, scoped, tag = 'input window, operand 2, single buffered']
    #allocation8 [shape = 'u8[16384]{0}', space=vmem, size = 0x4000, scoped, tag = 'input window, operand 3, single buffered']
    #allocation9 [shape = 's32[1]{0}', space=sflag, size = 0x4, scoped, tag = 'scoped memory for forward.7']
    #allocation10 [shape = 'u8[1024]{0}', space=vmem, size = 0x400, scoped, tag = 'input window, operand 4, single buffered']
    #allocation11 [shape = 'u8[32768]{0}', space=vmem, size = 0x8000, scoped, tag = 'input window, operand 5']
    #allocation12 [shape = 's32[2]{0}', space=sflag, size = 0x8, scoped, tag = 'scoped memory for forward.7']
    #allocation13 [shape = 'u8[32768]{0}', space=vmem, size = 0x8000, scoped, tag = 'output window, operand 0']
    #allocation14 [shape = 'u8[1024]{0}', space=vmem, size = 0x400, scoped, tag = 'output window, operand 1']
    #allocation15 [shape = 's32[2]{0}', space=sflag, size = 0x8, scoped, tag = 'scoped memory for forward.7']
    %13 = vsyncpa [#allocation3], 0
    %s14 = scalar_lea.sflag [#allocation3], 1
    %15 = vsyncpa %s14, 0
    %16 = vsyncpa [#allocation6], 0
    %17 = vsyncpa [#allocation9], 0
    %18 = vsyncpa [#allocation12], 0
    %s19 = scalar_lea.sflag [#allocation12], 1
    %20 = vsyncpa %s19, 0
    %21 = vsyncpa [#allocation4], 0
    %s22 = scalar_lea.sflag [#allocation4], 1
    %23 = vsyncpa %s22, 0
    %24 = vsyncpa [#allocation15], 0
    %s25 = scalar_lea.sflag [#allocation15], 1
    %26 = vsyncpa %s25, 0
    loop: start=0, step=1, limit=4
    $region2: #{forward.7} parent=1 // loop_pre_header
      _
    $region3: #{forward.7} parent=1 // loop_header
      %s28 = sphi 0, %s32
      %p29 = scmp.ge.s32.totalorder %s28, 4
      %s38 = sphi 0, %s40
      %s41 = sphi 0, %s38
      %s42 = sphi 0, %s41
      %s58 = sphi 0, %s42
      %s62 = sphi 0, %s62
      %s64 = sphi 0, %s62
      %s65 = sphi 0, %s64
      %s79 = sphi 0, %s65
      %s83 = sphi 0, %s83
      %s85 = sphi 0, %s83
      %s86 = sphi 0, %s85
      %s100 = sphi 0, %s86
      %s104 = sphi 0, %s104
      %s106 = sphi 0, %s104
      %s107 = sphi 0, %s106
      %s121 = sphi 0, %s107
      %s125 = sphi 0, %s125
      %s127 = sphi 0, %s125
      %s128 = sphi 0, %s127
      %s142 = sphi 0, %s128
      %s148 = sphi 0, %s150
      %s151 = sphi 0, %s148
      %s152 = sphi 0, %s151
      %s168 = sphi 0, %s152
      %s174 = sphi 0, %s176
      %s177 = sphi 0, %s174
      %s178 = sphi 0, %s177
      %s194 = sphi 0, %s178
      %s200 = sphi 0, %s202
      %s203 = sphi 0, %s200
      %s204 = sphi 0, %s203
      %s220 = sphi 0, %s204
    $region4: #{forward.7} parent=1 // loop_header_branch
      %31 = sbr.rel (%p29) target = $region8
    $region5: #{forward.7} parent=1 // loop_body
      %s33 = ssub.s32 %s28, 1
      %s34 = ssub.s32 %s28, 2
      %s35 = sadd.s32 %s28, 1
      %s36 = ssub.s32 %s28, %s35
      %p37 = scmp.eq.s32.totalorder %s36, 0
      %s39 = sadd.s32 %s38, 1
      %s40 = scalar_select %p37, %s38, %s39
      %p43 = pneg %p37
      %p44 = scmp.eq.s32.totalorder %s28, 1
      %p45 = por %p43, %p44
      %p46 = scmp.ne.s32.totalorder %s38, %s41
      %p47 = scmp.eq.s32.totalorder %s28, 0
      %p48 = por %p46, %p47
      %p49 = scmp.ne.s32.totalorder %s38, %s41
      %p50 = scmp.eq.s32.totalorder %s33, 1
      %p51 = por %p49, %p50
      %p52 = scmp.ne.s32.totalorder %s41, %s42
      %p53 = scmp.eq.s32.totalorder %s33, 0
      %p54 = por %p52, %p53
      %p55 = scmp.ne.s32.totalorder %s41, %s42
      %p56 = scmp.eq.s32.totalorder %s34, 1
      %p57 = por %p55, %p56
      %p59 = scmp.ne.s32.totalorder %s42, %s58
      %p60 = scmp.eq.s32.totalorder %s34, 0
      %p61 = por %p59, %p60
      %s63 = sadd.s32 %s62, 1
      %p66 = scmp.eq.s32.totalorder %s28, 1
      %p67 = scmp.ne.s32.totalorder %s62, %s64
      %p68 = scmp.eq.s32.totalorder %s28, 0
      %p69 = por %p67, %p68
      %p70 = scmp.ne.s32.totalorder %s62, %s64
      %p71 = scmp.eq.s32.totalorder %s33, 1
      %p72 = por %p70, %p71
      %p73 = scmp.ne.s32.totalorder %s64, %s65
      %p74 = scmp.eq.s32.totalorder %s33, 0
      %p75 = por %p73, %p74
      %p76 = scmp.ne.s32.totalorder %s64, %s65
      %p77 = scmp.eq.s32.totalorder %s34, 1
      %p78 = por %p76, %p77
      %p80 = scmp.ne.s32.totalorder %s65, %s79
      %p81 = scmp.eq.s32.totalorder %s34, 0
      %p82 = por %p80, %p81
      %s84 = sadd.s32 %s83, 1
      %p87 = scmp.eq.s32.totalorder %s28, 1
      %p88 = scmp.ne.s32.totalorder %s83, %s85
      %p89 = scmp.eq.s32.totalorder %s28, 0
      %p90 = por %p88, %p89
      %p91 = scmp.ne.s32.totalorder %s83, %s85
      %p92 = scmp.eq.s32.totalorder %s33, 1
      %p93 = por %p91, %p92
      %p94 = scmp.ne.s32.totalorder %s85, %s86
      %p95 = scmp.eq.s32.totalorder %s33, 0
      %p96 = por %p94, %p95
      %p97 = scmp.ne.s32.totalorder %s85, %s86
      %p98 = scmp.eq.s32.totalorder %s34, 1
      %p99 = por %p97, %p98
      %p101 = scmp.ne.s32.totalorder %s86, %s100
      %p102 = scmp.eq.s32.totalorder %s34, 0
      %p103 = por %p101, %p102
      %s105 = sadd.s32 %s104, 1
      %p108 = scmp.eq.s32.totalorder %s28, 1
      %p109 = scmp.ne.s32.totalorder %s104, %s106
      %p110 = scmp.eq.s32.totalorder %s28, 0
      %p111 = por %p109, %p110
      %p112 = scmp.ne.s32.totalorder %s104, %s106
      %p113 = scmp.eq.s32.totalorder %s33, 1
      %p114 = por %p112, %p113
      %p115 = scmp.ne.s32.totalorder %s106, %s107
      %p116 = scmp.eq.s32.totalorder %s33, 0
      %p117 = por %p115, %p116
      %p118 = scmp.ne.s32.totalorder %s106, %s107
      %p119 = scmp.eq.s32.totalorder %s34, 1
      %p120 = por %p118, %p119
      %p122 = scmp.ne.s32.totalorder %s107, %s121
      %p123 = scmp.eq.s32.totalorder %s34, 0
      %p124 = por %p122, %p123
      %s126 = sadd.s32 %s125, 1
      %p129 = scmp.eq.s32.totalorder %s28, 1
      %p130 = scmp.ne.s32.totalorder %s125, %s127
      %p131 = scmp.eq.s32.totalorder %s28, 0
      %p132 = por %p130, %p131
      %p133 = scmp.ne.s32.totalorder %s125, %s127
      %p134 = scmp.eq.s32.totalorder %s33, 1
      %p135 = por %p133, %p134
      %p136 = scmp.ne.s32.totalorder %s127, %s128
      %p137 = scmp.eq.s32.totalorder %s33, 0
      %p138 = por %p136, %p137
      %p139 = scmp.ne.s32.totalorder %s127, %s128
      %p140 = scmp.eq.s32.totalorder %s34, 1
      %p141 = por %p139, %p140
      %p143 = scmp.ne.s32.totalorder %s128, %s142
      %p144 = scmp.eq.s32.totalorder %s34, 0
      %p145 = por %p143, %p144
      %s146 = ssub.s32 %s28, %s35
      %p147 = scmp.eq.s32.totalorder %s146, 0
      %s149 = sadd.s32 %s148, 1
      %s150 = scalar_select %p147, %s148, %s149
      %p153 = pneg %p147
      %p154 = scmp.eq.s32.totalorder %s28, 1
      %p155 = por %p153, %p154
      %p156 = scmp.ne.s32.totalorder %s148, %s151
      %p157 = scmp.eq.s32.totalorder %s28, 0
      %p158 = por %p156, %p157
      %p159 = scmp.ne.s32.totalorder %s148, %s151
      %p160 = scmp.eq.s32.totalorder %s33, 1
      %p161 = por %p159, %p160
      %p162 = scmp.ne.s32.totalorder %s151, %s152
      %p163 = scmp.eq.s32.totalorder %s33, 0
      %p164 = por %p162, %p163
      %p165 = scmp.ne.s32.totalorder %s151, %s152
      %p166 = scmp.eq.s32.totalorder %s34, 1
      %p167 = por %p165, %p166
      %p169 = scmp.ne.s32.totalorder %s152, %s168
      %p170 = scmp.eq.s32.totalorder %s34, 0
      %p171 = por %p169, %p170
      %s172 = ssub.s32 %s28, %s35
      %p173 = scmp.eq.s32.totalorder %s172, 0
      %s175 = sadd.s32 %s174, 1
      %s176 = scalar_select %p173, %s174, %s175
      %p179 = pneg %p173
      %p180 = scmp.eq.s32.totalorder %s28, 1
      %p181 = por %p179, %p180
      %p182 = scmp.ne.s32.totalorder %s174, %s177
      %p183 = scmp.eq.s32.totalorder %s28, 0
      %p184 = por %p182, %p183
      %p185 = scmp.ne.s32.totalorder %s174, %s177
      %p186 = scmp.eq.s32.totalorder %s33, 1
      %p187 = por %p185, %p186
      %p188 = scmp.ne.s32.totalorder %s177, %s178
      %p189 = scmp.eq.s32.totalorder %s33, 0
      %p190 = por %p188, %p189
      %p191 = scmp.ne.s32.totalorder %s177, %s178
      %p192 = scmp.eq.s32.totalorder %s34, 1
      %p193 = por %p191, %p192
      %p195 = scmp.ne.s32.totalorder %s178, %s194
      %p196 = scmp.eq.s32.totalorder %s34, 0
      %p197 = por %p195, %p196
      %s198 = ssub.s32 %s28, %s35
      %p199 = scmp.eq.s32.totalorder %s198, 0
      %s201 = sadd.s32 %s200, 1
      %s202 = scalar_select %p199, %s200, %s201
      %p205 = pneg %p199
      %p206 = scmp.eq.s32.totalorder %s28, 1
      %p207 = por %p205, %p206
      %p208 = scmp.ne.s32.totalorder %s200, %s203
      %p209 = scmp.eq.s32.totalorder %s28, 0
      %p210 = por %p208, %p209
      %p211 = scmp.ne.s32.totalorder %s200, %s203
      %p212 = scmp.eq.s32.totalorder %s33, 1
      %p213 = por %p211, %p212
      %p214 = scmp.ne.s32.totalorder %s203, %s204
      %p215 = scmp.eq.s32.totalorder %s33, 0
      %p216 = por %p214, %p215
      %p217 = scmp.ne.s32.totalorder %s203, %s204
      %p218 = scmp.eq.s32.totalorder %s34, 1
      %p219 = por %p217, %p218
      %p221 = scmp.ne.s32.totalorder %s204, %s220
      %p222 = scmp.eq.s32.totalorder %s34, 0
      %p223 = por %p221, %p222
      %p224 = scmp.le.s32.totalorder 1, %s28
      %p225 = scmp.lt.s32.totalorder %s28, 3
      %p226 = pnand %p224, %p225
      %p227 = pneg %p226
      // Predicated region
      $region9: #{forward.7} parent=5 // pred_check
        _
      $region10: #{forward.7} parent=5 // pred_check_branch
        %229 = sbr.rel (%p226) target = $region12
      $region11: #{forward.7} parent=5 // pred_region
        %s230 = ssub.s32 %s28, 1
        // Predicated region
        $region13: #{forward.7} parent=11 // pred_check
          %p231 = pneg %p75
        $region14: #{forward.7} parent=11 // pred_check_branch
          %233 = sbr.rel (%p231) target = $region16
        $region15: #{forward.7} parent=11 // pred_region
          %s235 = ssub.s32 16, 16
          %236 = vsyncadd [#allocation6], %s235
          %s238 = sshll.u32 [#allocation5], 4
          %s239 = int_to_ptr.vmem [resolvable:$true] %s238
          %241 = dma.hbm_to_vmem [thread:$0]  %s1, 16, %s239, [#allocation6]
        $region16: #{forward.7} parent=11 // pred_fallthru
          _
        // Predicated region
        $region17: #{forward.7} parent=11 // pred_check
          %p242 = pneg %p96
        $region18: #{forward.7} parent=11 // pred_check_branch
          %244 = sbr.rel (%p242) target = $region20
        $region19: #{forward.7} parent=11 // pred_region
          %s246 = ssub.s32 16, 16
          %247 = vsyncadd [#allocation6], %s246
          %s249 = sshll.u32 [#allocation7], 4
          %s250 = int_to_ptr.vmem [resolvable:$true] %s249
          %252 = dma.hbm_to_vmem [thread:$0]  %s2, 16, %s250, [#allocation6]
        $region20: #{forward.7} parent=11 // pred_fallthru
          _
        // Predicated region
        $region21: #{forward.7} parent=11 // pred_check
          %p253 = pneg %p117
        $region22: #{forward.7} parent=11 // pred_check_branch
          %255 = sbr.rel (%p253) target = $region24
        $region23: #{forward.7} parent=11 // pred_region
          %s257 = ssub.s32 512, 512
          %258 = vsyncadd [#allocation9], %s257
          %s259 = sshll.u32 [#allocation8], 4
          %s260 = int_to_ptr.vmem [resolvable:$true] %s259
          %265 = dma.hbm_to_vmem [thread:$0]  %s3, 512, %s260, [#allocation9], 128, 128, 8
        $region24: #{forward.7} parent=11 // pred_fallthru
          _
        // Predicated region
        $region25: #{forward.7} parent=11 // pred_check
          %p266 = pneg %p138
        $region26: #{forward.7} parent=11 // pred_check_branch
          %268 = sbr.rel (%p266) target = $region28
        $region27: #{forward.7} parent=11 // pred_region
          %s270 = ssub.s32 32, 32
          %271 = vsyncadd [#allocation9], %s270
          %s273 = sshll.u32 [#allocation10], 4
          %s274 = int_to_ptr.vmem [resolvable:$true] %s273
          %276 = dma.hbm_to_vmem [thread:$0]  %s4, 32, %s274, [#allocation9]
        $region28: #{forward.7} parent=11 // pred_fallthru
          _
      $region12: #{forward.7} parent=5 // pred_fallthru
        _
      %p277 = scmp.lt.s32.totalorder %s28, 2
      // Predicated region
      $region29: #{forward.7} parent=5 // pred_check
        %p278 = pneg %p277
      $region30: #{forward.7} parent=5 // pred_check_branch
        %280 = sbr.rel (%p278) target = $region32
      $region31: #{forward.7} parent=5 // pred_region
        // Predicated region
        $region33: #{forward.7} parent=31 // pred_check
          %p281 = pneg %p48
        $region34: #{forward.7} parent=31 // pred_check_branch
          %283 = sbr.rel (%p281) target = $region36
        $region35: #{forward.7} parent=31 // pred_region
          %s284 = sand.u32 %s38, 1
          %s285 = scalar_lea.sflag [#allocation3], %s284
          %s286 = sand.u32 %s38, 1
          %s287 = smul.addr %s286, 16
          %s288 = scalar_lea.vmem [#allocation2], %s287
          %s290 = ssub.s32 256, 256
          %291 = vsyncadd %s285, %s290
          %s292 = smul.addr %s28, 2
          %s293 = smul.addr %s292, 128
          %s294 = scalar_lea.hbm %s0, %s293
          %s295 = sshll.u32 %s288, 4
          %s296 = int_to_ptr.vmem [resolvable:$true] %s295
          %301 = dma.hbm_to_vmem [thread:$0]  %s294, 256, %s296, %s285, 128, 128, 8
        $region36: #{forward.7} parent=31 // pred_fallthru
          _
        // Predicated region
        $region37: #{forward.7} parent=31 // pred_check
          %p302 = pneg %p158
        $region38: #{forward.7} parent=31 // pred_check_branch
          %304 = sbr.rel (%p302) target = $region40
        $region39: #{forward.7} parent=31 // pred_region
          %s305 = sand.u32 %s148, 1
          %s306 = scalar_lea.sflag [#allocation12], %s305
          %s307 = sand.u32 %s148, 1
          %s308 = smul.addr %s307, 32
          %s309 = scalar_lea.vmem [#allocation11], %s308
          %s311 = ssub.s32 512, 512
          %312 = vsyncadd %s306, %s311
          %s313 = smul.addr %s28, 4
          %s314 = smul.addr %s313, 128
          %s315 = scalar_lea.hbm %s5, %s314
          %s316 = sshll.u32 %s309, 4
          %s317 = int_to_ptr.vmem [resolvable:$true] %s316
          %322 = dma.hbm_to_vmem [thread:$0]  %s315, 512, %s317, %s306, 256, 256, 16
        $region40: #{forward.7} parent=31 // pred_fallthru
          _
      $region32: #{forward.7} parent=5 // pred_fallthru
        _
      %p323 = scmp.le.s32.totalorder 1, %s28
      %p324 = scmp.lt.s32.totalorder %s28, 3
      %p325 = pnand %p323, %p324
      %p326 = pneg %p325
      // Predicated region
      $region41: #{forward.7} parent=5 // pred_check
        _
      $region42: #{forward.7} parent=5 // pred_check_branch
        %328 = sbr.rel (%p325) target = $region44
      $region43: #{forward.7} parent=5 // pred_region
        %s329 = ssub.s32 %s28, 1
        %s330 = sand.u32 %s41, 1
        %s331 = scalar_lea.sflag [#allocation3], %s330
        %s332 = sand.u32 %s41, 1
        %s333 = smul.addr %s332, 16
        %s334 = scalar_lea.vmem [#allocation2], %s333
        // Predicated region
        $region45: #{forward.7} parent=43 // pred_check
          %p335 = pneg %p54
        $region46: #{forward.7} parent=43 // pred_check_branch
          %337 = sbr.rel (%p335) target = $region48
        $region47: #{forward.7} parent=43 // pred_region
          %338 = dma.done %s331, 256
        $region48: #{forward.7} parent=43 // pred_fallthru
          _
        // Predicated region
        $region49: #{forward.7} parent=43 // pred_check
          %p339 = pneg %p75
        $region50: #{forward.7} parent=43 // pred_check_branch
          %341 = sbr.rel (%p339) target = $region52
        $region51: #{forward.7} parent=43 // pred_region
          %342 = dma.done [#allocation6], 16
        $region52: #{forward.7} parent=43 // pred_fallthru
          _
        // Predicated region
        $region53: #{forward.7} parent=43 // pred_check
          %p343 = pneg %p96
        $region54: #{forward.7} parent=43 // pred_check_branch
          %345 = sbr.rel (%p343) target = $region56
        $region55: #{forward.7} parent=43 // pred_region
          %346 = dma.done [#allocation6], 16
        $region56: #{forward.7} parent=43 // pred_fallthru
          _
        // Predicated region
        $region57: #{forward.7} parent=43 // pred_check
          %p347 = pneg %p117
        $region58: #{forward.7} parent=43 // pred_check_branch
          %349 = sbr.rel (%p347) target = $region60
        $region59: #{forward.7} parent=43 // pred_region
          %350 = dma.done [#allocation9], 512
        $region60: #{forward.7} parent=43 // pred_fallthru
          _
        // Predicated region
        $region61: #{forward.7} parent=43 // pred_check
          %p351 = pneg %p138
        $region62: #{forward.7} parent=43 // pred_check_branch
          %353 = sbr.rel (%p351) target = $region64
        $region63: #{forward.7} parent=43 // pred_region
          %354 = dma.done [#allocation9], 32
        $region64: #{forward.7} parent=43 // pred_fallthru
          _
        %s355 = sand.u32 %s151, 1
        %s356 = scalar_lea.sflag [#allocation12], %s355
        %s357 = sand.u32 %s151, 1
        %s358 = smul.addr %s357, 32
        %s359 = scalar_lea.vmem [#allocation11], %s358
        // Predicated region
        $region65: #{forward.7} parent=43 // pred_check
          %p360 = pneg %p164
        $region66: #{forward.7} parent=43 // pred_check_branch
          %362 = sbr.rel (%p360) target = $region68
        $region67: #{forward.7} parent=43 // pred_region
          %363 = dma.done %s356, 512
        $region68: #{forward.7} parent=43 // pred_fallthru
          _
        %s364 = sand.u32 %s41, 1
        %s365 = scalar_lea.sflag [#allocation3], %s364
        %s366 = sand.u32 %s41, 1
        %s367 = smul.addr %s366, 16
        %s368 = scalar_lea.vmem [#allocation2], %s367
        %p369 = pneg %p54
        %p370 = pneg %p51
        %p371 = pneg %p75
        %p372 = pneg %p72
        %p373 = pneg %p96
        %p374 = pneg %p93
        %p375 = pneg %p117
        %p376 = pneg %p114
        %p377 = pneg %p138
        %p378 = pneg %p135
        %s379 = sand.u32 %s151, 1
        %s380 = scalar_lea.sflag [#allocation12], %s379
        %s381 = sand.u32 %s151, 1
        %s382 = smul.addr %s381, 32
        %s383 = scalar_lea.vmem [#allocation11], %s382
        %p384 = pneg %p164
        %p385 = pneg %p161
        %p386 = pneg %p190
        %p387 = pneg %p187
        %s388 = sand.u32 %s177, 1
        %s389 = scalar_lea.sflag [#allocation4], %s388
        %s390 = sand.u32 %s177, 1
        %s391 = smul.addr %s390, 32
        %s392 = scalar_lea.vmem [#allocation13], %s391
        %p393 = pneg %p216
        %p394 = pneg %p213
        %s395 = sand.u32 %s203, 1
        %s396 = scalar_lea.sflag [#allocation15], %s395
        %s397 = sand.u32 %s203, 1
        %s398 = scalar_lea.vmem [#allocation14], %s397
        %v400 = vld [vmem:[%s334] sm:$0xff]
        %v401 = vld [vmem:[%s334 + $0x8] sm:$0xff]
        %vm402 = vcmask 261120
        %v403 = vsel %vm402, %v400, 0.0
        %404 = vadd.xlane.f32.xlu0 %v403
        %v405 = vpop.xlane.xlu0 %404
        %v406 = vsel %vm402, %v401, 0.0
        %407 = vadd.xlane.f32.xlu0 %v406
        %v408 = vpop.xlane.xlu0 %407
        %v409 = vrcp.pop 32.0
        %v410 = vmul.f32 %v405, %v409
        %v411 = vmul.f32 %v408, %v409
        %v412 = vsub.f32 %v400, %v410
        %v413 = vsub.f32 %v401, %v411
        %v414 = vmul.f32 %v412, %v412
        %v415 = vmul.f32 %v413, %v413
        %v416 = vsel %vm402, %v414, 0.0
        %417 = vadd.xlane.f32.xlu0 %v416
        %v418 = vpop.xlane.xlu0 %417
        %v419 = vsel %vm402, %v415, 0.0
        %420 = vadd.xlane.f32.xlu0 %v419
        %v421 = vpop.xlane.xlu0 %420
        %v422 = vmul.f32 %v418, %v409
        %v423 = vmul.f32 %v421, %v409
        %v424 = vadd.f32 %v422, 1e-05
        %v425 = vadd.f32 %v423, 1e-05
        %v426 = vrsqrt.pop %v424
        %v427 = vrsqrt.pop %v425
        %v428 = vmul.f32 %v412, %v426
        %v429 = vmul.f32 %v413, %v427
        %v430 = vld [vmem:[#allocation5] sm:$0x1]
        %v432 = vlaneseq
        %v433 = vshrl.u32 %v432, 7
        %v434 = vsub.s32 0, %v433
        %v435 = vrot.slane %v430, %v434
        %v437 = vmul.f32 %v428, %v435
        %v438 = vmul.f32 %v429, %v435
        %v439 = vld [vmem:[#allocation7] sm:$0x1]
        %v441 = vlaneseq
        %v442 = vshrl.u32 %v441, 7
        %v443 = vsub.s32 0, %v442
        %v444 = vrot.slane %v439, %v443
        %v446 = vadd.f32 %v437, %v444
        %v447 = vadd.f32 %v438, %v444
        %v448 = vpack.c.bf16 %v447, %v446
        %v449 = vld [vmem:[#allocation8] sm:$0xff]
        %v450 = vld [vmem:[#allocation8 + $0x8] sm:$0xff]
        %v451 = vld [vmem:[#allocation8 + $0x10] sm:$0xff]
        %v452 = vld [vmem:[#allocation8 + $0x18] sm:$0xff]
        %v453 = vld [vmem:[#allocation10] sm:$0x3]
        %v455 = vlaneseq
        %v456 = vshrl.u32 %v455, 7
        %v457 = vsub.s32 0, %v456
        %v458 = vrot.slane %v453, %v457
        %v459 = vlaneseq
        %v460 = vshrl.u32 %v459, 7
        %v461 = vsub.s32 1, %v460
        %v462 = vrot.slane %v453, %v461
        %v469 = vunpack.c.l.b16 %v449
        %v470 = vunpack.c.h.b16 %v449
        %v471 = vunpack.c.l.b16 %v450
        %v472 = vunpack.c.h.b16 %v450
        %v473 = vunpack.c.l.b16 %v451
        %v474 = vunpack.c.h.b16 %v451
        %v475 = vunpack.c.l.b16 %v452
        %v476 = vunpack.c.h.b16 %v452
        %v477 = vpack.c.b16 %v471, %v469
        %v478 = vpack.c.b16 %v472, %v470
        %v479 = vpack.c.b16 %v475, %v473
        %v480 = vpack.c.b16 %v476, %v474
        %v486 = vsel %vm402, %v448, 0
        %488 = vmatprep.subr.bf16.mxu0 %v478
        %489 = vmatpush1.bf16.msra.mxu0 %v477
        %490 = vmatprep.subr.bf16.mxu0 %v480
        %491 = vmatpush1.bf16.msra.mxu0 %v479
        %492 = vmatprep.subr.bf16.mxu0 0
        %493 = vmatpush1.bf16.msra.mxu0 0
        %494 = vmatprep.subr.bf16.mxu0 0
        %495 = vmatpush1.bf16.msra.mxu0 0
        %496 = vmatprep.subr.bf16.mxu0 0
        %497 = vmatpush1.bf16.msra.mxu0 0
        %498 = vmatprep.subr.bf16.mxu0 0
        %499 = vmatpush1.bf16.msra.mxu0 0
        %500 = vmatprep.subr.bf16.mxu0 0
        %501 = vmatpush1.bf16.msra.mxu0 0
        %502 = vmatprep.subr.bf16.mxu0 0
        %503 = vmatpush1.bf16.msra.mxu0 0
        %504 = vmatprep.subr.bf16.mxu0 0
        %505 = vmatpush1.bf16.msra.mxu0 0
        %506 = vmatprep.subr.bf16.mxu0 0
        %507 = vmatpush1.bf16.msra.mxu0 0
        %508 = vmatprep.subr.bf16.mxu0 0
        %509 = vmatpush1.bf16.msra.mxu0 0
        %510 = vmatprep.subr.bf16.mxu0 0
        %511 = vmatpush1.bf16.msra.mxu0 0
        %512 = vmatprep.subr.bf16.mxu0 0
        %513 = vmatpush1.bf16.msra.mxu0 0
        %514 = vmatprep.subr.bf16.mxu0 0
        %515 = vmatpush1.bf16.msra.mxu0 0
        %516 = vmatprep.subr.bf16.mxu0 0
        %517 = vmatpush1.bf16.msra.mxu0 0
        %518 = vmatprep.subr.bf16.mxu0 0
        %519 = vmatpush1.bf16.msra.mxu0 0
        %520 = vmatprep.mubr.bf16.mxu0 0
        %521 = vmatmul.mubr.bf16.gmra.mrb[0].mxu0 %v486
        %v522 = vpop.f32.mrb[0].mxu0
        %v523 = vadd.f32 %v458, %v522
        %v524 = vpop.f32.mrb[0].mxu0
        %v525 = vadd.f32 %v462, %v524
        %v526 = vpop.f32.mrb[0].mxu0
        %v527 = vadd.f32 %v458, %v526
        %v528 = vpop.f32.mrb[0].mxu0
        %v529 = vadd.f32 %v462, %v528
        %530 = vdwg.mxu0
        %531 = vst [vmem:[%s392] sm:$0xff] %v523
        %vm532 = vcmask 523264
        %533 = vst.msk [vmem:[%s392 + $0x8] sm:$0xff] %vm532, %v525
        %534 = vst [vmem:[%s392 + $0x10] sm:$0xff] %v527
        %535 = vst.msk [vmem:[%s392 + $0x18] sm:$0xff] %vm532, %v529
        %v536 = vld [vmem:[%s359] sm:$0xff]
        %v537 = vld [vmem:[%s359 + $0x8] sm:$0xff]
        %v538 = vld [vmem:[%s359 + $0x10] sm:$0xff]
        %v539 = vld [vmem:[%s359 + $0x18] sm:$0xff]
        %v540 = vsub.f32 %v523, %v536
        %v541 = vsub.f32 %v525, %v537
        %v542 = vsub.f32 %v527, %v538
        %v543 = vsub.f32 %v529, %v539
        %v544 = vmul.f32 %v540, %v540
        %v545 = vmul.f32 %v541, %v541
        %v546 = vmul.f32 %v542, %v542
        %v547 = vmul.f32 %v543, %v543
        %v548 = vsel %vm532, %v545, 0.0
        %v549 = vadd.f32 %v544, %v548
        %550 = vadd.xlane.f32.xlu0 %v549
        %v551 = vpop.xlane.xlu0 %550
        %v552 = vsel %vm532, %v547, 0.0
        %v553 = vadd.f32 %v546, %v552
        %554 = vadd.xlane.f32.xlu0 %v553
        %v555 = vpop.xlane.xlu0 %554
        %v556 = vrcp.pop 192.0
        %v557 = vmul.f32 %v551, %v556
        %v558 = vmul.f32 %v555, %v556
        %v559 = vadd.f32 %v557, %v558
        %v560 = vrot.slane %v559, 4
        %v561 = vadd.f32 %v559, %v560
        %v562 = vrot.slane %v561, 2
        %v563 = vadd.f32 %v561, %v562
        %v564 = vrot.slane %v563, 1
        %v565 = vadd.f32 %v563, %v564
        %566 = vst [vmem:[%s398] sm:$0x1] %v565
        %s567 = sand.u32 %s177, 1
        %s568 = scalar_lea.sflag [#allocation4], %s567
        %s569 = sand.u32 %s177, 1
        %s570 = smul.addr %s569, 32
        %s571 = scalar_lea.vmem [#allocation13], %s570
        %s572 = sand.u32 %s203, 1
        %s573 = scalar_lea.sflag [#allocation15], %s572
        %s574 = sand.u32 %s203, 1
        %s575 = scalar_lea.vmem [#allocation14], %s574
        // Predicated region
        $region69: #{forward.7} parent=43 // pred_check
          %p576 = pneg %p187
        $region70: #{forward.7} parent=43 // pred_check_branch
          %578 = sbr.rel (%p576) target = $region72
        $region71: #{forward.7} parent=43 // pred_region
          %s580 = ssub.s32 512, 512
          %581 = vsyncadd %s568, %s580
          %s582 = smul.addr %s33, 4
          %s583 = smul.addr %s582, 128
          %s584 = scalar_lea.hbm %s6, %s583
          %s585 = sshll.u32 %s571, 4
          %s586 = int_to_ptr.vmem [resolvable:$true] %s585
          %591 = dma.vmem_to_hbm [thread:$0]  %s586, 512, %s584, %s568, 256, 256, 16
        $region72: #{forward.7} parent=43 // pred_fallthru
          _
        // Predicated region
        $region73: #{forward.7} parent=43 // pred_check
          %p592 = pneg %p213
        $region74: #{forward.7} parent=43 // pred_check_branch
          %594 = sbr.rel (%p592) target = $region76
        $region75: #{forward.7} parent=43 // pred_region
          %s596 = ssub.s32 16, 16
          %597 = vsyncadd %s573, %s596
          %s598 = smul.addr %s33, 16
          %s599 = scalar_lea.hbm %s7, %s598
          %s601 = sshll.u32 %s575, 4
          %s602 = int_to_ptr.vmem [resolvable:$true] %s601
          %604 = dma.vmem_to_hbm [thread:$0]  %s602, 16, %s599, %s573
        $region76: #{forward.7} parent=43 // pred_fallthru
          _
      $region44: #{forward.7} parent=5 // pred_fallthru
        _
      %p605 = scmp.le.s32.totalorder 2, %s28
      // Predicated region
      $region77: #{forward.7} parent=5 // pred_check
        %p606 = pneg %p605
      $region78: #{forward.7} parent=5 // pred_check_branch
        %608 = sbr.rel (%p606) target = $region80
      $region79: #{forward.7} parent=5 // pred_region
        %s609 = ssub.s32 %s28, 2
        // Predicated region
        $region81: #{forward.7} parent=79 // pred_check
          %p610 = pneg %p193
        $region82: #{forward.7} parent=79 // pred_check_branch
          %612 = sbr.rel (%p610) target = $region84
        $region83: #{forward.7} parent=79 // pred_region
          %s613 = sand.u32 %s178, 1
          %s614 = scalar_lea.sflag [#allocation4], %s613
          %s615 = sand.u32 %s178, 1
          %s616 = smul.addr %s615, 32
          %s617 = scalar_lea.vmem [#allocation13], %s616
          %618 = dma.done %s614, 512
        $region84: #{forward.7} parent=79 // pred_fallthru
          _
        // Predicated region
        $region85: #{forward.7} parent=79 // pred_check
          %p619 = pneg %p219
        $region86: #{forward.7} parent=79 // pred_check_branch
          %621 = sbr.rel (%p619) target = $region88
        $region87: #{forward.7} parent=79 // pred_region
          %s622 = sand.u32 %s204, 1
          %s623 = scalar_lea.sflag [#allocation15], %s622
          %s624 = sand.u32 %s204, 1
          %s625 = scalar_lea.vmem [#allocation14], %s624
          %626 = dma.done %s623, 16
        $region88: #{forward.7} parent=79 // pred_fallthru
          _
      $region80: #{forward.7} parent=5 // pred_fallthru
        _
    $region6: #{forward.7} parent=1 // loop_footer
      %s32 = sadd.s32 1, %s28
    $region7: #{forward.7} parent=1 // loop_footer_branch
      %27 = sbr.rel target = $region3
    $region8: #{forward.7} parent=1 // loop_exit
      _
    %627 = vsyncpa [#allocation3], 1
    %s628 = scalar_lea.sflag [#allocation3], 1
    %629 = vsyncpa %s628, 1
    %630 = vsyncpa [#allocation6], 1
    %631 = vsyncpa [#allocation9], 1
    %632 = vsyncpa [#allocation12], 1
    %s633 = scalar_lea.sflag [#allocation12], 1
    %634 = vsyncpa %s633, 1
    %635 = vsyncpa [#allocation4], 1
    %s636 = scalar_lea.sflag [#allocation4], 1
    %637 = vsyncpa %s636, 1
    %638 = vsyncpa [#allocation15], 1
    %s639 = scalar_lea.sflag [#allocation15], 1
    %640 = vsyncpa %s639, 1

</llo_original>
